<compile_context>
chip_gen: v6e
topology: v6e:2x2x1
jax: 0.10.0
libtpu: 0.0.40
codegen_flags: <defaults>
</compile_context>

<pallas_src>
import functools

import jax
import jax.numpy as jnp
from jax import lax
from jax.experimental import pallas as pl
from jax.experimental.pallas import tpu as pltpu


def _round_up(n, m):
    return (n + m - 1) // m * m


def _pad_gates_cols(w, H, Hp):
    """Pad each of the 4 PyTorch gate blocks [i,f,g,o] along the last dim H -> Hp."""
    lead = w.shape[:-1]
    w = w.reshape(lead + (4, H))
    w = jnp.pad(w, [(0, 0)] * len(lead) + [(0, 0), (0, Hp - H)])
    return w.reshape(lead + (4 * Hp,))


# ----------------------------- Pallas kernel --------------------------------
def bilstm_kernel(x_ref, wih_ref, b_ref, whh_ref, wtop_ref, wbot_ref, bemb_ref,
                  out_ref, pre_f_ref, pre_b_ref, rec_f_ref, rec_b_ref,
                  *, T, H):
    """H here is the (padded) hidden size; whole sequence is VMEM-resident."""
    f32 = jnp.float32

    # (1) Time-parallel input projection for both directions, bias folded in.
    #     One big matmul: (T, B, nIn) x (nIn, 8H) -> (T, B, 8H).
    pre = lax.dot_general(
        x_ref[...], wih_ref[...],
        dimension_numbers=(((2,), (0,)), ((), ())),
        preferred_element_type=f32) + b_ref[...][None]
    pre_f_ref[...] = pre[:, :, :4 * H]      # lane-aligned split (4H % 128 == 0)
    pre_b_ref[...] = pre[:, :, 4 * H:]

    whh = whh_ref[...]                      # block-diagonal (2H, 8H): [fwd | bwd]
    B = rec_f_ref.shape[1]

    def lstm_gates(g, c):
        i = jax.nn.sigmoid(g[:, 0 * H:1 * H])
        f = jax.nn.sigmoid(g[:, 1 * H:2 * H])
        gg = jnp.tanh(g[:, 2 * H:3 * H])
        o = jax.nn.sigmoid(g[:, 3 * H:4 * H])
        c_new = f * c + i * gg
        h_new = o * jnp.tanh(c_new)
        return h_new, c_new

    # (2) Fused fwd+bwd recurrence: one loop, one bigger hidden matmul per step.
    def body(t, carry):
        h_cat, c_f, c_b = carry                       # h_cat: (B, 2H) f32
        hid = jnp.dot(h_cat.astype(whh.dtype), whh,
                      preferred_element_type=f32)     # (B, 8H)
        h_f, c_f = lstm_gates(pre_f_ref[t] + hid[:, :4 * H], c_f)
        h_b, c_b = lstm_gates(pre_b_ref[T - 1 - t] + hid[:, 4 * H:], c_b)
        rec_f_ref[t] = h_f
        rec_b_ref[T - 1 - t] = h_b
        return (jnp.concatenate([h_f, h_b], axis=-1), c_f, c_b)

    init = (jnp.zeros((B, 2 * H), f32),
            jnp.zeros((B, H), f32),
            jnp.zeros((B, H), f32))
    lax.fori_loop(0, T, body, init, unroll=True)

    # (3) Embedding: split weight into fwd/bwd halves -> no concat of rec buffers.
    wtop = wtop_ref[...]
    wbot = wbot_ref[...]
    out = (lax.dot_general(rec_f_ref[...].astype(wtop.dtype), wtop,
                           dimension_numbers=(((2,), (0,)), ((), ())),
                           preferred_element_type=f32)
           + lax.dot_general(rec_b_ref[...].astype(wbot.dtype), wbot,
                             dimension_numbers=(((2,), (0,)), ((), ())),
                             preferred_element_type=f32)
           + bemb_ref[...][None])
    out_ref[...] = out.astype(out_ref.dtype)


# ------------------------------- wrapper -------------------------------------
def bidirectional_lstm(x, params, compute_dtype=jnp.float32):
    """x: (T, B, nIn) f32. compute_dtype=bf16 is the v6e/v7x MXU option
    (accumulation / gate math stays f32 inside the kernel)."""
    T, B, nIn = x.shape
    H = params["whh_f"].shape[0]
    nOut = params["wemb"].shape[1]

    # Lane/sublane-friendly padded sizes (wrapper-side plumbing only).
    Bp = _round_up(B, 8)          # sublane minimum
    Hp = _round_up(H, 128)        # gate slices fall on vreg lane boundaries
    nOutP = _round_up(nOut, 128)  # lane-dense output store

    # ---- fuse + pad weights (zeros in padded lanes keep the math exact) ----
    wih_f = _pad_gates_cols(params["wih_f"], H, Hp)                   # (nIn, 4Hp)
    wih_b = _pad_gates_cols(params["wih_b"], H, Hp)
    wih = jnp.concatenate([wih_f, wih_b], axis=1).astype(compute_dtype)  # (nIn, 8Hp)

    b_f = _pad_gates_cols(params["b_f"], H, Hp)                       # (1, 4Hp)
    b_b = _pad_gates_cols(params["b_b"], H, Hp)
    b = jnp.concatenate([b_f, b_b], axis=1).astype(jnp.float32)       # (1, 8Hp)

    whh_f = _pad_gates_cols(jnp.pad(params["whh_f"], ((0, Hp - H), (0, 0))), H, Hp)
    whh_b = _pad_gates_cols(jnp.pad(params["whh_b"], ((0, Hp - H), (0, 0))), H, Hp)
    zblk = jnp.zeros((Hp, 4 * Hp), compute_dtype)
    whh = jnp.concatenate(                                            # (2Hp, 8Hp)
        [jnp.concatenate([whh_f.astype(compute_dtype), zblk], axis=1),
         jnp.concatenate([zblk, whh_b.astype(compute_dtype)], axis=1)], axis=0)

    wemb = params["wemb"]                                             # (2H, nOut)
    wtop = jnp.pad(wemb[:H], ((0, Hp - H), (0, nOutP - nOut))).astype(compute_dtype)
    wbot = jnp.pad(wemb[H:], ((0, Hp - H), (0, nOutP - nOut))).astype(compute_dtype)
    bemb = jnp.pad(params["bemb"], ((0, 0), (0, nOutP - nOut))).astype(jnp.float32)

    xp = jnp.pad(x, ((0, 0), (0, Bp - B), (0, 0))).astype(compute_dtype)

    kernel = functools.partial(bilstm_kernel, T=T, H=Hp)
    vmem = pl.BlockSpec(memory_space=pltpu.MemorySpace.VMEM)
    out = pl.pallas_call(
        kernel,
        out_shape=jax.ShapeDtypeStruct((T, Bp, nOutP), jnp.float32),
        in_specs=[vmem] * 7,
        out_specs=vmem,
        scratch_shapes=[
            pltpu.VMEM((T, Bp, 4 * Hp), jnp.float32),   # pre-gates fwd
            pltpu.VMEM((T, Bp, 4 * Hp), jnp.float32),   # pre-gates bwd
            pltpu.VMEM((T, Bp, Hp), jnp.float32),       # rec fwd
            pltpu.VMEM((T, Bp, Hp), jnp.float32),       # rec bwd
        ],
    )(xp, wih, b, whh, wtop, wbot, bemb)
    return out[:, :B, :nOut]


# ---------------- pure-JAX reference (for correctness check) ----------------
def _lstm_dir_ref(x, wih, whh, b, reverse):
    T, B, _ = x.shape
    H = whh.shape[0]

    def step(carry, x_t):
        h, c = carry
        gates = x_t @ wih + h @ whh + b
        i = jax.nn.sigmoid(gates[:, 0 * H:1 * H])
        f = jax.nn.sigmoid(gates[:, 1 * H:2 * H])
        g = jnp.tanh(gates[:, 2 * H:3 * H])
        o = jax.nn.sigmoid(gates[:, 3 * H:4 * H])
        c = f * c + i * g
        h = o * jnp.tanh(c)
        return (h, c), h

    init = (jnp.zeros((B, H), jnp.float32), jnp.zeros((B, H), jnp.float32))
    xs = x[::-1] if reverse else x
    _, hs = lax.scan(step, init, xs)
    return hs[::-1] if reverse else hs


def bidirectional_lstm_ref(x, p):
    hf = _lstm_dir_ref(x, p["wih_f"], p["whh_f"], p["b_f"], reverse=False)
    hb = _lstm_dir_ref(x, p["wih_b"], p["whh_b"], p["b_b"], reverse=True)
    rec = jnp.concatenate([hf, hb], axis=-1)
    return rec @ p["wemb"] + p["bemb"][None, :, :]


# ---------------- deterministic parameter construction ----------------
def make_params(key, nIn, nHidden, nOut):
    ks = jax.random.split(key, 10)
    s = 1.0 / jnp.sqrt(nHidden)

    def u(k, shape):
        return jax.random.uniform(k, shape, jnp.float32, -s, s)

    # PyTorch stores (4H, nIn)/(4H, H); we keep the transposed layout directly.
    wih_f = u(ks[0], (nIn, 4 * nHidden))
    whh_f = u(ks[1], (nHidden, 4 * nHidden))
    b_f = (u(ks[2], (4 * nHidden,)) + u(ks[3], (4 * nHidden,))).reshape(1, -1)
    wih_b = u(ks[4], (nIn, 4 * nHidden))
    whh_b = u(ks[5], (nHidden, 4 * nHidden))
    b_b = (u(ks[6], (4 * nHidden,)) + u(ks[7], (4 * nHidden,))).reshape(1, -1)
    se = 1.0 / jnp.sqrt(2 * nHidden)
    wemb = jax.random.uniform(ks[8], (2 * nHidden, nOut), jnp.float32, -se, se)
    bemb = jax.random.uniform(ks[9], (1, nOut), jnp.float32, -se, se)
    return dict(wih_f=wih_f, whh_f=whh_f, b_f=b_f,
                wih_b=wih_b, whh_b=whh_b, b_b=b_b,
                wemb=wemb, bemb=bemb)


if __name__ == "__main__":
    T, B, nIn, nHidden, nOut = 8, 2, 32, 32, 16
    key = jax.random.PRNGKey(0)
    kx, kp = jax.random.split(key)
    x = jax.random.normal(kx, (T, B, nIn), jnp.float32)
    params = make_params(kp, nIn, nHidden, nOut)

    out = jax.block_until_ready(bidirectional_lstm(x, params))
    ref = jax.block_until_ready(bidirectional_lstm_ref(x, params))

    assert out.shape == (T, B, nOut), out.shape
    err = float(jnp.max(jnp.abs(out - ref)))
    assert jnp.allclose(out, ref, atol=3e-5, rtol=3e-5), err
    print("KERNEL_OK")
</pallas_src>

<mosaic_0001>
module attributes {stable_mosaic.version = 11 : i64} {
  func.func @bilstm_kernel(%arg0: memref<8x8x32xf32, #tpu.memory_space<vmem>>, %arg1: memref<32x1024xf32, #tpu.memory_space<vmem>>, %arg2: memref<1x1024xf32, #tpu.memory_space<vmem>>, %arg3: memref<256x1024xf32, #tpu.memory_space<vmem>>, %arg4: memref<128x128xf32, #tpu.memory_space<vmem>>, %arg5: memref<128x128xf32, #tpu.memory_space<vmem>>, %arg6: memref<1x128xf32, #tpu.memory_space<vmem>>, %arg7: memref<8x8x128xf32, #tpu.memory_space<vmem>>, %arg8: memref<8x8x512xf32, #tpu.memory_space<vmem>>, %arg9: memref<8x8x512xf32, #tpu.memory_space<vmem>>, %arg10: memref<8x8x128xf32, #tpu.memory_space<vmem>>, %arg11: memref<8x8x128xf32, #tpu.memory_space<vmem>>) attributes {dimension_semantics = [], scalar_prefetch = 0 : i64, scratch_operands = 4 : i64, tpu.core_type = #tpu.core_type<tc>} {
    %c0 = arith.constant 0 : index
    %c0_0 = arith.constant 0 : index
    %c0_1 = arith.constant 0 : index
    %0 = vector.load %arg0[%c0, %c0_0, %c0_1] : memref<8x8x32xf32, #tpu.memory_space<vmem>>, vector<8x8x32xf32>
    %c0_2 = arith.constant 0 : index
    %c0_3 = arith.constant 0 : index
    %1 = vector.load %arg1[%c0_2, %c0_3] : memref<32x1024xf32, #tpu.memory_space<vmem>>, vector<32x1024xf32>
    %cst = arith.constant dense<0.000000e+00> : vector<8x8x1024xf32>
    %2 = tpu.matmul %0, %1, %cst {dimension_numbers = #tpu.dot_dimension_numbers<[2], [0], [0, 1], [1], [0, 0, 0, 1, 1, 1], [], []>} : vector<8x8x32xf32>, vector<32x1024xf32>, vector<8x8x1024xf32> -> vector<8x8x1024xf32>
    %c0_4 = arith.constant 0 : index
    %c0_5 = arith.constant 0 : index
    %3 = vector.load %arg2[%c0_4, %c0_5] : memref<1x1024xf32, #tpu.memory_space<vmem>>, vector<1x1024xf32>
    %4 = vector.shape_cast %3 : vector<1x1024xf32> to vector<1x1x1024xf32>
    %5 = vector.broadcast %4 : vector<1x1x1024xf32> to vector<8x8x1024xf32>
    %6 = arith.addf %2, %5 : vector<8x8x1024xf32>
    %7 = vector.extract_strided_slice %6 {offsets = [0, 0, 0], sizes = [8, 8, 512], strides = [1, 1, 1]} : vector<8x8x1024xf32> to vector<8x8x512xf32>
    %c0_6 = arith.constant 0 : index
    %c0_7 = arith.constant 0 : index
    %c0_8 = arith.constant 0 : index
    %8 = vector.load %arg8[%c0_6, %c0_7, %c0_8] : memref<8x8x512xf32, #tpu.memory_space<vmem>>, vector<8x8x512xf32>
    tpu.vector_store %arg8[%c0_6, %c0_7, %c0_8], %7 {strides = array<i32>} : memref<8x8x512xf32, #tpu.memory_space<vmem>>, vector<8x8x512xf32>,
    %9 = vector.extract_strided_slice %6 {offsets = [0, 0, 512], sizes = [8, 8, 512], strides = [1, 1, 1]} : vector<8x8x1024xf32> to vector<8x8x512xf32>
    %c0_9 = arith.constant 0 : index
    %c0_10 = arith.constant 0 : index
    %c0_11 = arith.constant 0 : index
    %10 = vector.load %arg9[%c0_9, %c0_10, %c0_11] : memref<8x8x512xf32, #tpu.memory_space<vmem>>, vector<8x8x512xf32>
    tpu.vector_store %arg9[%c0_9, %c0_10, %c0_11], %9 {strides = array<i32>} : memref<8x8x512xf32, #tpu.memory_space<vmem>>, vector<8x8x512xf32>,
    %c0_12 = arith.constant 0 : index
    %c0_13 = arith.constant 0 : index
    %11 = vector.load %arg3[%c0_12, %c0_13] : memref<256x1024xf32, #tpu.memory_space<vmem>>, vector<256x1024xf32>
    %cst_14 = arith.constant 0.000000e+00 : f32
    %12 = vector.broadcast %cst_14 : f32 to vector<8x256xf32>
    %cst_15 = arith.constant 0.000000e+00 : f32
    %13 = vector.broadcast %cst_15 : f32 to vector<8x128xf32>
    %cst_16 = arith.constant 0.000000e+00 : f32
    %14 = vector.broadcast %cst_16 : f32 to vector<8x128xf32>
    %c0_i32 = arith.constant 0 : i32
    %cst_17 = arith.constant dense<0.000000e+00> : vector<8x1024xf32>
    %15 = tpu.matmul %12, %11, %cst_17 {dimension_numbers = #tpu.dot_dimension_numbers<[1], [0], [0], [1], [0, 0, 1, 1], [], []>} : vector<8x256xf32>, vector<256x1024xf32>, vector<8x1024xf32> -> vector<8x1024xf32>
    %16 = arith.index_cast %c0_i32 : i32 to index
    %c0_18 = arith.constant 0 : index
    %c0_19 = arith.constant 0 : index
    %17 = vector.load %arg8[%16, %c0_18, %c0_19] : memref<8x8x512xf32, #tpu.memory_space<vmem>>, vector<1x8x512xf32>
    %18 = vector.shape_cast %17 : vector<1x8x512xf32> to vector<8x512xf32>
    %19 = vector.extract_strided_slice %15 {offsets = [0, 0], sizes = [8, 512], strides = [1, 1]} : vector<8x1024xf32> to vector<8x512xf32>
    %20 = arith.addf %18, %19 : vector<8x512xf32>
    %21 = vector.extract_strided_slice %20 {offsets = [0, 0], sizes = [8, 128], strides = [1, 1]} : vector<8x512xf32> to vector<8x128xf32>
    %22 = arith.negf %21 : vector<8x128xf32>
    %23 = math.exp %22 : vector<8x128xf32>
    %cst_20 = arith.constant 1.000000e+00 : f32
    %24 = vector.broadcast %cst_20 : f32 to vector<8x128xf32>
    %25 = arith.addf %24, %23 : vector<8x128xf32>
    %26 = arith.divf %24, %25 : vector<8x128xf32>
    %27 = vector.extract_strided_slice %20 {offsets = [0, 128], sizes = [8, 128], strides = [1, 1]} : vector<8x512xf32> to vector<8x128xf32>
    %28 = arith.negf %27 : vector<8x128xf32>
    %29 = math.exp %28 : vector<8x128xf32>
    %cst_21 = arith.constant 1.000000e+00 : f32
    %30 = vector.broadcast %cst_21 : f32 to vector<8x128xf32>
    %31 = arith.addf %30, %29 : vector<8x128xf32>
    %32 = arith.divf %30, %31 : vector<8x128xf32>
    %33 = vector.extract_strided_slice %20 {offsets = [0, 256], sizes = [8, 128], strides = [1, 1]} : vector<8x512xf32> to vector<8x128xf32>
    %34 = math.tanh %33 : vector<8x128xf32>
    %35 = vector.extract_strided_slice %20 {offsets = [0, 384], sizes = [8, 128], strides = [1, 1]} : vector<8x512xf32> to vector<8x128xf32>
    %36 = arith.negf %35 : vector<8x128xf32>
    %37 = math.exp %36 : vector<8x128xf32>
    %cst_22 = arith.constant 1.000000e+00 : f32
    %38 = vector.broadcast %cst_22 : f32 to vector<8x128xf32>
    %39 = arith.addf %38, %37 : vector<8x128xf32>
    %40 = arith.divf %38, %39 : vector<8x128xf32>
    %41 = arith.mulf %32, %13 : vector<8x128xf32>
    %42 = arith.mulf %26, %34 : vector<8x128xf32>
    %43 = arith.addf %41, %42 : vector<8x128xf32>
    %44 = math.tanh %43 : vector<8x128xf32>
    %45 = arith.mulf %40, %44 : vector<8x128xf32>
    %c7_i32 = arith.constant 7 : i32
    %46 = arith.subi %c7_i32, %c0_i32 : i32
    %47 = arith.index_cast %46 : i32 to index
    %c0_23 = arith.constant 0 : index
    %c0_24 = arith.constant 0 : index
    %48 = vector.load %arg9[%47, %c0_23, %c0_24] : memref<8x8x512xf32, #tpu.memory_space<vmem>>, vector<1x8x512xf32>
    %49 = vector.shape_cast %48 : vector<1x8x512xf32> to vector<8x512xf32>
    %50 = vector.extract_strided_slice %15 {offsets = [0, 512], sizes = [8, 512], strides = [1, 1]} : vector<8x1024xf32> to vector<8x512xf32>
    %51 = arith.addf %49, %50 : vector<8x512xf32>
    %52 = vector.extract_strided_slice %51 {offsets = [0, 0], sizes = [8, 128], strides = [1, 1]} : vector<8x512xf32> to vector<8x128xf32>
    %53 = arith.negf %52 : vector<8x128xf32>
    %54 = math.exp %53 : vector<8x128xf32>
    %cst_25 = arith.constant 1.000000e+00 : f32
    %55 = vector.broadcast %cst_25 : f32 to vector<8x128xf32>
    %56 = arith.addf %55, %54 : vector<8x128xf32>
    %57 = arith.divf %55, %56 : vector<8x128xf32>
    %58 = vector.extract_strided_slice %51 {offsets = [0, 128], sizes = [8, 128], strides = [1, 1]} : vector<8x512xf32> to vector<8x128xf32>
    %59 = arith.negf %58 : vector<8x128xf32>
    %60 = math.exp %59 : vector<8x128xf32>
    %cst_26 = arith.constant 1.000000e+00 : f32
    %61 = vector.broadcast %cst_26 : f32 to vector<8x128xf32>
    %62 = arith.addf %61, %60 : vector<8x128xf32>
    %63 = arith.divf %61, %62 : vector<8x128xf32>
    %64 = vector.extract_strided_slice %51 {offsets = [0, 256], sizes = [8, 128], strides = [1, 1]} : vector<8x512xf32> to vector<8x128xf32>
    %65 = math.tanh %64 : vector<8x128xf32>
    %66 = vector.extract_strided_slice %51 {offsets = [0, 384], sizes = [8, 128], strides = [1, 1]} : vector<8x512xf32> to vector<8x128xf32>
    %67 = arith.negf %66 : vector<8x128xf32>
    %68 = math.exp %67 : vector<8x128xf32>
    %cst_27 = arith.constant 1.000000e+00 : f32
    %69 = vector.broadcast %cst_27 : f32 to vector<8x128xf32>
    %70 = arith.addf %69, %68 : vector<8x128xf32>
    %71 = arith.divf %69, %70 : vector<8x128xf32>
    %72 = arith.mulf %63, %14 : vector<8x128xf32>
    %73 = arith.mulf %57, %65 : vector<8x128xf32>
    %74 = arith.addf %72, %73 : vector<8x128xf32>
    %75 = math.tanh %74 : vector<8x128xf32>
    %76 = arith.mulf %71, %75 : vector<8x128xf32>
    %77 = arith.index_cast %c0_i32 : i32 to index
    %c0_28 = arith.constant 0 : index
    %c0_29 = arith.constant 0 : index
    %78 = vector.load %arg10[%77, %c0_28, %c0_29] : memref<8x8x128xf32, #tpu.memory_space<vmem>>, vector<1x8x128xf32>
    %79 = vector.shape_cast %78 : vector<1x8x128xf32> to vector<8x128xf32>
    %80 = vector.shape_cast %45 : vector<8x128xf32> to vector<1x8x128xf32>
    tpu.vector_store %arg10[%77, %c0_28, %c0_29], %80 {strides = array<i32>} : memref<8x8x128xf32, #tpu.memory_space<vmem>>, vector<1x8x128xf32>,
    %c7_i32_30 = arith.constant 7 : i32
    %81 = arith.subi %c7_i32_30, %c0_i32 : i32
    %82 = arith.index_cast %81 : i32 to index
    %c0_31 = arith.constant 0 : index
    %c0_32 = arith.constant 0 : index
    %83 = vector.load %arg11[%82, %c0_31, %c0_32] : memref<8x8x128xf32, #tpu.memory_space<vmem>>, vector<1x8x128xf32>
    %84 = vector.shape_cast %83 : vector<1x8x128xf32> to vector<8x128xf32>
    %85 = vector.shape_cast %76 : vector<8x128xf32> to vector<1x8x128xf32>
    tpu.vector_store %arg11[%82, %c0_31, %c0_32], %85 {strides = array<i32>} : memref<8x8x128xf32, #tpu.memory_space<vmem>>, vector<1x8x128xf32>,
    %86 = tpu.concatenate %45, %76 in 1 : vector<8x128xf32>, vector<8x128xf32> -> vector<8x256xf32>
    %c1_i32 = arith.constant 1 : i32
    %cst_33 = arith.constant dense<0.000000e+00> : vector<8x1024xf32>
    %87 = tpu.matmul %86, %11, %cst_33 {dimension_numbers = #tpu.dot_dimension_numbers<[1], [0], [0], [1], [0, 0, 1, 1], [], []>} : vector<8x256xf32>, vector<256x1024xf32>, vector<8x1024xf32> -> vector<8x1024xf32>
    %88 = arith.index_cast %c1_i32 : i32 to index
    %c0_34 = arith.constant 0 : index
    %c0_35 = arith.constant 0 : index
    %89 = vector.load %arg8[%88, %c0_34, %c0_35] : memref<8x8x512xf32, #tpu.memory_space<vmem>>, vector<1x8x512xf32>
    %90 = vector.shape_cast %89 : vector<1x8x512xf32> to vector<8x512xf32>
    %91 = vector.extract_strided_slice %87 {offsets = [0, 0], sizes = [8, 512], strides = [1, 1]} : vector<8x1024xf32> to vector<8x512xf32>
    %92 = arith.addf %90, %91 : vector<8x512xf32>
    %93 = vector.extract_strided_slice %92 {offsets = [0, 0], sizes = [8, 128], strides = [1, 1]} : vector<8x512xf32> to vector<8x128xf32>
    %94 = arith.negf %93 : vector<8x128xf32>
    %95 = math.exp %94 : vector<8x128xf32>
    %cst_36 = arith.constant 1.000000e+00 : f32
    %96 = vector.broadcast %cst_36 : f32 to vector<8x128xf32>
    %97 = arith.addf %96, %95 : vector<8x128xf32>
    %98 = arith.divf %96, %97 : vector<8x128xf32>
    %99 = vector.extract_strided_slice %92 {offsets = [0, 128], sizes = [8, 128], strides = [1, 1]} : vector<8x512xf32> to vector<8x128xf32>
    %100 = arith.negf %99 : vector<8x128xf32>
    %101 = math.exp %100 : vector<8x128xf32>
    %cst_37 = arith.constant 1.000000e+00 : f32
    %102 = vector.broadcast %cst_37 : f32 to vector<8x128xf32>
    %103 = arith.addf %102, %101 : vector<8x128xf32>
    %104 = arith.divf %102, %103 : vector<8x128xf32>
    %105 = vector.extract_strided_slice %92 {offsets = [0, 256], sizes = [8, 128], strides = [1, 1]} : vector<8x512xf32> to vector<8x128xf32>
    %106 = math.tanh %105 : vector<8x128xf32>
    %107 = vector.extract_strided_slice %92 {offsets = [0, 384], sizes = [8, 128], strides = [1, 1]} : vector<8x512xf32> to vector<8x128xf32>
    %108 = arith.negf %107 : vector<8x128xf32>
    %109 = math.exp %108 : vector<8x128xf32>
    %cst_38 = arith.constant 1.000000e+00 : f32
    %110 = vector.broadcast %cst_38 : f32 to vector<8x128xf32>
    %111 = arith.addf %110, %109 : vector<8x128xf32>
    %112 = arith.divf %110, %111 : vector<8x128xf32>
    %113 = arith.mulf %104, %43 : vector<8x128xf32>
    %114 = arith.mulf %98, %106 : vector<8x128xf32>
    %115 = arith.addf %113, %114 : vector<8x128xf32>
    %116 = math.tanh %115 : vector<8x128xf32>
    %117 = arith.mulf %112, %116 : vector<8x128xf32>
    %c7_i32_39 = arith.constant 7 : i32
    %118 = arith.subi %c7_i32_39, %c1_i32 : i32
    %119 = arith.index_cast %118 : i32 to index
    %c0_40 = arith.constant 0 : index
    %c0_41 = arith.constant 0 : index
    %120 = vector.load %arg9[%119, %c0_40, %c0_41] : memref<8x8x512xf32, #tpu.memory_space<vmem>>, vector<1x8x512xf32>
    %121 = vector.shape_cast %120 : vector<1x8x512xf32> to vector<8x512xf32>
    %122 = vector.extract_strided_slice %87 {offsets = [0, 512], sizes = [8, 512], strides = [1, 1]} : vector<8x1024xf32> to vector<8x512xf32>
    %123 = arith.addf %121, %122 : vector<8x512xf32>
    %124 = vector.extract_strided_slice %123 {offsets = [0, 0], sizes = [8, 128], strides = [1, 1]} : vector<8x512xf32> to vector<8x128xf32>
    %125 = arith.negf %124 : vector<8x128xf32>
    %126 = math.exp %125 : vector<8x128xf32>
    %cst_42 = arith.constant 1.000000e+00 : f32
    %127 = vector.broadcast %cst_42 : f32 to vector<8x128xf32>
    %128 = arith.addf %127, %126 : vector<8x128xf32>
    %129 = arith.divf %127, %128 : vector<8x128xf32>
    %130 = vector.extract_strided_slice %123 {offsets = [0, 128], sizes = [8, 128], strides = [1, 1]} : vector<8x512xf32> to vector<8x128xf32>
    %131 = arith.negf %130 : vector<8x128xf32>
    %132 = math.exp %131 : vector<8x128xf32>
    %cst_43 = arith.constant 1.000000e+00 : f32
    %133 = vector.broadcast %cst_43 : f32 to vector<8x128xf32>
    %134 = arith.addf %133, %132 : vector<8x128xf32>
    %135 = arith.divf %133, %134 : vector<8x128xf32>
    %136 = vector.extract_strided_slice %123 {offsets = [0, 256], sizes = [8, 128], strides = [1, 1]} : vector<8x512xf32> to vector<8x128xf32>
    %137 = math.tanh %136 : vector<8x128xf32>
    %138 = vector.extract_strided_slice %123 {offsets = [0, 384], sizes = [8, 128], strides = [1, 1]} : vector<8x512xf32> to vector<8x128xf32>
    %139 = arith.negf %138 : vector<8x128xf32>
    %140 = math.exp %139 : vector<8x128xf32>
    %cst_44 = arith.constant 1.000000e+00 : f32
    %141 = vector.broadcast %cst_44 : f32 to vector<8x128xf32>
    %142 = arith.addf %141, %140 : vector<8x128xf32>
    %143 = arith.divf %141, %142 : vector<8x128xf32>
    %144 = arith.mulf %135, %74 : vector<8x128xf32>
    %145 = arith.mulf %129, %137 : vector<8x128xf32>
    %146 = arith.addf %144, %145 : vector<8x128xf32>
    %147 = math.tanh %146 : vector<8x128xf32>
    %148 = arith.mulf %143, %147 : vector<8x128xf32>
    %149 = arith.index_cast %c1_i32 : i32 to index
    %c0_45 = arith.constant 0 : index
    %c0_46 = arith.constant 0 : index
    %150 = vector.load %arg10[%149, %c0_45, %c0_46] : memref<8x8x128xf32, #tpu.memory_space<vmem>>, vector<1x8x128xf32>
    %151 = vector.shape_cast %150 : vector<1x8x128xf32> to vector<8x128xf32>
    %152 = vector.shape_cast %117 : vector<8x128xf32> to vector<1x8x128xf32>
    tpu.vector_store %arg10[%149, %c0_45, %c0_46], %152 {strides = array<i32>} : memref<8x8x128xf32, #tpu.memory_space<vmem>>, vector<1x8x128xf32>,
    %c7_i32_47 = arith.constant 7 : i32
    %153 = arith.subi %c7_i32_47, %c1_i32 : i32
    %154 = arith.index_cast %153 : i32 to index
    %c0_48 = arith.constant 0 : index
    %c0_49 = arith.constant 0 : index
    %155 = vector.load %arg11[%154, %c0_48, %c0_49] : memref<8x8x128xf32, #tpu.memory_space<vmem>>, vector<1x8x128xf32>
    %156 = vector.shape_cast %155 : vector<1x8x128xf32> to vector<8x128xf32>
    %157 = vector.shape_cast %148 : vector<8x128xf32> to vector<1x8x128xf32>
    tpu.vector_store %arg11[%154, %c0_48, %c0_49], %157 {strides = array<i32>} : memref<8x8x128xf32, #tpu.memory_space<vmem>>, vector<1x8x128xf32>,
    %158 = tpu.concatenate %117, %148 in 1 : vector<8x128xf32>, vector<8x128xf32> -> vector<8x256xf32>
    %c2_i32 = arith.constant 2 : i32
    %cst_50 = arith.constant dense<0.000000e+00> : vector<8x1024xf32>
    %159 = tpu.matmul %158, %11, %cst_50 {dimension_numbers = #tpu.dot_dimension_numbers<[1], [0], [0], [1], [0, 0, 1, 1], [], []>} : vector<8x256xf32>, vector<256x1024xf32>, vector<8x1024xf32> -> vector<8x1024xf32>
    %160 = arith.index_cast %c2_i32 : i32 to index
    %c0_51 = arith.constant 0 : index
    %c0_52 = arith.constant 0 : index
    %161 = vector.load %arg8[%160, %c0_51, %c0_52] : memref<8x8x512xf32, #tpu.memory_space<vmem>>, vector<1x8x512xf32>
    %162 = vector.shape_cast %161 : vector<1x8x512xf32> to vector<8x512xf32>
    %163 = vector.extract_strided_slice %159 {offsets = [0, 0], sizes = [8, 512], strides = [1, 1]} : vector<8x1024xf32> to vector<8x512xf32>
    %164 = arith.addf %162, %163 : vector<8x512xf32>
    %165 = vector.extract_strided_slice %164 {offsets = [0, 0], sizes = [8, 128], strides = [1, 1]} : vector<8x512xf32> to vector<8x128xf32>
    %166 = arith.negf %165 : vector<8x128xf32>
    %167 = math.exp %166 : vector<8x128xf32>
    %cst_53 = arith.constant 1.000000e+00 : f32
    %168 = vector.broadcast %cst_53 : f32 to vector<8x128xf32>
    %169 = arith.addf %168, %167 : vector<8x128xf32>
    %170 = arith.divf %168, %169 : vector<8x128xf32>
    %171 = vector.extract_strided_slice %164 {offsets = [0, 128], sizes = [8, 128], strides = [1, 1]} : vector<8x512xf32> to vector<8x128xf32>
    %172 = arith.negf %171 : vector<8x128xf32>
    %173 = math.exp %172 : vector<8x128xf32>
    %cst_54 = arith.constant 1.000000e+00 : f32
    %174 = vector.broadcast %cst_54 : f32 to vector<8x128xf32>
    %175 = arith.addf %174, %173 : vector<8x128xf32>
    %176 = arith.divf %174, %175 : vector<8x128xf32>
    %177 = vector.extract_strided_slice %164 {offsets = [0, 256], sizes = [8, 128], strides = [1, 1]} : vector<8x512xf32> to vector<8x128xf32>
    %178 = math.tanh %177 : vector<8x128xf32>
    %179 = vector.extract_strided_slice %164 {offsets = [0, 384], sizes = [8, 128], strides = [1, 1]} : vector<8x512xf32> to vector<8x128xf32>
    %180 = arith.negf %179 : vector<8x128xf32>
    %181 = math.exp %180 : vector<8x128xf32>
    %cst_55 = arith.constant 1.000000e+00 : f32
    %182 = vector.broadcast %cst_55 : f32 to vector<8x128xf32>
    %183 = arith.addf %182, %181 : vector<8x128xf32>
    %184 = arith.divf %182, %183 : vector<8x128xf32>
    %185 = arith.mulf %176, %115 : vector<8x128xf32>
    %186 = arith.mulf %170, %178 : vector<8x128xf32>
    %187 = arith.addf %185, %186 : vector<8x128xf32>
    %188 = math.tanh %187 : vector<8x128xf32>
    %189 = arith.mulf %184, %188 : vector<8x128xf32>
    %c7_i32_56 = arith.constant 7 : i32
    %190 = arith.subi %c7_i32_56, %c2_i32 : i32
    %191 = arith.index_cast %190 : i32 to index
    %c0_57 = arith.constant 0 : index
    %c0_58 = arith.constant 0 : index
    %192 = vector.load %arg9[%191, %c0_57, %c0_58] : memref<8x8x512xf32, #tpu.memory_space<vmem>>, vector<1x8x512xf32>
    %193 = vector.shape_cast %192 : vector<1x8x512xf32> to vector<8x512xf32>
    %194 = vector.extract_strided_slice %159 {offsets = [0, 512], sizes = [8, 512], strides = [1, 1]} : vector<8x1024xf32> to vector<8x512xf32>
    %195 = arith.addf %193, %194 : vector<8x512xf32>
    %196 = vector.extract_strided_slice %195 {offsets = [0, 0], sizes = [8, 128], strides = [1, 1]} : vector<8x512xf32> to vector<8x128xf32>
    %197 = arith.negf %196 : vector<8x128xf32>
    %198 = math.exp %197 : vector<8x128xf32>
    %cst_59 = arith.constant 1.000000e+00 : f32
    %199 = vector.broadcast %cst_59 : f32 to vector<8x128xf32>
    %200 = arith.addf %199, %198 : vector<8x128xf32>
    %201 = arith.divf %199, %200 : vector<8x128xf32>
    %202 = vector.extract_strided_slice %195 {offsets = [0, 128], sizes = [8, 128], strides = [1, 1]} : vector<8x512xf32> to vector<8x128xf32>
    %203 = arith.negf %202 : vector<8x128xf32>
    %204 = math.exp %203 : vector<8x128xf32>
    %cst_60 = arith.constant 1.000000e+00 : f32
    %205 = vector.broadcast %cst_60 : f32 to vector<8x128xf32>
    %206 = arith.addf %205, %204 : vector<8x128xf32>
    %207 = arith.divf %205, %206 : vector<8x128xf32>
    %208 = vector.extract_strided_slice %195 {offsets = [0, 256], sizes = [8, 128], strides = [1, 1]} : vector<8x512xf32> to vector<8x128xf32>
    %209 = math.tanh %208 : vector<8x128xf32>
    %210 = vector.extract_strided_slice %195 {offsets = [0, 384], sizes = [8, 128], strides = [1, 1]} : vector<8x512xf32> to vector<8x128xf32>
    %211 = arith.negf %210 : vector<8x128xf32>
    %212 = math.exp %211 : vector<8x128xf32>
    %cst_61 = arith.constant 1.000000e+00 : f32
    %213 = vector.broadcast %cst_61 : f32 to vector<8x128xf32>
    %214 = arith.addf %213, %212 : vector<8x128xf32>
    %215 = arith.divf %213, %214 : vector<8x128xf32>
    %216 = arith.mulf %207, %146 : vector<8x128xf32>
    %217 = arith.mulf %201, %209 : vector<8x128xf32>
    %218 = arith.addf %216, %217 : vector<8x128xf32>
    %219 = math.tanh %218 : vector<8x128xf32>
    %220 = arith.mulf %215, %219 : vector<8x128xf32>
    %221 = arith.index_cast %c2_i32 : i32 to index
    %c0_62 = arith.constant 0 : index
    %c0_63 = arith.constant 0 : index
    %222 = vector.load %arg10[%221, %c0_62, %c0_63] : memref<8x8x128xf32, #tpu.memory_space<vmem>>, vector<1x8x128xf32>
    %223 = vector.shape_cast %222 : vector<1x8x128xf32> to vector<8x128xf32>
    %224 = vector.shape_cast %189 : vector<8x128xf32> to vector<1x8x128xf32>
    tpu.vector_store %arg10[%221, %c0_62, %c0_63], %224 {strides = array<i32>} : memref<8x8x128xf32, #tpu.memory_space<vmem>>, vector<1x8x128xf32>,
    %c7_i32_64 = arith.constant 7 : i32
    %225 = arith.subi %c7_i32_64, %c2_i32 : i32
    %226 = arith.index_cast %225 : i32 to index
    %c0_65 = arith.constant 0 : index
    %c0_66 = arith.constant 0 : index
    %227 = vector.load %arg11[%226, %c0_65, %c0_66] : memref<8x8x128xf32, #tpu.memory_space<vmem>>, vector<1x8x128xf32>
    %228 = vector.shape_cast %227 : vector<1x8x128xf32> to vector<8x128xf32>
    %229 = vector.shape_cast %220 : vector<8x128xf32> to vector<1x8x128xf32>
    tpu.vector_store %arg11[%226, %c0_65, %c0_66], %229 {strides = array<i32>} : memref<8x8x128xf32, #tpu.memory_space<vmem>>, vector<1x8x128xf32>,
    %230 = tpu.concatenate %189, %220 in 1 : vector<8x128xf32>, vector<8x128xf32> -> vector<8x256xf32>
    %c3_i32 = arith.constant 3 : i32
    %cst_67 = arith.constant dense<0.000000e+00> : vector<8x1024xf32>
    %231 = tpu.matmul %230, %11, %cst_67 {dimension_numbers = #tpu.dot_dimension_numbers<[1], [0], [0], [1], [0, 0, 1, 1], [], []>} : vector<8x256xf32>, vector<256x1024xf32>, vector<8x1024xf32> -> vector<8x1024xf32>
    %232 = arith.index_cast %c3_i32 : i32 to index
    %c0_68 = arith.constant 0 : index
    %c0_69 = arith.constant 0 : index
    %233 = vector.load %arg8[%232, %c0_68, %c0_69] : memref<8x8x512xf32, #tpu.memory_space<vmem>>, vector<1x8x512xf32>
    %234 = vector.shape_cast %233 : vector<1x8x512xf32> to vector<8x512xf32>
    %235 = vector.extract_strided_slice %231 {offsets = [0, 0], sizes = [8, 512], strides = [1, 1]} : vector<8x1024xf32> to vector<8x512xf32>
    %236 = arith.addf %234, %235 : vector<8x512xf32>
    %237 = vector.extract_strided_slice %236 {offsets = [0, 0], sizes = [8, 128], strides = [1, 1]} : vector<8x512xf32> to vector<8x128xf32>
    %238 = arith.negf %237 : vector<8x128xf32>
    %239 = math.exp %238 : vector<8x128xf32>
    %cst_70 = arith.constant 1.000000e+00 : f32
    %240 = vector.broadcast %cst_70 : f32 to vector<8x128xf32>
    %241 = arith.addf %240, %239 : vector<8x128xf32>
    %242 = arith.divf %240, %241 : vector<8x128xf32>
    %243 = vector.extract_strided_slice %236 {offsets = [0, 128], sizes = [8, 128], strides = [1, 1]} : vector<8x512xf32> to vector<8x128xf32>
    %244 = arith.negf %243 : vector<8x128xf32>
    %245 = math.exp %244 : vector<8x128xf32>
    %cst_71 = arith.constant 1.000000e+00 : f32
    %246 = vector.broadcast %cst_71 : f32 to vector<8x128xf32>
    %247 = arith.addf %246, %245 : vector<8x128xf32>
    %248 = arith.divf %246, %247 : vector<8x128xf32>
    %249 = vector.extract_strided_slice %236 {offsets = [0, 256], sizes = [8, 128], strides = [1, 1]} : vector<8x512xf32> to vector<8x128xf32>
    %250 = math.tanh %249 : vector<8x128xf32>
    %251 = vector.extract_strided_slice %236 {offsets = [0, 384], sizes = [8, 128], strides = [1, 1]} : vector<8x512xf32> to vector<8x128xf32>
    %252 = arith.negf %251 : vector<8x128xf32>
    %253 = math.exp %252 : vector<8x128xf32>
    %cst_72 = arith.constant 1.000000e+00 : f32
    %254 = vector.broadcast %cst_72 : f32 to vector<8x128xf32>
    %255 = arith.addf %254, %253 : vector<8x128xf32>
    %256 = arith.divf %254, %255 : vector<8x128xf32>
    %257 = arith.mulf %248, %187 : vector<8x128xf32>
    %258 = arith.mulf %242, %250 : vector<8x128xf32>
    %259 = arith.addf %257, %258 : vector<8x128xf32>
    %260 = math.tanh %259 : vector<8x128xf32>
    %261 = arith.mulf %256, %260 : vector<8x128xf32>
    %c7_i32_73 = arith.constant 7 : i32
    %262 = arith.subi %c7_i32_73, %c3_i32 : i32
    %263 = arith.index_cast %262 : i32 to index
    %c0_74 = arith.constant 0 : index
    %c0_75 = arith.constant 0 : index
    %264 = vector.load %arg9[%263, %c0_74, %c0_75] : memref<8x8x512xf32, #tpu.memory_space<vmem>>, vector<1x8x512xf32>
    %265 = vector.shape_cast %264 : vector<1x8x512xf32> to vector<8x512xf32>
    %266 = vector.extract_strided_slice %231 {offsets = [0, 512], sizes = [8, 512], strides = [1, 1]} : vector<8x1024xf32> to vector<8x512xf32>
    %267 = arith.addf %265, %266 : vector<8x512xf32>
    %268 = vector.extract_strided_slice %267 {offsets = [0, 0], sizes = [8, 128], strides = [1, 1]} : vector<8x512xf32> to vector<8x128xf32>
    %269 = arith.negf %268 : vector<8x128xf32>
    %270 = math.exp %269 : vector<8x128xf32>
    %cst_76 = arith.constant 1.000000e+00 : f32
    %271 = vector.broadcast %cst_76 : f32 to vector<8x128xf32>
    %272 = arith.addf %271, %270 : vector<8x128xf32>
    %273 = arith.divf %271, %272 : vector<8x128xf32>
    %274 = vector.extract_strided_slice %267 {offsets = [0, 128], sizes = [8, 128], strides = [1, 1]} : vector<8x512xf32> to vector<8x128xf32>
    %275 = arith.negf %274 : vector<8x128xf32>
    %276 = math.exp %275 : vector<8x128xf32>
    %cst_77 = arith.constant 1.000000e+00 : f32
    %277 = vector.broadcast %cst_77 : f32 to vector<8x128xf32>
    %278 = arith.addf %277, %276 : vector<8x128xf32>
    %279 = arith.divf %277, %278 : vector<8x128xf32>
    %280 = vector.extract_strided_slice %267 {offsets = [0, 256], sizes = [8, 128], strides = [1, 1]} : vector<8x512xf32> to vector<8x128xf32>
    %281 = math.tanh %280 : vector<8x128xf32>
    %282 = vector.extract_strided_slice %267 {offsets = [0, 384], sizes = [8, 128], strides = [1, 1]} : vector<8x512xf32> to vector<8x128xf32>
    %283 = arith.negf %282 : vector<8x128xf32>
    %284 = math.exp %283 : vector<8x128xf32>
    %cst_78 = arith.constant 1.000000e+00 : f32
    %285 = vector.broadcast %cst_78 : f32 to vector<8x128xf32>
    %286 = arith.addf %285, %284 : vector<8x128xf32>
    %287 = arith.divf %285, %286 : vector<8x128xf32>
    %288 = arith.mulf %279, %218 : vector<8x128xf32>
    %289 = arith.mulf %273, %281 : vector<8x128xf32>
    %290 = arith.addf %288, %289 : vector<8x128xf32>
    %291 = math.tanh %290 : vector<8x128xf32>
    %292 = arith.mulf %287, %291 : vector<8x128xf32>
    %293 = arith.index_cast %c3_i32 : i32 to index
    %c0_79 = arith.constant 0 : index
    %c0_80 = arith.constant 0 : index
    %294 = vector.load %arg10[%293, %c0_79, %c0_80] : memref<8x8x128xf32, #tpu.memory_space<vmem>>, vector<1x8x128xf32>
    %295 = vector.shape_cast %294 : vector<1x8x128xf32> to vector<8x128xf32>
    %296 = vector.shape_cast %261 : vector<8x128xf32> to vector<1x8x128xf32>
    tpu.vector_store %arg10[%293, %c0_79, %c0_80], %296 {strides = array<i32>} : memref<8x8x128xf32, #tpu.memory_space<vmem>>, vector<1x8x128xf32>,
    %c7_i32_81 = arith.constant 7 : i32
    %297 = arith.subi %c7_i32_81, %c3_i32 : i32
    %298 = arith.index_cast %297 : i32 to index
    %c0_82 = arith.constant 0 : index
    %c0_83 = arith.constant 0 : index
    %299 = vector.load %arg11[%298, %c0_82, %c0_83] : memref<8x8x128xf32, #tpu.memory_space<vmem>>, vector<1x8x128xf32>
    %300 = vector.shape_cast %299 : vector<1x8x128xf32> to vector<8x128xf32>
    %301 = vector.shape_cast %292 : vector<8x128xf32> to vector<1x8x128xf32>
    tpu.vector_store %arg11[%298, %c0_82, %c0_83], %301 {strides = array<i32>} : memref<8x8x128xf32, #tpu.memory_space<vmem>>, vector<1x8x128xf32>,
    %302 = tpu.concatenate %261, %292 in 1 : vector<8x128xf32>, vector<8x128xf32> -> vector<8x256xf32>
    %c4_i32 = arith.constant 4 : i32
    %cst_84 = arith.constant dense<0.000000e+00> : vector<8x1024xf32>
    %303 = tpu.matmul %302, %11, %cst_84 {dimension_numbers = #tpu.dot_dimension_numbers<[1], [0], [0], [1], [0, 0, 1, 1], [], []>} : vector<8x256xf32>, vector<256x1024xf32>, vector<8x1024xf32> -> vector<8x1024xf32>
    %304 = arith.index_cast %c4_i32 : i32 to index
    %c0_85 = arith.constant 0 : index
    %c0_86 = arith.constant 0 : index
    %305 = vector.load %arg8[%304, %c0_85, %c0_86] : memref<8x8x512xf32, #tpu.memory_space<vmem>>, vector<1x8x512xf32>
    %306 = vector.shape_cast %305 : vector<1x8x512xf32> to vector<8x512xf32>
    %307 = vector.extract_strided_slice %303 {offsets = [0, 0], sizes = [8, 512], strides = [1, 1]} : vector<8x1024xf32> to vector<8x512xf32>
    %308 = arith.addf %306, %307 : vector<8x512xf32>
    %309 = vector.extract_strided_slice %308 {offsets = [0, 0], sizes = [8, 128], strides = [1, 1]} : vector<8x512xf32> to vector<8x128xf32>
    %310 = arith.negf %309 : vector<8x128xf32>
    %311 = math.exp %310 : vector<8x128xf32>
    %cst_87 = arith.constant 1.000000e+00 : f32
    %312 = vector.broadcast %cst_87 : f32 to vector<8x128xf32>
    %313 = arith.addf %312, %311 : vector<8x128xf32>
    %314 = arith.divf %312, %313 : vector<8x128xf32>
    %315 = vector.extract_strided_slice %308 {offsets = [0, 128], sizes = [8, 128], strides = [1, 1]} : vector<8x512xf32> to vector<8x128xf32>
    %316 = arith.negf %315 : vector<8x128xf32>
    %317 = math.exp %316 : vector<8x128xf32>
    %cst_88 = arith.constant 1.000000e+00 : f32
    %318 = vector.broadcast %cst_88 : f32 to vector<8x128xf32>
    %319 = arith.addf %318, %317 : vector<8x128xf32>
    %320 = arith.divf %318, %319 : vector<8x128xf32>
    %321 = vector.extract_strided_slice %308 {offsets = [0, 256], sizes = [8, 128], strides = [1, 1]} : vector<8x512xf32> to vector<8x128xf32>
    %322 = math.tanh %321 : vector<8x128xf32>
    %323 = vector.extract_strided_slice %308 {offsets = [0, 384], sizes = [8, 128], strides = [1, 1]} : vector<8x512xf32> to vector<8x128xf32>
    %324 = arith.negf %323 : vector<8x128xf32>
    %325 = math.exp %324 : vector<8x128xf32>
    %cst_89 = arith.constant 1.000000e+00 : f32
    %326 = vector.broadcast %cst_89 : f32 to vector<8x128xf32>
    %327 = arith.addf %326, %325 : vector<8x128xf32>
    %328 = arith.divf %326, %327 : vector<8x128xf32>
    %329 = arith.mulf %320, %259 : vector<8x128xf32>
    %330 = arith.mulf %314, %322 : vector<8x128xf32>
    %331 = arith.addf %329, %330 : vector<8x128xf32>
    %332 = math.tanh %331 : vector<8x128xf32>
    %333 = arith.mulf %328, %332 : vector<8x128xf32>
    %c7_i32_90 = arith.constant 7 : i32
    %334 = arith.subi %c7_i32_90, %c4_i32 : i32
    %335 = arith.index_cast %334 : i32 to index
    %c0_91 = arith.constant 0 : index
    %c0_92 = arith.constant 0 : index
    %336 = vector.load %arg9[%335, %c0_91, %c0_92] : memref<8x8x512xf32, #tpu.memory_space<vmem>>, vector<1x8x512xf32>
    %337 = vector.shape_cast %336 : vector<1x8x512xf32> to vector<8x512xf32>
    %338 = vector.extract_strided_slice %303 {offsets = [0, 512], sizes = [8, 512], strides = [1, 1]} : vector<8x1024xf32> to vector<8x512xf32>
    %339 = arith.addf %337, %338 : vector<8x512xf32>
    %340 = vector.extract_strided_slice %339 {offsets = [0, 0], sizes = [8, 128], strides = [1, 1]} : vector<8x512xf32> to vector<8x128xf32>
    %341 = arith.negf %340 : vector<8x128xf32>
    %342 = math.exp %341 : vector<8x128xf32>
    %cst_93 = arith.constant 1.000000e+00 : f32
    %343 = vector.broadcast %cst_93 : f32 to vector<8x128xf32>
    %344 = arith.addf %343, %342 : vector<8x128xf32>
    %345 = arith.divf %343, %344 : vector<8x128xf32>
    %346 = vector.extract_strided_slice %339 {offsets = [0, 128], sizes = [8, 128], strides = [1, 1]} : vector<8x512xf32> to vector<8x128xf32>
    %347 = arith.negf %346 : vector<8x128xf32>
    %348 = math.exp %347 : vector<8x128xf32>
    %cst_94 = arith.constant 1.000000e+00 : f32
    %349 = vector.broadcast %cst_94 : f32 to vector<8x128xf32>
    %350 = arith.addf %349, %348 : vector<8x128xf32>
    %351 = arith.divf %349, %350 : vector<8x128xf32>
    %352 = vector.extract_strided_slice %339 {offsets = [0, 256], sizes = [8, 128], strides = [1, 1]} : vector<8x512xf32> to vector<8x128xf32>
    %353 = math.tanh %352 : vector<8x128xf32>
    %354 = vector.extract_strided_slice %339 {offsets = [0, 384], sizes = [8, 128], strides = [1, 1]} : vector<8x512xf32> to vector<8x128xf32>
    %355 = arith.negf %354 : vector<8x128xf32>
    %356 = math.exp %355 : vector<8x128xf32>
    %cst_95 = arith.constant 1.000000e+00 : f32
    %357 = vector.broadcast %cst_95 : f32 to vector<8x128xf32>
    %358 = arith.addf %357, %356 : vector<8x128xf32>
    %359 = arith.divf %357, %358 : vector<8x128xf32>
    %360 = arith.mulf %351, %290 : vector<8x128xf32>
    %361 = arith.mulf %345, %353 : vector<8x128xf32>
    %362 = arith.addf %360, %361 : vector<8x128xf32>
    %363 = math.tanh %362 : vector<8x128xf32>
    %364 = arith.mulf %359, %363 : vector<8x128xf32>
    %365 = arith.index_cast %c4_i32 : i32 to index
    %c0_96 = arith.constant 0 : index
    %c0_97 = arith.constant 0 : index
    %366 = vector.load %arg10[%365, %c0_96, %c0_97] : memref<8x8x128xf32, #tpu.memory_space<vmem>>, vector<1x8x128xf32>
    %367 = vector.shape_cast %366 : vector<1x8x128xf32> to vector<8x128xf32>
    %368 = vector.shape_cast %333 : vector<8x128xf32> to vector<1x8x128xf32>
    tpu.vector_store %arg10[%365, %c0_96, %c0_97], %368 {strides = array<i32>} : memref<8x8x128xf32, #tpu.memory_space<vmem>>, vector<1x8x128xf32>,
    %c7_i32_98 = arith.constant 7 : i32
    %369 = arith.subi %c7_i32_98, %c4_i32 : i32
    %370 = arith.index_cast %369 : i32 to index
    %c0_99 = arith.constant 0 : index
    %c0_100 = arith.constant 0 : index
    %371 = vector.load %arg11[%370, %c0_99, %c0_100] : memref<8x8x128xf32, #tpu.memory_space<vmem>>, vector<1x8x128xf32>
    %372 = vector.shape_cast %371 : vector<1x8x128xf32> to vector<8x128xf32>
    %373 = vector.shape_cast %364 : vector<8x128xf32> to vector<1x8x128xf32>
    tpu.vector_store %arg11[%370, %c0_99, %c0_100], %373 {strides = array<i32>} : memref<8x8x128xf32, #tpu.memory_space<vmem>>, vector<1x8x128xf32>,
    %374 = tpu.concatenate %333, %364 in 1 : vector<8x128xf32>, vector<8x128xf32> -> vector<8x256xf32>
    %c5_i32 = arith.constant 5 : i32
    %cst_101 = arith.constant dense<0.000000e+00> : vector<8x1024xf32>
    %375 = tpu.matmul %374, %11, %cst_101 {dimension_numbers = #tpu.dot_dimension_numbers<[1], [0], [0], [1], [0, 0, 1, 1], [], []>} : vector<8x256xf32>, vector<256x1024xf32>, vector<8x1024xf32> -> vector<8x1024xf32>
    %376 = arith.index_cast %c5_i32 : i32 to index
    %c0_102 = arith.constant 0 : index
    %c0_103 = arith.constant 0 : index
    %377 = vector.load %arg8[%376, %c0_102, %c0_103] : memref<8x8x512xf32, #tpu.memory_space<vmem>>, vector<1x8x512xf32>
    %378 = vector.shape_cast %377 : vector<1x8x512xf32> to vector<8x512xf32>
    %379 = vector.extract_strided_slice %375 {offsets = [0, 0], sizes = [8, 512], strides = [1, 1]} : vector<8x1024xf32> to vector<8x512xf32>
    %380 = arith.addf %378, %379 : vector<8x512xf32>
    %381 = vector.extract_strided_slice %380 {offsets = [0, 0], sizes = [8, 128], strides = [1, 1]} : vector<8x512xf32> to vector<8x128xf32>
    %382 = arith.negf %381 : vector<8x128xf32>
    %383 = math.exp %382 : vector<8x128xf32>
    %cst_104 = arith.constant 1.000000e+00 : f32
    %384 = vector.broadcast %cst_104 : f32 to vector<8x128xf32>
    %385 = arith.addf %384, %383 : vector<8x128xf32>
    %386 = arith.divf %384, %385 : vector<8x128xf32>
    %387 = vector.extract_strided_slice %380 {offsets = [0, 128], sizes = [8, 128], strides = [1, 1]} : vector<8x512xf32> to vector<8x128xf32>
    %388 = arith.negf %387 : vector<8x128xf32>
    %389 = math.exp %388 : vector<8x128xf32>
    %cst_105 = arith.constant 1.000000e+00 : f32
    %390 = vector.broadcast %cst_105 : f32 to vector<8x128xf32>
    %391 = arith.addf %390, %389 : vector<8x128xf32>
    %392 = arith.divf %390, %391 : vector<8x128xf32>
    %393 = vector.extract_strided_slice %380 {offsets = [0, 256], sizes = [8, 128], strides = [1, 1]} : vector<8x512xf32> to vector<8x128xf32>
    %394 = math.tanh %393 : vector<8x128xf32>
    %395 = vector.extract_strided_slice %380 {offsets = [0, 384], sizes = [8, 128], strides = [1, 1]} : vector<8x512xf32> to vector<8x128xf32>
    %396 = arith.negf %395 : vector<8x128xf32>
    %397 = math.exp %396 : vector<8x128xf32>
    %cst_106 = arith.constant 1.000000e+00 : f32
    %398 = vector.broadcast %cst_106 : f32 to vector<8x128xf32>
    %399 = arith.addf %398, %397 : vector<8x128xf32>
    %400 = arith.divf %398, %399 : vector<8x128xf32>
    %401 = arith.mulf %392, %331 : vector<8x128xf32>
    %402 = arith.mulf %386, %394 : vector<8x128xf32>
    %403 = arith.addf %401, %402 : vector<8x128xf32>
    %404 = math.tanh %403 : vector<8x128xf32>
    %405 = arith.mulf %400, %404 : vector<8x128xf32>
    %c7_i32_107 = arith.constant 7 : i32
    %406 = arith.subi %c7_i32_107, %c5_i32 : i32
    %407 = arith.index_cast %406 : i32 to index
    %c0_108 = arith.constant 0 : index
    %c0_109 = arith.constant 0 : index
    %408 = vector.load %arg9[%407, %c0_108, %c0_109] : memref<8x8x512xf32, #tpu.memory_space<vmem>>, vector<1x8x512xf32>
    %409 = vector.shape_cast %408 : vector<1x8x512xf32> to vector<8x512xf32>
    %410 = vector.extract_strided_slice %375 {offsets = [0, 512], sizes = [8, 512], strides = [1, 1]} : vector<8x1024xf32> to vector<8x512xf32>
    %411 = arith.addf %409, %410 : vector<8x512xf32>
    %412 = vector.extract_strided_slice %411 {offsets = [0, 0], sizes = [8, 128], strides = [1, 1]} : vector<8x512xf32> to vector<8x128xf32>
    %413 = arith.negf %412 : vector<8x128xf32>
    %414 = math.exp %413 : vector<8x128xf32>
    %cst_110 = arith.constant 1.000000e+00 : f32
    %415 = vector.broadcast %cst_110 : f32 to vector<8x128xf32>
    %416 = arith.addf %415, %414 : vector<8x128xf32>
    %417 = arith.divf %415, %416 : vector<8x128xf32>
    %418 = vector.extract_strided_slice %411 {offsets = [0, 128], sizes = [8, 128], strides = [1, 1]} : vector<8x512xf32> to vector<8x128xf32>
    %419 = arith.negf %418 : vector<8x128xf32>
    %420 = math.exp %419 : vector<8x128xf32>
    %cst_111 = arith.constant 1.000000e+00 : f32
    %421 = vector.broadcast %cst_111 : f32 to vector<8x128xf32>
    %422 = arith.addf %421, %420 : vector<8x128xf32>
    %423 = arith.divf %421, %422 : vector<8x128xf32>
    %424 = vector.extract_strided_slice %411 {offsets = [0, 256], sizes = [8, 128], strides = [1, 1]} : vector<8x512xf32> to vector<8x128xf32>
    %425 = math.tanh %424 : vector<8x128xf32>
    %426 = vector.extract_strided_slice %411 {offsets = [0, 384], sizes = [8, 128], strides = [1, 1]} : vector<8x512xf32> to vector<8x128xf32>
    %427 = arith.negf %426 : vector<8x128xf32>
    %428 = math.exp %427 : vector<8x128xf32>
    %cst_112 = arith.constant 1.000000e+00 : f32
    %429 = vector.broadcast %cst_112 : f32 to vector<8x128xf32>
    %430 = arith.addf %429, %428 : vector<8x128xf32>
    %431 = arith.divf %429, %430 : vector<8x128xf32>
    %432 = arith.mulf %423, %362 : vector<8x128xf32>
    %433 = arith.mulf %417, %425 : vector<8x128xf32>
    %434 = arith.addf %432, %433 : vector<8x128xf32>
    %435 = math.tanh %434 : vector<8x128xf32>
    %436 = arith.mulf %431, %435 : vector<8x128xf32>
    %437 = arith.index_cast %c5_i32 : i32 to index
    %c0_113 = arith.constant 0 : index
    %c0_114 = arith.constant 0 : index
    %438 = vector.load %arg10[%437, %c0_113, %c0_114] : memref<8x8x128xf32, #tpu.memory_space<vmem>>, vector<1x8x128xf32>
    %439 = vector.shape_cast %438 : vector<1x8x128xf32> to vector<8x128xf32>
    %440 = vector.shape_cast %405 : vector<8x128xf32> to vector<1x8x128xf32>
    tpu.vector_store %arg10[%437, %c0_113, %c0_114], %440 {strides = array<i32>} : memref<8x8x128xf32, #tpu.memory_space<vmem>>, vector<1x8x128xf32>,
    %c7_i32_115 = arith.constant 7 : i32
    %441 = arith.subi %c7_i32_115, %c5_i32 : i32
    %442 = arith.index_cast %441 : i32 to index
    %c0_116 = arith.constant 0 : index
    %c0_117 = arith.constant 0 : index
    %443 = vector.load %arg11[%442, %c0_116, %c0_117] : memref<8x8x128xf32, #tpu.memory_space<vmem>>, vector<1x8x128xf32>
    %444 = vector.shape_cast %443 : vector<1x8x128xf32> to vector<8x128xf32>
    %445 = vector.shape_cast %436 : vector<8x128xf32> to vector<1x8x128xf32>
    tpu.vector_store %arg11[%442, %c0_116, %c0_117], %445 {strides = array<i32>} : memref<8x8x128xf32, #tpu.memory_space<vmem>>, vector<1x8x128xf32>,
    %446 = tpu.concatenate %405, %436 in 1 : vector<8x128xf32>, vector<8x128xf32> -> vector<8x256xf32>
    %c6_i32 = arith.constant 6 : i32
    %cst_118 = arith.constant dense<0.000000e+00> : vector<8x1024xf32>
    %447 = tpu.matmul %446, %11, %cst_118 {dimension_numbers = #tpu.dot_dimension_numbers<[1], [0], [0], [1], [0, 0, 1, 1], [], []>} : vector<8x256xf32>, vector<256x1024xf32>, vector<8x1024xf32> -> vector<8x1024xf32>
    %448 = arith.index_cast %c6_i32 : i32 to index
    %c0_119 = arith.constant 0 : index
    %c0_120 = arith.constant 0 : index
    %449 = vector.load %arg8[%448, %c0_119, %c0_120] : memref<8x8x512xf32, #tpu.memory_space<vmem>>, vector<1x8x512xf32>
    %450 = vector.shape_cast %449 : vector<1x8x512xf32> to vector<8x512xf32>
    %451 = vector.extract_strided_slice %447 {offsets = [0, 0], sizes = [8, 512], strides = [1, 1]} : vector<8x1024xf32> to vector<8x512xf32>
    %452 = arith.addf %450, %451 : vector<8x512xf32>
    %453 = vector.extract_strided_slice %452 {offsets = [0, 0], sizes = [8, 128], strides = [1, 1]} : vector<8x512xf32> to vector<8x128xf32>
    %454 = arith.negf %453 : vector<8x128xf32>
    %455 = math.exp %454 : vector<8x128xf32>
    %cst_121 = arith.constant 1.000000e+00 : f32
    %456 = vector.broadcast %cst_121 : f32 to vector<8x128xf32>
    %457 = arith.addf %456, %455 : vector<8x128xf32>
    %458 = arith.divf %456, %457 : vector<8x128xf32>
    %459 = vector.extract_strided_slice %452 {offsets = [0, 128], sizes = [8, 128], strides = [1, 1]} : vector<8x512xf32> to vector<8x128xf32>
    %460 = arith.negf %459 : vector<8x128xf32>
    %461 = math.exp %460 : vector<8x128xf32>
    %cst_122 = arith.constant 1.000000e+00 : f32
    %462 = vector.broadcast %cst_122 : f32 to vector<8x128xf32>
    %463 = arith.addf %462, %461 : vector<8x128xf32>
    %464 = arith.divf %462, %463 : vector<8x128xf32>
    %465 = vector.extract_strided_slice %452 {offsets = [0, 256], sizes = [8, 128], strides = [1, 1]} : vector<8x512xf32> to vector<8x128xf32>
    %466 = math.tanh %465 : vector<8x128xf32>
    %467 = vector.extract_strided_slice %452 {offsets = [0, 384], sizes = [8, 128], strides = [1, 1]} : vector<8x512xf32> to vector<8x128xf32>
    %468 = arith.negf %467 : vector<8x128xf32>
    %469 = math.exp %468 : vector<8x128xf32>
    %cst_123 = arith.constant 1.000000e+00 : f32
    %470 = vector.broadcast %cst_123 : f32 to vector<8x128xf32>
    %471 = arith.addf %470, %469 : vector<8x128xf32>
    %472 = arith.divf %470, %471 : vector<8x128xf32>
    %473 = arith.mulf %464, %403 : vector<8x128xf32>
    %474 = arith.mulf %458, %466 : vector<8x128xf32>
    %475 = arith.addf %473, %474 : vector<8x128xf32>
    %476 = math.tanh %475 : vector<8x128xf32>
    %477 = arith.mulf %472, %476 : vector<8x128xf32>
    %c7_i32_124 = arith.constant 7 : i32
    %478 = arith.subi %c7_i32_124, %c6_i32 : i32
    %479 = arith.index_cast %478 : i32 to index
    %c0_125 = arith.constant 0 : index
    %c0_126 = arith.constant 0 : index
    %480 = vector.load %arg9[%479, %c0_125, %c0_126] : memref<8x8x512xf32, #tpu.memory_space<vmem>>, vector<1x8x512xf32>
    %481 = vector.shape_cast %480 : vector<1x8x512xf32> to vector<8x512xf32>
    %482 = vector.extract_strided_slice %447 {offsets = [0, 512], sizes = [8, 512], strides = [1, 1]} : vector<8x1024xf32> to vector<8x512xf32>
    %483 = arith.addf %481, %482 : vector<8x512xf32>
    %484 = vector.extract_strided_slice %483 {offsets = [0, 0], sizes = [8, 128], strides = [1, 1]} : vector<8x512xf32> to vector<8x128xf32>
    %485 = arith.negf %484 : vector<8x128xf32>
    %486 = math.exp %485 : vector<8x128xf32>
    %cst_127 = arith.constant 1.000000e+00 : f32
    %487 = vector.broadcast %cst_127 : f32 to vector<8x128xf32>
    %488 = arith.addf %487, %486 : vector<8x128xf32>
    %489 = arith.divf %487, %488 : vector<8x128xf32>
    %490 = vector.extract_strided_slice %483 {offsets = [0, 128], sizes = [8, 128], strides = [1, 1]} : vector<8x512xf32> to vector<8x128xf32>
    %491 = arith.negf %490 : vector<8x128xf32>
    %492 = math.exp %491 : vector<8x128xf32>
    %cst_128 = arith.constant 1.000000e+00 : f32
    %493 = vector.broadcast %cst_128 : f32 to vector<8x128xf32>
    %494 = arith.addf %493, %492 : vector<8x128xf32>
    %495 = arith.divf %493, %494 : vector<8x128xf32>
    %496 = vector.extract_strided_slice %483 {offsets = [0, 256], sizes = [8, 128], strides = [1, 1]} : vector<8x512xf32> to vector<8x128xf32>
    %497 = math.tanh %496 : vector<8x128xf32>
    %498 = vector.extract_strided_slice %483 {offsets = [0, 384], sizes = [8, 128], strides = [1, 1]} : vector<8x512xf32> to vector<8x128xf32>
    %499 = arith.negf %498 : vector<8x128xf32>
    %500 = math.exp %499 : vector<8x128xf32>
    %cst_129 = arith.constant 1.000000e+00 : f32
    %501 = vector.broadcast %cst_129 : f32 to vector<8x128xf32>
    %502 = arith.addf %501, %500 : vector<8x128xf32>
    %503 = arith.divf %501, %502 : vector<8x128xf32>
    %504 = arith.mulf %495, %434 : vector<8x128xf32>
    %505 = arith.mulf %489, %497 : vector<8x128xf32>
    %506 = arith.addf %504, %505 : vector<8x128xf32>
    %507 = math.tanh %506 : vector<8x128xf32>
    %508 = arith.mulf %503, %507 : vector<8x128xf32>
    %509 = arith.index_cast %c6_i32 : i32 to index
    %c0_130 = arith.constant 0 : index
    %c0_131 = arith.constant 0 : index
    %510 = vector.load %arg10[%509, %c0_130, %c0_131] : memref<8x8x128xf32, #tpu.memory_space<vmem>>, vector<1x8x128xf32>
    %511 = vector.shape_cast %510 : vector<1x8x128xf32> to vector<8x128xf32>
    %512 = vector.shape_cast %477 : vector<8x128xf32> to vector<1x8x128xf32>
    tpu.vector_store %arg10[%509, %c0_130, %c0_131], %512 {strides = array<i32>} : memref<8x8x128xf32, #tpu.memory_space<vmem>>, vector<1x8x128xf32>,
    %c7_i32_132 = arith.constant 7 : i32
    %513 = arith.subi %c7_i32_132, %c6_i32 : i32
    %514 = arith.index_cast %513 : i32 to index
    %c0_133 = arith.constant 0 : index
    %c0_134 = arith.constant 0 : index
    %515 = vector.load %arg11[%514, %c0_133, %c0_134] : memref<8x8x128xf32, #tpu.memory_space<vmem>>, vector<1x8x128xf32>
    %516 = vector.shape_cast %515 : vector<1x8x128xf32> to vector<8x128xf32>
    %517 = vector.shape_cast %508 : vector<8x128xf32> to vector<1x8x128xf32>
    tpu.vector_store %arg11[%514, %c0_133, %c0_134], %517 {strides = array<i32>} : memref<8x8x128xf32, #tpu.memory_space<vmem>>, vector<1x8x128xf32>,
    %518 = tpu.concatenate %477, %508 in 1 : vector<8x128xf32>, vector<8x128xf32> -> vector<8x256xf32>
    %c7_i32_135 = arith.constant 7 : i32
    %cst_136 = arith.constant dense<0.000000e+00> : vector<8x1024xf32>
    %519 = tpu.matmul %518, %11, %cst_136 {dimension_numbers = #tpu.dot_dimension_numbers<[1], [0], [0], [1], [0, 0, 1, 1], [], []>} : vector<8x256xf32>, vector<256x1024xf32>, vector<8x1024xf32> -> vector<8x1024xf32>
    %520 = arith.index_cast %c7_i32_135 : i32 to index
    %c0_137 = arith.constant 0 : index
    %c0_138 = arith.constant 0 : index
    %521 = vector.load %arg8[%520, %c0_137, %c0_138] : memref<8x8x512xf32, #tpu.memory_space<vmem>>, vector<1x8x512xf32>
    %522 = vector.shape_cast %521 : vector<1x8x512xf32> to vector<8x512xf32>
    %523 = vector.extract_strided_slice %519 {offsets = [0, 0], sizes = [8, 512], strides = [1, 1]} : vector<8x1024xf32> to vector<8x512xf32>
    %524 = arith.addf %522, %523 : vector<8x512xf32>
    %525 = vector.extract_strided_slice %524 {offsets = [0, 0], sizes = [8, 128], strides = [1, 1]} : vector<8x512xf32> to vector<8x128xf32>
    %526 = arith.negf %525 : vector<8x128xf32>
    %527 = math.exp %526 : vector<8x128xf32>
    %cst_139 = arith.constant 1.000000e+00 : f32
    %528 = vector.broadcast %cst_139 : f32 to vector<8x128xf32>
    %529 = arith.addf %528, %527 : vector<8x128xf32>
    %530 = arith.divf %528, %529 : vector<8x128xf32>
    %531 = vector.extract_strided_slice %524 {offsets = [0, 128], sizes = [8, 128], strides = [1, 1]} : vector<8x512xf32> to vector<8x128xf32>
    %532 = arith.negf %531 : vector<8x128xf32>
    %533 = math.exp %532 : vector<8x128xf32>
    %cst_140 = arith.constant 1.000000e+00 : f32
    %534 = vector.broadcast %cst_140 : f32 to vector<8x128xf32>
    %535 = arith.addf %534, %533 : vector<8x128xf32>
    %536 = arith.divf %534, %535 : vector<8x128xf32>
    %537 = vector.extract_strided_slice %524 {offsets = [0, 256], sizes = [8, 128], strides = [1, 1]} : vector<8x512xf32> to vector<8x128xf32>
    %538 = math.tanh %537 : vector<8x128xf32>
    %539 = vector.extract_strided_slice %524 {offsets = [0, 384], sizes = [8, 128], strides = [1, 1]} : vector<8x512xf32> to vector<8x128xf32>
    %540 = arith.negf %539 : vector<8x128xf32>
    %541 = math.exp %540 : vector<8x128xf32>
    %cst_141 = arith.constant 1.000000e+00 : f32
    %542 = vector.broadcast %cst_141 : f32 to vector<8x128xf32>
    %543 = arith.addf %542, %541 : vector<8x128xf32>
    %544 = arith.divf %542, %543 : vector<8x128xf32>
    %545 = arith.mulf %536, %475 : vector<8x128xf32>
    %546 = arith.mulf %530, %538 : vector<8x128xf32>
    %547 = arith.addf %545, %546 : vector<8x128xf32>
    %548 = math.tanh %547 : vector<8x128xf32>
    %549 = arith.mulf %544, %548 : vector<8x128xf32>
    %c7_i32_142 = arith.constant 7 : i32
    %550 = arith.subi %c7_i32_142, %c7_i32_135 : i32
    %551 = arith.index_cast %550 : i32 to index
    %c0_143 = arith.constant 0 : index
    %c0_144 = arith.constant 0 : index
    %552 = vector.load %arg9[%551, %c0_143, %c0_144] : memref<8x8x512xf32, #tpu.memory_space<vmem>>, vector<1x8x512xf32>
    %553 = vector.shape_cast %552 : vector<1x8x512xf32> to vector<8x512xf32>
    %554 = vector.extract_strided_slice %519 {offsets = [0, 512], sizes = [8, 512], strides = [1, 1]} : vector<8x1024xf32> to vector<8x512xf32>
    %555 = arith.addf %553, %554 : vector<8x512xf32>
    %556 = vector.extract_strided_slice %555 {offsets = [0, 0], sizes = [8, 128], strides = [1, 1]} : vector<8x512xf32> to vector<8x128xf32>
    %557 = arith.negf %556 : vector<8x128xf32>
    %558 = math.exp %557 : vector<8x128xf32>
    %cst_145 = arith.constant 1.000000e+00 : f32
    %559 = vector.broadcast %cst_145 : f32 to vector<8x128xf32>
    %560 = arith.addf %559, %558 : vector<8x128xf32>
    %561 = arith.divf %559, %560 : vector<8x128xf32>
    %562 = vector.extract_strided_slice %555 {offsets = [0, 128], sizes = [8, 128], strides = [1, 1]} : vector<8x512xf32> to vector<8x128xf32>
    %563 = arith.negf %562 : vector<8x128xf32>
    %564 = math.exp %563 : vector<8x128xf32>
    %cst_146 = arith.constant 1.000000e+00 : f32
    %565 = vector.broadcast %cst_146 : f32 to vector<8x128xf32>
    %566 = arith.addf %565, %564 : vector<8x128xf32>
    %567 = arith.divf %565, %566 : vector<8x128xf32>
    %568 = vector.extract_strided_slice %555 {offsets = [0, 256], sizes = [8, 128], strides = [1, 1]} : vector<8x512xf32> to vector<8x128xf32>
    %569 = math.tanh %568 : vector<8x128xf32>
    %570 = vector.extract_strided_slice %555 {offsets = [0, 384], sizes = [8, 128], strides = [1, 1]} : vector<8x512xf32> to vector<8x128xf32>
    %571 = arith.negf %570 : vector<8x128xf32>
    %572 = math.exp %571 : vector<8x128xf32>
    %cst_147 = arith.constant 1.000000e+00 : f32
    %573 = vector.broadcast %cst_147 : f32 to vector<8x128xf32>
    %574 = arith.addf %573, %572 : vector<8x128xf32>
    %575 = arith.divf %573, %574 : vector<8x128xf32>
    %576 = arith.mulf %567, %506 : vector<8x128xf32>
    %577 = arith.mulf %561, %569 : vector<8x128xf32>
    %578 = arith.addf %576, %577 : vector<8x128xf32>
    %579 = math.tanh %578 : vector<8x128xf32>
    %580 = arith.mulf %575, %579 : vector<8x128xf32>
    %581 = arith.index_cast %c7_i32_135 : i32 to index
    %c0_148 = arith.constant 0 : index
    %c0_149 = arith.constant 0 : index
    %582 = vector.load %arg10[%581, %c0_148, %c0_149] : memref<8x8x128xf32, #tpu.memory_space<vmem>>, vector<1x8x128xf32>
    %583 = vector.shape_cast %582 : vector<1x8x128xf32> to vector<8x128xf32>
    %584 = vector.shape_cast %549 : vector<8x128xf32> to vector<1x8x128xf32>
    tpu.vector_store %arg10[%581, %c0_148, %c0_149], %584 {strides = array<i32>} : memref<8x8x128xf32, #tpu.memory_space<vmem>>, vector<1x8x128xf32>,
    %c7_i32_150 = arith.constant 7 : i32
    %585 = arith.subi %c7_i32_150, %c7_i32_135 : i32
    %586 = arith.index_cast %585 : i32 to index
    %c0_151 = arith.constant 0 : index
    %c0_152 = arith.constant 0 : index
    %587 = vector.load %arg11[%586, %c0_151, %c0_152] : memref<8x8x128xf32, #tpu.memory_space<vmem>>, vector<1x8x128xf32>
    %588 = vector.shape_cast %587 : vector<1x8x128xf32> to vector<8x128xf32>
    %589 = vector.shape_cast %580 : vector<8x128xf32> to vector<1x8x128xf32>
    tpu.vector_store %arg11[%586, %c0_151, %c0_152], %589 {strides = array<i32>} : memref<8x8x128xf32, #tpu.memory_space<vmem>>, vector<1x8x128xf32>,
    %590 = tpu.concatenate %549, %580 in 1 : vector<8x128xf32>, vector<8x128xf32> -> vector<8x256xf32>
    %c8_i32 = arith.constant 8 : i32
    %c0_153 = arith.constant 0 : index
    %c0_154 = arith.constant 0 : index
    %591 = vector.load %arg4[%c0_153, %c0_154] : memref<128x128xf32, #tpu.memory_space<vmem>>, vector<128x128xf32>
    %c0_155 = arith.constant 0 : index
    %c0_156 = arith.constant 0 : index
    %592 = vector.load %arg5[%c0_155, %c0_156] : memref<128x128xf32, #tpu.memory_space<vmem>>, vector<128x128xf32>
    %c0_157 = arith.constant 0 : index
    %c0_158 = arith.constant 0 : index
    %c0_159 = arith.constant 0 : index
    %593 = vector.load %arg10[%c0_157, %c0_158, %c0_159] : memref<8x8x128xf32, #tpu.memory_space<vmem>>, vector<8x8x128xf32>
    %cst_160 = arith.constant dense<0.000000e+00> : vector<8x8x128xf32>
    %594 = tpu.matmul %593, %591, %cst_160 {dimension_numbers = #tpu.dot_dimension_numbers<[2], [0], [0, 1], [1], [0, 0, 0, 1, 1, 1], [], []>} : vector<8x8x128xf32>, vector<128x128xf32>, vector<8x8x128xf32> -> vector<8x8x128xf32>
    %c0_161 = arith.constant 0 : index
    %c0_162 = arith.constant 0 : index
    %c0_163 = arith.constant 0 : index
    %595 = vector.load %arg11[%c0_161, %c0_162, %c0_163] : memref<8x8x128xf32, #tpu.memory_space<vmem>>, vector<8x8x128xf32>
    %cst_164 = arith.constant dense<0.000000e+00> : vector<8x8x128xf32>
    %596 = tpu.matmul %595, %592, %cst_164 {dimension_numbers = #tpu.dot_dimension_numbers<[2], [0], [0, 1], [1], [0, 0, 0, 1, 1, 1], [], []>} : vector<8x8x128xf32>, vector<128x128xf32>, vector<8x8x128xf32> -> vector<8x8x128xf32>
    %597 = arith.addf %594, %596 : vector<8x8x128xf32>
    %c0_165 = arith.constant 0 : index
    %c0_166 = arith.constant 0 : index
    %598 = vector.load %arg6[%c0_165, %c0_166] : memref<1x128xf32, #tpu.memory_space<vmem>>, vector<1x128xf32>
    %599 = vector.shape_cast %598 : vector<1x128xf32> to vector<1x1x128xf32>
    %600 = vector.broadcast %599 : vector<1x1x128xf32> to vector<8x8x128xf32>
    %601 = arith.addf %597, %600 : vector<8x8x128xf32>
    %c0_167 = arith.constant 0 : index
    %c0_168 = arith.constant 0 : index
    %c0_169 = arith.constant 0 : index
    %602 = vector.load %arg7[%c0_167, %c0_168, %c0_169] : memref<8x8x128xf32, #tpu.memory_space<vmem>>, vector<8x8x128xf32>
    tpu.vector_store %arg7[%c0_167, %c0_168, %c0_169], %601 {strides = array<i32>} : memref<8x8x128xf32, #tpu.memory_space<vmem>>, vector<8x8x128xf32>,
    return
  }
}

</mosaic_0001>

<llo_original>
// kernel: tpu_custom_call.1
$region0: #{tpu_custom_call.1}
  #allocation0 [shape = 'u32[]', space=smem, size = 0x4, offset = 0x4, fixed_abs, tag = 'smem constant byte address 0x4 - core index']
  #allocation1 [shape = 'u32[144,128]{1,0:T(1,128)}', space=vmem, size = 0x12000, scoped, tag = 'internal scratch']
  #allocation2 [shape = 'f32[8,8,512]{2,1,0:T(8,128)}', space=vmem, size = 0x20000, scoped, tag = 'scratch operand']
  #allocation3 [shape = 'f32[8,8,512]{2,1,0:T(8,128)}', space=vmem, size = 0x20000, scoped, tag = 'scratch operand']
  #allocation4 [shape = 'f32[8,8,128]{2,1,0:T(8,128)}', space=vmem, size = 0x8000, scoped, tag = 'scratch operand']
  #allocation5 [shape = 'f32[8,8,128]{2,1,0:T(8,128)}', space=vmem, size = 0x8000, scoped, tag = 'scratch operand']
  %s0 = inlined_call_operand.hbm [shape: f32[8,8,32], index: 0, kind: input, shape index: {}]
  %s1 = inlined_call_operand.hbm [shape: f32[32,1024], index: 1, kind: input, shape index: {}]
  %s2 = inlined_call_operand.hbm [shape: f32[1,1024], index: 2, kind: input, shape index: {}]
  %s3 = inlined_call_operand.hbm [shape: f32[256,1024], index: 3, kind: input, shape index: {}]
  %s4 = inlined_call_operand.hbm [shape: f32[128,128], index: 4, kind: input, shape index: {}]
  %s5 = inlined_call_operand.hbm [shape: f32[128,128], index: 5, kind: input, shape index: {}]
  %s6 = inlined_call_operand.vmem [shape: f32[1,128], index: 6, kind: input, shape index: {}]
  %s7 = inlined_call_operand.hbm [shape: f32[8,8,128], index: 7, kind: output, shape index: {}]
  %s8 = sld [smem:[#allocation0]]
  $region62: #{tpu_custom_call.1} parent=0
    _
  %s10 = ssub.s32 1, %s8
  %s11 = scalar_select 0, %s10, %s8
  $region1: #{tpu_custom_call.1} parent=0
    #allocation6 [shape = 'u8[32768]{0}', space=vmem, size = 0x8000, scoped, tag = 'input window, operand 0, single buffered']
    #allocation7 [shape = 's32[1]{0}', space=sflag, size = 0x4, scoped, tag = 'scoped memory for tpu_custom_call.1']
    #allocation8 [shape = 's32[1]{0}', space=sflag, size = 0x4, scoped, tag = 'scoped memory for tpu_custom_call.1']
    #allocation9 [shape = 'u8[131072]{0}', space=vmem, size = 0x20000, scoped, tag = 'input window, operand 1, single buffered']
    #allocation10 [shape = 's32[1]{0}', space=sflag, size = 0x4, scoped, tag = 'scoped memory for tpu_custom_call.1']
    #allocation11 [shape = 'u8[4096]{0}', space=vmem, size = 0x1000, scoped, tag = 'input window, operand 2, single buffered']
    #allocation12 [shape = 'u8[1048576]{0}', space=vmem, size = 0x100000, scoped, tag = 'input window, operand 3, single buffered']
    #allocation13 [shape = 's32[1]{0}', space=sflag, size = 0x4, scoped, tag = 'scoped memory for tpu_custom_call.1']
    #allocation14 [shape = 'u8[65536]{0}', space=vmem, size = 0x10000, scoped, tag = 'input window, operand 4, single buffered']
    #allocation15 [shape = 'u8[65536]{0}', space=vmem, size = 0x10000, scoped, tag = 'input window, operand 5, single buffered']
    #allocation16 [shape = 's32[1]{0}', space=sflag, size = 0x4, scoped, tag = 'scoped memory for tpu_custom_call.1']
    #allocation17 [shape = 'u8[32768]{0}', space=vmem, size = 0x8000, scoped, tag = 'output window, operand 0, single buffered']
    %12 = vsyncpa [#allocation7], 0
    %13 = vsyncpa [#allocation10], 0
    %14 = vsyncpa [#allocation13], 0
    %15 = vsyncpa [#allocation16], 0
    %16 = vsyncpa [#allocation8], 0
    // Predicated region
    $region2: #{tpu_custom_call.1} parent=1 // pred_check
      _
    $region3: #{tpu_custom_call.1} parent=1 // pred_check_branch
      %18 = sbr.rel (0) target = $region5
    $region4: #{tpu_custom_call.1} parent=1 // pred_region
      %s20 = ssub.s32 1024, 1024
      %21 = vsyncadd [#allocation7], %s20
      %s22 = sshll.u32 [#allocation6], 4
      %s23 = int_to_ptr.vmem [resolvable:$true] %s22
      %28 = dma.hbm_to_vmem [thread:$0]  %s0, 1024, %s23, [#allocation7], 128, 128, 8
    $region5: #{tpu_custom_call.1} parent=1 // pred_fallthru
      _
    // Predicated region
    $region6: #{tpu_custom_call.1} parent=1 // pred_check
      _
    $region7: #{tpu_custom_call.1} parent=1 // pred_check_branch
      %30 = sbr.rel (0) target = $region9
    $region8: #{tpu_custom_call.1} parent=1 // pred_region
      %s32 = ssub.s32 4096, 4096
      %33 = vsyncadd [#allocation10], %s32
      %s34 = sshll.u32 [#allocation9], 4
      %s35 = int_to_ptr.vmem [resolvable:$true] %s34
      %40 = dma.hbm_to_vmem [thread:$0]  %s1, 4096, %s35, [#allocation10], 1024, 1024, 64
    $region9: #{tpu_custom_call.1} parent=1 // pred_fallthru
      _
    // Predicated region
    $region10: #{tpu_custom_call.1} parent=1 // pred_check
      _
    $region11: #{tpu_custom_call.1} parent=1 // pred_check_branch
      %42 = sbr.rel (0) target = $region13
    $region12: #{tpu_custom_call.1} parent=1 // pred_region
      %s44 = ssub.s32 128, 128
      %45 = vsyncadd [#allocation10], %s44
      %s47 = sshll.u32 [#allocation11], 4
      %s48 = int_to_ptr.vmem [resolvable:$true] %s47
      %50 = dma.hbm_to_vmem [thread:$0]  %s2, 128, %s48, [#allocation10]
    $region13: #{tpu_custom_call.1} parent=1 // pred_fallthru
      _
    // Predicated region
    $region14: #{tpu_custom_call.1} parent=1 // pred_check
      _
    $region15: #{tpu_custom_call.1} parent=1 // pred_check_branch
      %52 = sbr.rel (0) target = $region17
    $region16: #{tpu_custom_call.1} parent=1 // pred_region
      %s54 = ssub.s32 32768, 32768
      %55 = vsyncadd [#allocation13], %s54
      %s56 = sshll.u32 [#allocation12], 4
      %s57 = int_to_ptr.vmem [resolvable:$true] %s56
      %62 = dma.hbm_to_vmem [thread:$0]  %s3, 32768, %s57, [#allocation13], 1024, 1024, 64
    $region17: #{tpu_custom_call.1} parent=1 // pred_fallthru
      _
    // Predicated region
    $region18: #{tpu_custom_call.1} parent=1 // pred_check
      _
    $region19: #{tpu_custom_call.1} parent=1 // pred_check_branch
      %64 = sbr.rel (0) target = $region21
    $region20: #{tpu_custom_call.1} parent=1 // pred_region
      %s66 = ssub.s32 2048, 2048
      %67 = vsyncadd [#allocation13], %s66
      %s68 = sshll.u32 [#allocation14], 4
      %s69 = int_to_ptr.vmem [resolvable:$true] %s68
      %74 = dma.hbm_to_vmem [thread:$0]  %s4, 2048, %s69, [#allocation13], 128, 128, 8
    $region21: #{tpu_custom_call.1} parent=1 // pred_fallthru
      _
    // Predicated region
    $region22: #{tpu_custom_call.1} parent=1 // pred_check
      _
    $region23: #{tpu_custom_call.1} parent=1 // pred_check_branch
      %76 = sbr.rel (0) target = $region25
    $region24: #{tpu_custom_call.1} parent=1 // pred_region
      %s78 = ssub.s32 2048, 2048
      %79 = vsyncadd [#allocation16], %s78
      %s80 = sshll.u32 [#allocation15], 4
      %s81 = int_to_ptr.vmem [resolvable:$true] %s80
      %86 = dma.hbm_to_vmem [thread:$0]  %s5, 2048, %s81, [#allocation16], 128, 128, 8
    $region25: #{tpu_custom_call.1} parent=1 // pred_fallthru
      _
    // Predicated region
    $region26: #{tpu_custom_call.1} parent=1 // pred_check
      _
    $region27: #{tpu_custom_call.1} parent=1 // pred_check_branch
      %88 = sbr.rel (0) target = $region29
    $region28: #{tpu_custom_call.1} parent=1 // pred_region
      _
    $region29: #{tpu_custom_call.1} parent=1 // pred_fallthru
      _
    // Predicated region
    $region30: #{tpu_custom_call.1} parent=1 // pred_check
      _
    $region31: #{tpu_custom_call.1} parent=1 // pred_check_branch
      %90 = sbr.rel (0) target = $region33
    $region32: #{tpu_custom_call.1} parent=1 // pred_region
      %91 = dma.done [#allocation7], 1024
    $region33: #{tpu_custom_call.1} parent=1 // pred_fallthru
      _
    // Predicated region
    $region34: #{tpu_custom_call.1} parent=1 // pred_check
      _
    $region35: #{tpu_custom_call.1} parent=1 // pred_check_branch
      %93 = sbr.rel (0) target = $region37
    $region36: #{tpu_custom_call.1} parent=1 // pred_region
      %94 = dma.done [#allocation10], 4096
    $region37: #{tpu_custom_call.1} parent=1 // pred_fallthru
      _
    // Predicated region
    $region38: #{tpu_custom_call.1} parent=1 // pred_check
      _
    $region39: #{tpu_custom_call.1} parent=1 // pred_check_branch
      %96 = sbr.rel (0) target = $region41
    $region40: #{tpu_custom_call.1} parent=1 // pred_region
      %97 = dma.done [#allocation10], 128
    $region41: #{tpu_custom_call.1} parent=1 // pred_fallthru
      _
    // Predicated region
    $region42: #{tpu_custom_call.1} parent=1 // pred_check
      _
    $region43: #{tpu_custom_call.1} parent=1 // pred_check_branch
      %99 = sbr.rel (0) target = $region45
    $region44: #{tpu_custom_call.1} parent=1 // pred_region
      %100 = dma.done [#allocation13], 32768
    $region45: #{tpu_custom_call.1} parent=1 // pred_fallthru
      _
    // Predicated region
    $region46: #{tpu_custom_call.1} parent=1 // pred_check
      _
    $region47: #{tpu_custom_call.1} parent=1 // pred_check_branch
      %102 = sbr.rel (0) target = $region49
    $region48: #{tpu_custom_call.1} parent=1 // pred_region
      %103 = dma.done [#allocation13], 2048
    $region49: #{tpu_custom_call.1} parent=1 // pred_fallthru
      _
    // Predicated region
    $region50: #{tpu_custom_call.1} parent=1 // pred_check
      _
    $region51: #{tpu_custom_call.1} parent=1 // pred_check_branch
      %105 = sbr.rel (0) target = $region53
    $region52: #{tpu_custom_call.1} parent=1 // pred_region
      %106 = dma.done [#allocation16], 2048
    $region53: #{tpu_custom_call.1} parent=1 // pred_fallthru
      _
    %v107 = vld [vmem:[#allocation6] sm:$0xff]
    %v108 = vld [vmem:[#allocation6 + $0x8] sm:$0xff]
    %v109 = vld [vmem:[#allocation6 + $0x10] sm:$0xff]
    %v110 = vld [vmem:[#allocation6 + $0x18] sm:$0xff]
    %v111 = vld [vmem:[#allocation6 + $0x20] sm:$0xff]
    %v112 = vld [vmem:[#allocation6 + $0x28] sm:$0xff]
    %v113 = vld [vmem:[#allocation6 + $0x30] sm:$0xff]
    %v114 = vld [vmem:[#allocation6 + $0x38] sm:$0xff]
    %v115 = vld [vmem:[#allocation9] sm:$0xff]
    %v116 = vld [vmem:[#allocation9 + $0x8] sm:$0xff]
    %v117 = vld [vmem:[#allocation9 + $0x10] sm:$0xff]
    %v118 = vld [vmem:[#allocation9 + $0x18] sm:$0xff]
    %v119 = vld [vmem:[#allocation9 + $0x20] sm:$0xff]
    %v120 = vld [vmem:[#allocation9 + $0x28] sm:$0xff]
    %v121 = vld [vmem:[#allocation9 + $0x30] sm:$0xff]
    %v122 = vld [vmem:[#allocation9 + $0x38] sm:$0xff]
    %v123 = vld [vmem:[#allocation9 + $0x40] sm:$0xff]
    %v124 = vld [vmem:[#allocation9 + $0x48] sm:$0xff]
    %v125 = vld [vmem:[#allocation9 + $0x50] sm:$0xff]
    %v126 = vld [vmem:[#allocation9 + $0x58] sm:$0xff]
    %v127 = vld [vmem:[#allocation9 + $0x60] sm:$0xff]
    %v128 = vld [vmem:[#allocation9 + $0x68] sm:$0xff]
    %v129 = vld [vmem:[#allocation9 + $0x70] sm:$0xff]
    %v130 = vld [vmem:[#allocation9 + $0x78] sm:$0xff]
    %v131 = vld [vmem:[#allocation9 + $0x80] sm:$0xff]
    %v132 = vld [vmem:[#allocation9 + $0x88] sm:$0xff]
    %v133 = vld [vmem:[#allocation9 + $0x90] sm:$0xff]
    %v134 = vld [vmem:[#allocation9 + $0x98] sm:$0xff]
    %v135 = vld [vmem:[#allocation9 + $0xa0] sm:$0xff]
    %v136 = vld [vmem:[#allocation9 + $0xa8] sm:$0xff]
    %v137 = vld [vmem:[#allocation9 + $0xb0] sm:$0xff]
    %v138 = vld [vmem:[#allocation9 + $0xb8] sm:$0xff]
    %v139 = vld [vmem:[#allocation9 + $0xc0] sm:$0xff]
    %v140 = vld [vmem:[#allocation9 + $0xc8] sm:$0xff]
    %v141 = vld [vmem:[#allocation9 + $0xd0] sm:$0xff]
    %v142 = vld [vmem:[#allocation9 + $0xd8] sm:$0xff]
    %v143 = vld [vmem:[#allocation9 + $0xe0] sm:$0xff]
    %v144 = vld [vmem:[#allocation9 + $0xe8] sm:$0xff]
    %v145 = vld [vmem:[#allocation9 + $0xf0] sm:$0xff]
    %v146 = vld [vmem:[#allocation9 + $0xf8] sm:$0xff]
    %v147 = vld [vmem:[#allocation11] sm:$0xff]
    %v149 = vlaneseq
    %v150 = vshrl.u32 %v149, 7
    %v151 = vsub.s32 0, %v150
    %v152 = vrot.slane %v147, %v151
    %v153 = vlaneseq
    %v154 = vshrl.u32 %v153, 7
    %v155 = vsub.s32 1, %v154
    %v156 = vrot.slane %v147, %v155
    %v157 = vlaneseq
    %v158 = vshrl.u32 %v157, 7
    %v159 = vsub.s32 2, %v158
    %v160 = vrot.slane %v147, %v159
    %v161 = vlaneseq
    %v162 = vshrl.u32 %v161, 7
    %v163 = vsub.s32 3, %v162
    %v164 = vrot.slane %v147, %v163
    %v165 = vlaneseq
    %v166 = vshrl.u32 %v165, 7
    %v167 = vsub.s32 4, %v166
    %v168 = vrot.slane %v147, %v167
    %v169 = vlaneseq
    %v170 = vshrl.u32 %v169, 7
    %v171 = vsub.s32 5, %v170
    %v172 = vrot.slane %v147, %v171
    %v173 = vlaneseq
    %v174 = vshrl.u32 %v173, 7
    %v175 = vsub.s32 6, %v174
    %v176 = vrot.slane %v147, %v175
    %v177 = vlaneseq
    %v178 = vshrl.u32 %v177, 7
    %v179 = vsub.s32 7, %v178
    %v180 = vrot.slane %v147, %v179
    %vm189 = vcmask 261120
    %v191 = vsel %vm189, %v107, 0
    %v194 = vsel %vm189, %v108, 0
    %v197 = vsel %vm189, %v109, 0
    %v200 = vsel %vm189, %v110, 0
    %v203 = vsel %vm189, %v111, 0
    %v206 = vsel %vm189, %v112, 0
    %v209 = vsel %vm189, %v113, 0
    %v212 = vsel %vm189, %v114, 0
    %214 = vmatprep.subr.mxu0 0.0
    %215 = vmatpush1.msra.mxu0 0.0
    %216 = vmatprep.subr.mxu0 0.0
    %217 = vmatpush1.msra.mxu0 0.0
    %218 = vmatprep.subr.mxu0 0.0
    %219 = vmatpush1.msra.mxu0 0.0
    %220 = vmatprep.subr.mxu0 0.0
    %221 = vmatpush1.msra.mxu0 0.0
    %222 = vmatprep.subr.mxu0 0.0
    %223 = vmatpush1.msra.mxu0 0.0
    %224 = vmatprep.subr.mxu0 0.0
    %225 = vmatpush1.msra.mxu0 0.0
    %226 = vmatprep.subr.mxu0 0.0
    %227 = vmatpush1.msra.mxu0 0.0
    %228 = vmatprep.subr.mxu0 0.0
    %229 = vmatpush1.msra.mxu0 0.0
    %230 = vmatprep.subr.mxu0 0.0
    %231 = vmatpush1.msra.mxu0 0.0
    %232 = vmatprep.subr.mxu0 0.0
    %233 = vmatpush1.msra.mxu0 0.0
    %234 = vmatprep.subr.mxu0 0.0
    %235 = vmatpush1.msra.mxu0 0.0
    %236 = vmatprep.subr.mxu0 0.0
    %237 = vmatpush1.msra.mxu0 0.0
    %238 = vmatprep.subr.mxu0 %v140
    %239 = vmatpush1.msra.mxu0 %v139
    %240 = vmatprep.subr.mxu0 %v132
    %241 = vmatpush1.msra.mxu0 %v131
    %242 = vmatprep.subr.mxu0 %v124
    %243 = vmatpush1.msra.mxu0 %v123
    %244 = vmatprep.subr.mxu0 %v116
    %245 = vmatpush1.msra.mxu0 %v115
    %246 = vmatprep.subr.mxu0 0.0
    %247 = vmatpush2.msra.mxu0 0.0
    %248 = vmatprep.subr.mxu0 0.0
    %249 = vmatpush2.msra.mxu0 0.0
    %250 = vmatprep.subr.mxu0 0.0
    %251 = vmatpush2.msra.mxu0 0.0
    %252 = vmatprep.subr.mxu0 0.0
    %253 = vmatpush2.msra.mxu0 0.0
    %254 = vmatprep.subr.mxu0 0.0
    %255 = vmatpush2.msra.mxu0 0.0
    %256 = vmatprep.subr.mxu0 0.0
    %257 = vmatpush2.msra.mxu0 0.0
    %258 = vmatprep.subr.mxu0 0.0
    %259 = vmatpush2.msra.mxu0 0.0
    %260 = vmatprep.subr.mxu0 0.0
    %261 = vmatpush2.msra.mxu0 0.0
    %262 = vmatprep.subr.mxu0 0.0
    %263 = vmatpush2.msra.mxu0 0.0
    %264 = vmatprep.subr.mxu0 0.0
    %265 = vmatpush2.msra.mxu0 0.0
    %266 = vmatprep.subr.mxu0 0.0
    %267 = vmatpush2.msra.mxu0 0.0
    %268 = vmatprep.subr.mxu0 0.0
    %269 = vmatpush2.msra.mxu0 0.0
    %270 = vmatprep.subr.mxu0 0.0
    %271 = vmatpush2.msra.mxu0 0.0
    %272 = vmatprep.subr.mxu0 0.0
    %273 = vmatpush2.msra.mxu0 0.0
    %274 = vmatprep.subr.mxu0 0.0
    %275 = vmatpush2.msra.mxu0 0.0
    %276 = vmatprep.subr.mxu0 0.0
    %277 = vmatpush2.msra.mxu0 0.0
    %278 = vmatprep.mubr.f32.mxu0 0.0
    %279 = vmatmul.mubr.f32.gmra.mxu0 %v191
    %v280 = vpop.f32.mrf.mxu0
    %v281 = vadd.f32 %v152, %v280
    %v282 = vpop.f32.mrf.mxu0
    %v283 = vadd.f32 %v156, %v282
    %284 = vmatprep.mubr.f32.mxu0 0.0
    %285 = vmatmul.mubr.f32.gmra.mxu0 %v194
    %v286 = vpop.f32.mrf.mxu0
    %v287 = vadd.f32 %v152, %v286
    %v288 = vpop.f32.mrf.mxu0
    %v289 = vadd.f32 %v156, %v288
    %290 = vmatprep.mubr.f32.mxu0 0.0
    %291 = vmatmul.mubr.f32.gmra.mxu0 %v197
    %v292 = vpop.f32.mrf.mxu0
    %v293 = vadd.f32 %v152, %v292
    %v294 = vpop.f32.mrf.mxu0
    %v295 = vadd.f32 %v156, %v294
    %296 = vmatprep.mubr.f32.mxu0 0.0
    %297 = vmatmul.mubr.f32.gmra.mxu0 %v200
    %v298 = vpop.f32.mrf.mxu0
    %v299 = vadd.f32 %v152, %v298
    %v300 = vpop.f32.mrf.mxu0
    %v301 = vadd.f32 %v156, %v300
    %302 = vmatprep.mubr.f32.mxu0 0.0
    %303 = vmatmul.mubr.f32.gmra.mxu0 %v203
    %v304 = vpop.f32.mrf.mxu0
    %v305 = vadd.f32 %v152, %v304
    %v306 = vpop.f32.mrf.mxu0
    %v307 = vadd.f32 %v156, %v306
    %308 = vmatprep.mubr.f32.mxu0 0.0
    %309 = vmatmul.mubr.f32.gmra.mxu0 %v206
    %v310 = vpop.f32.mrf.mxu0
    %v311 = vadd.f32 %v152, %v310
    %v312 = vpop.f32.mrf.mxu0
    %v313 = vadd.f32 %v156, %v312
    %314 = vmatprep.mubr.f32.mxu0 0.0
    %315 = vmatmul.mubr.f32.gmra.mxu0 %v209
    %v316 = vpop.f32.mrf.mxu0
    %v317 = vadd.f32 %v152, %v316
    %v318 = vpop.f32.mrf.mxu0
    %v319 = vadd.f32 %v156, %v318
    %320 = vmatprep.mubr.f32.mxu0 0.0
    %321 = vmatmul.mubr.f32.gmra.mxu0 %v212
    %v322 = vpop.f32.mrf.mxu0
    %v323 = vadd.f32 %v152, %v322
    %v324 = vpop.f32.mrf.mxu0
    %v325 = vadd.f32 %v156, %v324
    %326 = vdwg.mxu0
    %327 = vmatprep.subr.mxu0 0.0
    %328 = vmatpush1.msra.mxu0 0.0
    %329 = vmatprep.subr.mxu0 0.0
    %330 = vmatpush1.msra.mxu0 0.0
    %331 = vmatprep.subr.mxu0 0.0
    %332 = vmatpush1.msra.mxu0 0.0
    %333 = vmatprep.subr.mxu0 0.0
    %334 = vmatpush1.msra.mxu0 0.0
    %335 = vmatprep.subr.mxu0 0.0
    %336 = vmatpush1.msra.mxu0 0.0
    %337 = vmatprep.subr.mxu0 0.0
    %338 = vmatpush1.msra.mxu0 0.0
    %339 = vmatprep.subr.mxu0 0.0
    %340 = vmatpush1.msra.mxu0 0.0
    %341 = vmatprep.subr.mxu0 0.0
    %342 = vmatpush1.msra.mxu0 0.0
    %343 = vmatprep.subr.mxu0 0.0
    %344 = vmatpush1.msra.mxu0 0.0
    %345 = vmatprep.subr.mxu0 0.0
    %346 = vmatpush1.msra.mxu0 0.0
    %347 = vmatprep.subr.mxu0 0.0
    %348 = vmatpush1.msra.mxu0 0.0
    %349 = vmatprep.subr.mxu0 0.0
    %350 = vmatpush1.msra.mxu0 0.0
    %351 = vmatprep.subr.mxu0 %v142
    %352 = vmatpush1.msra.mxu0 %v141
    %353 = vmatprep.subr.mxu0 %v134
    %354 = vmatpush1.msra.mxu0 %v133
    %355 = vmatprep.subr.mxu0 %v126
    %356 = vmatpush1.msra.mxu0 %v125
    %357 = vmatprep.subr.mxu0 %v118
    %358 = vmatpush1.msra.mxu0 %v117
    %359 = vmatprep.subr.mxu0 0.0
    %360 = vmatpush2.msra.mxu0 0.0
    %361 = vmatprep.subr.mxu0 0.0
    %362 = vmatpush2.msra.mxu0 0.0
    %363 = vmatprep.subr.mxu0 0.0
    %364 = vmatpush2.msra.mxu0 0.0
    %365 = vmatprep.subr.mxu0 0.0
    %366 = vmatpush2.msra.mxu0 0.0
    %367 = vmatprep.subr.mxu0 0.0
    %368 = vmatpush2.msra.mxu0 0.0
    %369 = vmatprep.subr.mxu0 0.0
    %370 = vmatpush2.msra.mxu0 0.0
    %371 = vmatprep.subr.mxu0 0.0
    %372 = vmatpush2.msra.mxu0 0.0
    %373 = vmatprep.subr.mxu0 0.0
    %374 = vmatpush2.msra.mxu0 0.0
    %375 = vmatprep.subr.mxu0 0.0
    %376 = vmatpush2.msra.mxu0 0.0
    %377 = vmatprep.subr.mxu0 0.0
    %378 = vmatpush2.msra.mxu0 0.0
    %379 = vmatprep.subr.mxu0 0.0
    %380 = vmatpush2.msra.mxu0 0.0
    %381 = vmatprep.subr.mxu0 0.0
    %382 = vmatpush2.msra.mxu0 0.0
    %383 = vmatprep.subr.mxu0 0.0
    %384 = vmatpush2.msra.mxu0 0.0
    %385 = vmatprep.subr.mxu0 0.0
    %386 = vmatpush2.msra.mxu0 0.0
    %387 = vmatprep.subr.mxu0 0.0
    %388 = vmatpush2.msra.mxu0 0.0
    %389 = vmatprep.subr.mxu0 0.0
    %390 = vmatpush2.msra.mxu0 0.0
    %391 = vmatprep.mubr.f32.mxu0 0.0
    %392 = vmatmul.mubr.f32.gmra.mxu0 %v191
    %v393 = vpop.f32.mrf.mxu0
    %v394 = vadd.f32 %v160, %v393
    %v395 = vpop.f32.mrf.mxu0
    %v396 = vadd.f32 %v164, %v395
    %397 = vmatprep.mubr.f32.mxu0 0.0
    %398 = vmatmul.mubr.f32.gmra.mxu0 %v194
    %v399 = vpop.f32.mrf.mxu0
    %v400 = vadd.f32 %v160, %v399
    %v401 = vpop.f32.mrf.mxu0
    %v402 = vadd.f32 %v164, %v401
    %403 = vmatprep.mubr.f32.mxu0 0.0
    %404 = vmatmul.mubr.f32.gmra.mxu0 %v197
    %v405 = vpop.f32.mrf.mxu0
    %v406 = vadd.f32 %v160, %v405
    %v407 = vpop.f32.mrf.mxu0
    %v408 = vadd.f32 %v164, %v407
    %409 = vmatprep.mubr.f32.mxu0 0.0
    %410 = vmatmul.mubr.f32.gmra.mxu0 %v200
    %v411 = vpop.f32.mrf.mxu0
    %v412 = vadd.f32 %v160, %v411
    %v413 = vpop.f32.mrf.mxu0
    %v414 = vadd.f32 %v164, %v413
    %415 = vmatprep.mubr.f32.mxu0 0.0
    %416 = vmatmul.mubr.f32.gmra.mxu0 %v203
    %v417 = vpop.f32.mrf.mxu0
    %v418 = vadd.f32 %v160, %v417
    %v419 = vpop.f32.mrf.mxu0
    %v420 = vadd.f32 %v164, %v419
    %421 = vmatprep.mubr.f32.mxu0 0.0
    %422 = vmatmul.mubr.f32.gmra.mxu0 %v206
    %v423 = vpop.f32.mrf.mxu0
    %v424 = vadd.f32 %v160, %v423
    %v425 = vpop.f32.mrf.mxu0
    %v426 = vadd.f32 %v164, %v425
    %427 = vmatprep.mubr.f32.mxu0 0.0
    %428 = vmatmul.mubr.f32.gmra.mxu0 %v209
    %v429 = vpop.f32.mrf.mxu0
    %v430 = vadd.f32 %v160, %v429
    %v431 = vpop.f32.mrf.mxu0
    %v432 = vadd.f32 %v164, %v431
    %433 = vmatprep.mubr.f32.mxu0 0.0
    %434 = vmatmul.mubr.f32.gmra.mxu0 %v212
    %v435 = vpop.f32.mrf.mxu0
    %v436 = vadd.f32 %v160, %v435
    %v437 = vpop.f32.mrf.mxu0
    %v438 = vadd.f32 %v164, %v437
    %439 = vdwg.mxu0
    %440 = vmatprep.subr.mxu0 0.0
    %441 = vmatpush1.msra.mxu0 0.0
    %442 = vmatprep.subr.mxu0 0.0
    %443 = vmatpush1.msra.mxu0 0.0
    %444 = vmatprep.subr.mxu0 0.0
    %445 = vmatpush1.msra.mxu0 0.0
    %446 = vmatprep.subr.mxu0 0.0
    %447 = vmatpush1.msra.mxu0 0.0
    %448 = vmatprep.subr.mxu0 0.0
    %449 = vmatpush1.msra.mxu0 0.0
    %450 = vmatprep.subr.mxu0 0.0
    %451 = vmatpush1.msra.mxu0 0.0
    %452 = vmatprep.subr.mxu0 0.0
    %453 = vmatpush1.msra.mxu0 0.0
    %454 = vmatprep.subr.mxu0 0.0
    %455 = vmatpush1.msra.mxu0 0.0
    %456 = vmatprep.subr.mxu0 0.0
    %457 = vmatpush1.msra.mxu0 0.0
    %458 = vmatprep.subr.mxu0 0.0
    %459 = vmatpush1.msra.mxu0 0.0
    %460 = vmatprep.subr.mxu0 0.0
    %461 = vmatpush1.msra.mxu0 0.0
    %462 = vmatprep.subr.mxu0 0.0
    %463 = vmatpush1.msra.mxu0 0.0
    %464 = vmatprep.subr.mxu0 %v144
    %465 = vmatpush1.msra.mxu0 %v143
    %466 = vmatprep.subr.mxu0 %v136
    %467 = vmatpush1.msra.mxu0 %v135
    %468 = vmatprep.subr.mxu0 %v128
    %469 = vmatpush1.msra.mxu0 %v127
    %470 = vmatprep.subr.mxu0 %v120
    %471 = vmatpush1.msra.mxu0 %v119
    %472 = vmatprep.subr.mxu0 0.0
    %473 = vmatpush2.msra.mxu0 0.0
    %474 = vmatprep.subr.mxu0 0.0
    %475 = vmatpush2.msra.mxu0 0.0
    %476 = vmatprep.subr.mxu0 0.0
    %477 = vmatpush2.msra.mxu0 0.0
    %478 = vmatprep.subr.mxu0 0.0
    %479 = vmatpush2.msra.mxu0 0.0
    %480 = vmatprep.subr.mxu0 0.0
    %481 = vmatpush2.msra.mxu0 0.0
    %482 = vmatprep.subr.mxu0 0.0
    %483 = vmatpush2.msra.mxu0 0.0
    %484 = vmatprep.subr.mxu0 0.0
    %485 = vmatpush2.msra.mxu0 0.0
    %486 = vmatprep.subr.mxu0 0.0
    %487 = vmatpush2.msra.mxu0 0.0
    %488 = vmatprep.subr.mxu0 0.0
    %489 = vmatpush2.msra.mxu0 0.0
    %490 = vmatprep.subr.mxu0 0.0
    %491 = vmatpush2.msra.mxu0 0.0
    %492 = vmatprep.subr.mxu0 0.0
    %493 = vmatpush2.msra.mxu0 0.0
    %494 = vmatprep.subr.mxu0 0.0
    %495 = vmatpush2.msra.mxu0 0.0
    %496 = vmatprep.subr.mxu0 0.0
    %497 = vmatpush2.msra.mxu0 0.0
    %498 = vmatprep.subr.mxu0 0.0
    %499 = vmatpush2.msra.mxu0 0.0
    %500 = vmatprep.subr.mxu0 0.0
    %501 = vmatpush2.msra.mxu0 0.0
    %502 = vmatprep.subr.mxu0 0.0
    %503 = vmatpush2.msra.mxu0 0.0
    %504 = vmatprep.mubr.f32.mxu0 0.0
    %505 = vmatmul.mubr.f32.gmra.mxu0 %v191
    %v506 = vpop.f32.mrf.mxu0
    %v507 = vadd.f32 %v168, %v506
    %v508 = vpop.f32.mrf.mxu0
    %v509 = vadd.f32 %v172, %v508
    %510 = vmatprep.mubr.f32.mxu0 0.0
    %511 = vmatmul.mubr.f32.gmra.mxu0 %v194
    %v512 = vpop.f32.mrf.mxu0
    %v513 = vadd.f32 %v168, %v512
    %v514 = vpop.f32.mrf.mxu0
    %v515 = vadd.f32 %v172, %v514
    %516 = vmatprep.mubr.f32.mxu0 0.0
    %517 = vmatmul.mubr.f32.gmra.mxu0 %v197
    %v518 = vpop.f32.mrf.mxu0
    %v519 = vadd.f32 %v168, %v518
    %v520 = vpop.f32.mrf.mxu0
    %v521 = vadd.f32 %v172, %v520
    %522 = vmatprep.mubr.f32.mxu0 0.0
    %523 = vmatmul.mubr.f32.gmra.mxu0 %v200
    %v524 = vpop.f32.mrf.mxu0
    %v525 = vadd.f32 %v168, %v524
    %v526 = vpop.f32.mrf.mxu0
    %v527 = vadd.f32 %v172, %v526
    %528 = vmatprep.mubr.f32.mxu0 0.0
    %529 = vmatmul.mubr.f32.gmra.mxu0 %v203
    %v530 = vpop.f32.mrf.mxu0
    %v531 = vadd.f32 %v168, %v530
    %v532 = vpop.f32.mrf.mxu0
    %v533 = vadd.f32 %v172, %v532
    %534 = vmatprep.mubr.f32.mxu0 0.0
    %535 = vmatmul.mubr.f32.gmra.mxu0 %v206
    %v536 = vpop.f32.mrf.mxu0
    %v537 = vadd.f32 %v168, %v536
    %v538 = vpop.f32.mrf.mxu0
    %v539 = vadd.f32 %v172, %v538
    %540 = vmatprep.mubr.f32.mxu0 0.0
    %541 = vmatmul.mubr.f32.gmra.mxu0 %v209
    %v542 = vpop.f32.mrf.mxu0
    %v543 = vadd.f32 %v168, %v542
    %v544 = vpop.f32.mrf.mxu0
    %v545 = vadd.f32 %v172, %v544
    %546 = vmatprep.mubr.f32.mxu0 0.0
    %547 = vmatmul.mubr.f32.gmra.mxu0 %v212
    %v548 = vpop.f32.mrf.mxu0
    %v549 = vadd.f32 %v168, %v548
    %v550 = vpop.f32.mrf.mxu0
    %v551 = vadd.f32 %v172, %v550
    %552 = vdwg.mxu0
    %553 = vmatprep.subr.mxu0 0.0
    %554 = vmatpush1.msra.mxu0 0.0
    %555 = vmatprep.subr.mxu0 0.0
    %556 = vmatpush1.msra.mxu0 0.0
    %557 = vmatprep.subr.mxu0 0.0
    %558 = vmatpush1.msra.mxu0 0.0
    %559 = vmatprep.subr.mxu0 0.0
    %560 = vmatpush1.msra.mxu0 0.0
    %561 = vmatprep.subr.mxu0 0.0
    %562 = vmatpush1.msra.mxu0 0.0
    %563 = vmatprep.subr.mxu0 0.0
    %564 = vmatpush1.msra.mxu0 0.0
    %565 = vmatprep.subr.mxu0 0.0
    %566 = vmatpush1.msra.mxu0 0.0
    %567 = vmatprep.subr.mxu0 0.0
    %568 = vmatpush1.msra.mxu0 0.0
    %569 = vmatprep.subr.mxu0 0.0
    %570 = vmatpush1.msra.mxu0 0.0
    %571 = vmatprep.subr.mxu0 0.0
    %572 = vmatpush1.msra.mxu0 0.0
    %573 = vmatprep.subr.mxu0 0.0
    %574 = vmatpush1.msra.mxu0 0.0
    %575 = vmatprep.subr.mxu0 0.0
    %576 = vmatpush1.msra.mxu0 0.0
    %577 = vmatprep.subr.mxu0 %v146
    %578 = vmatpush1.msra.mxu0 %v145
    %579 = vmatprep.subr.mxu0 %v138
    %580 = vmatpush1.msra.mxu0 %v137
    %581 = vmatprep.subr.mxu0 %v130
    %582 = vmatpush1.msra.mxu0 %v129
    %583 = vmatprep.subr.mxu0 %v122
    %584 = vmatpush1.msra.mxu0 %v121
    %585 = vmatprep.subr.mxu0 0.0
    %586 = vmatpush2.msra.mxu0 0.0
    %587 = vmatprep.subr.mxu0 0.0
    %588 = vmatpush2.msra.mxu0 0.0
    %589 = vmatprep.subr.mxu0 0.0
    %590 = vmatpush2.msra.mxu0 0.0
    %591 = vmatprep.subr.mxu0 0.0
    %592 = vmatpush2.msra.mxu0 0.0
    %593 = vmatprep.subr.mxu0 0.0
    %594 = vmatpush2.msra.mxu0 0.0
    %595 = vmatprep.subr.mxu0 0.0
    %596 = vmatpush2.msra.mxu0 0.0
    %597 = vmatprep.subr.mxu0 0.0
    %598 = vmatpush2.msra.mxu0 0.0
    %599 = vmatprep.subr.mxu0 0.0
    %600 = vmatpush2.msra.mxu0 0.0
    %601 = vmatprep.subr.mxu0 0.0
    %602 = vmatpush2.msra.mxu0 0.0
    %603 = vmatprep.subr.mxu0 0.0
    %604 = vmatpush2.msra.mxu0 0.0
    %605 = vmatprep.subr.mxu0 0.0
    %606 = vmatpush2.msra.mxu0 0.0
    %607 = vmatprep.subr.mxu0 0.0
    %608 = vmatpush2.msra.mxu0 0.0
    %609 = vmatprep.subr.mxu0 0.0
    %610 = vmatpush2.msra.mxu0 0.0
    %611 = vmatprep.subr.mxu0 0.0
    %612 = vmatpush2.msra.mxu0 0.0
    %613 = vmatprep.subr.mxu0 0.0
    %614 = vmatpush2.msra.mxu0 0.0
    %615 = vmatprep.subr.mxu0 0.0
    %616 = vmatpush2.msra.mxu0 0.0
    %617 = vmatprep.mubr.f32.mxu0 0.0
    %618 = vmatmul.mubr.f32.gmra.mxu0 %v191
    %v619 = vpop.f32.mrf.mxu0
    %v620 = vadd.f32 %v176, %v619
    %v621 = vpop.f32.mrf.mxu0
    %v622 = vadd.f32 %v180, %v621
    %623 = vmatprep.mubr.f32.mxu0 0.0
    %624 = vmatmul.mubr.f32.gmra.mxu0 %v194
    %v625 = vpop.f32.mrf.mxu0
    %v626 = vadd.f32 %v176, %v625
    %v627 = vpop.f32.mrf.mxu0
    %v628 = vadd.f32 %v180, %v627
    %629 = vmatprep.mubr.f32.mxu0 0.0
    %630 = vmatmul.mubr.f32.gmra.mxu0 %v197
    %v631 = vpop.f32.mrf.mxu0
    %v632 = vadd.f32 %v176, %v631
    %v633 = vpop.f32.mrf.mxu0
    %v634 = vadd.f32 %v180, %v633
    %635 = vmatprep.mubr.f32.mxu0 0.0
    %636 = vmatmul.mubr.f32.gmra.mxu0 %v200
    %v637 = vpop.f32.mrf.mxu0
    %v638 = vadd.f32 %v176, %v637
    %v639 = vpop.f32.mrf.mxu0
    %v640 = vadd.f32 %v180, %v639
    %641 = vmatprep.mubr.f32.mxu0 0.0
    %642 = vmatmul.mubr.f32.gmra.mxu0 %v203
    %v643 = vpop.f32.mrf.mxu0
    %v644 = vadd.f32 %v176, %v643
    %v645 = vpop.f32.mrf.mxu0
    %v646 = vadd.f32 %v180, %v645
    %647 = vmatprep.mubr.f32.mxu0 0.0
    %648 = vmatmul.mubr.f32.gmra.mxu0 %v206
    %v649 = vpop.f32.mrf.mxu0
    %v650 = vadd.f32 %v176, %v649
    %v651 = vpop.f32.mrf.mxu0
    %v652 = vadd.f32 %v180, %v651
    %653 = vmatprep.mubr.f32.mxu0 0.0
    %654 = vmatmul.mubr.f32.gmra.mxu0 %v209
    %v655 = vpop.f32.mrf.mxu0
    %v656 = vadd.f32 %v176, %v655
    %v657 = vpop.f32.mrf.mxu0
    %v658 = vadd.f32 %v180, %v657
    %659 = vmatprep.mubr.f32.mxu0 0.0
    %660 = vmatmul.mubr.f32.gmra.mxu0 %v212
    %v661 = vpop.f32.mrf.mxu0
    %v662 = vadd.f32 %v176, %v661
    %v663 = vpop.f32.mrf.mxu0
    %v664 = vadd.f32 %v180, %v663
    %665 = vdwg.mxu0
    %666 = vst [vmem:[#allocation2] sm:$0xff] %v281
    %667 = vst [vmem:[#allocation2 + $0x8] sm:$0xff] %v283
    %668 = vst [vmem:[#allocation2 + $0x10] sm:$0xff] %v394
    %669 = vst [vmem:[#allocation2 + $0x18] sm:$0xff] %v396
    %670 = vst [vmem:[#allocation2 + $0x20] sm:$0xff] %v287
    %671 = vst [vmem:[#allocation2 + $0x28] sm:$0xff] %v289
    %672 = vst [vmem:[#allocation2 + $0x30] sm:$0xff] %v400
    %673 = vst [vmem:[#allocation2 + $0x38] sm:$0xff] %v402
    %674 = vst [vmem:[#allocation2 + $0x40] sm:$0xff] %v293
    %675 = vst [vmem:[#allocation2 + $0x48] sm:$0xff] %v295
    %676 = vst [vmem:[#allocation2 + $0x50] sm:$0xff] %v406
    %677 = vst [vmem:[#allocation2 + $0x58] sm:$0xff] %v408
    %678 = vst [vmem:[#allocation2 + $0x60] sm:$0xff] %v299
    %679 = vst [vmem:[#allocation2 + $0x68] sm:$0xff] %v301
    %680 = vst [vmem:[#allocation2 + $0x70] sm:$0xff] %v412
    %681 = vst [vmem:[#allocation2 + $0x78] sm:$0xff] %v414
    %682 = vst [vmem:[#allocation2 + $0x80] sm:$0xff] %v305
    %683 = vst [vmem:[#allocation2 + $0x88] sm:$0xff] %v307
    %684 = vst [vmem:[#allocation2 + $0x90] sm:$0xff] %v418
    %685 = vst [vmem:[#allocation2 + $0x98] sm:$0xff] %v420
    %686 = vst [vmem:[#allocation2 + $0xa0] sm:$0xff] %v311
    %687 = vst [vmem:[#allocation2 + $0xa8] sm:$0xff] %v313
    %688 = vst [vmem:[#allocation2 + $0xb0] sm:$0xff] %v424
    %689 = vst [vmem:[#allocation2 + $0xb8] sm:$0xff] %v426
    %690 = vst [vmem:[#allocation2 + $0xc0] sm:$0xff] %v317
    %691 = vst [vmem:[#allocation2 + $0xc8] sm:$0xff] %v319
    %692 = vst [vmem:[#allocation2 + $0xd0] sm:$0xff] %v430
    %693 = vst [vmem:[#allocation2 + $0xd8] sm:$0xff] %v432
    %694 = vst [vmem:[#allocation2 + $0xe0] sm:$0xff] %v323
    %695 = vst [vmem:[#allocation2 + $0xe8] sm:$0xff] %v325
    %696 = vst [vmem:[#allocation2 + $0xf0] sm:$0xff] %v436
    %697 = vst [vmem:[#allocation2 + $0xf8] sm:$0xff] %v438
    %698 = vst [vmem:[#allocation3] sm:$0xff] %v507
    %699 = vst [vmem:[#allocation3 + $0x8] sm:$0xff] %v509
    %700 = vst [vmem:[#allocation3 + $0x10] sm:$0xff] %v620
    %701 = vst [vmem:[#allocation3 + $0x18] sm:$0xff] %v622
    %702 = vst [vmem:[#allocation3 + $0x20] sm:$0xff] %v513
    %703 = vst [vmem:[#allocation3 + $0x28] sm:$0xff] %v515
    %704 = vst [vmem:[#allocation3 + $0x30] sm:$0xff] %v626
    %705 = vst [vmem:[#allocation3 + $0x38] sm:$0xff] %v628
    %706 = vst [vmem:[#allocation3 + $0x40] sm:$0xff] %v519
    %707 = vst [vmem:[#allocation3 + $0x48] sm:$0xff] %v521
    %708 = vst [vmem:[#allocation3 + $0x50] sm:$0xff] %v632
    %709 = vst [vmem:[#allocation3 + $0x58] sm:$0xff] %v634
    %710 = vst [vmem:[#allocation3 + $0x60] sm:$0xff] %v525
    %711 = vst [vmem:[#allocation3 + $0x68] sm:$0xff] %v527
    %712 = vst [vmem:[#allocation3 + $0x70] sm:$0xff] %v638
    %713 = vst [vmem:[#allocation3 + $0x78] sm:$0xff] %v640
    %714 = vst [vmem:[#allocation3 + $0x80] sm:$0xff] %v531
    %715 = vst [vmem:[#allocation3 + $0x88] sm:$0xff] %v533
    %716 = vst [vmem:[#allocation3 + $0x90] sm:$0xff] %v644
    %717 = vst [vmem:[#allocation3 + $0x98] sm:$0xff] %v646
    %718 = vst [vmem:[#allocation3 + $0xa0] sm:$0xff] %v537
    %719 = vst [vmem:[#allocation3 + $0xa8] sm:$0xff] %v539
    %720 = vst [vmem:[#allocation3 + $0xb0] sm:$0xff] %v650
    %721 = vst [vmem:[#allocation3 + $0xb8] sm:$0xff] %v652
    %722 = vst [vmem:[#allocation3 + $0xc0] sm:$0xff] %v543
    %723 = vst [vmem:[#allocation3 + $0xc8] sm:$0xff] %v545
    %724 = vst [vmem:[#allocation3 + $0xd0] sm:$0xff] %v656
    %725 = vst [vmem:[#allocation3 + $0xd8] sm:$0xff] %v658
    %726 = vst [vmem:[#allocation3 + $0xe0] sm:$0xff] %v549
    %727 = vst [vmem:[#allocation3 + $0xe8] sm:$0xff] %v551
    %728 = vst [vmem:[#allocation3 + $0xf0] sm:$0xff] %v662
    %729 = vst [vmem:[#allocation3 + $0xf8] sm:$0xff] %v664
    %v730 = vld [vmem:[#allocation12] sm:$0xff]
    %v731 = vld [vmem:[#allocation12 + $0x8] sm:$0xff]
    %v732 = vld [vmem:[#allocation12 + $0x10] sm:$0xff]
    %v733 = vld [vmem:[#allocation12 + $0x18] sm:$0xff]
    %v734 = vld [vmem:[#allocation12 + $0x20] sm:$0xff]
    %v735 = vld [vmem:[#allocation12 + $0x28] sm:$0xff]
    %v736 = vld [vmem:[#allocation12 + $0x30] sm:$0xff]
    %v737 = vld [vmem:[#allocation12 + $0x38] sm:$0xff]
    %v738 = vld [vmem:[#allocation12 + $0x40] sm:$0xff]
    %v739 = vld [vmem:[#allocation12 + $0x48] sm:$0xff]
    %v740 = vld [vmem:[#allocation12 + $0x50] sm:$0xff]
    %v741 = vld [vmem:[#allocation12 + $0x58] sm:$0xff]
    %v742 = vld [vmem:[#allocation12 + $0x60] sm:$0xff]
    %v743 = vld [vmem:[#allocation12 + $0x68] sm:$0xff]
    %v744 = vld [vmem:[#allocation12 + $0x70] sm:$0xff]
    %v745 = vld [vmem:[#allocation12 + $0x78] sm:$0xff]
    %v746 = vld [vmem:[#allocation12 + $0x80] sm:$0xff]
    %v747 = vld [vmem:[#allocation12 + $0x88] sm:$0xff]
    %v748 = vld [vmem:[#allocation12 + $0x90] sm:$0xff]
    %v749 = vld [vmem:[#allocation12 + $0x98] sm:$0xff]
    %v750 = vld [vmem:[#allocation12 + $0xa0] sm:$0xff]
    %v751 = vld [vmem:[#allocation12 + $0xa8] sm:$0xff]
    %v752 = vld [vmem:[#allocation12 + $0xb0] sm:$0xff]
    %v753 = vld [vmem:[#allocation12 + $0xb8] sm:$0xff]
    %v754 = vld [vmem:[#allocation12 + $0xc0] sm:$0xff]
    %v755 = vld [vmem:[#allocation12 + $0xc8] sm:$0xff]
    %v756 = vld [vmem:[#allocation12 + $0xd0] sm:$0xff]
    %v757 = vld [vmem:[#allocation12 + $0xd8] sm:$0xff]
    %v758 = vld [vmem:[#allocation12 + $0xe0] sm:$0xff]
    %v759 = vld [vmem:[#allocation12 + $0xe8] sm:$0xff]
    %v760 = vld [vmem:[#allocation12 + $0xf0] sm:$0xff]
    %v761 = vld [vmem:[#allocation12 + $0xf8] sm:$0xff]
    %v762 = vld [vmem:[#allocation12 + $0x100] sm:$0xff]
    %v763 = vld [vmem:[#allocation12 + $0x108] sm:$0xff]
    %v764 = vld [vmem:[#allocation12 + $0x110] sm:$0xff]
    %v765 = vld [vmem:[#allocation12 + $0x118] sm:$0xff]
    %v766 = vld [vmem:[#allocation12 + $0x120] sm:$0xff]
    %v767 = vld [vmem:[#allocation12 + $0x128] sm:$0xff]
    %v768 = vld [vmem:[#allocation12 + $0x130] sm:$0xff]
    %v769 = vld [vmem:[#allocation12 + $0x138] sm:$0xff]
    %v770 = vld [vmem:[#allocation12 + $0x140] sm:$0xff]
    %v771 = vld [vmem:[#allocation12 + $0x148] sm:$0xff]
    %v772 = vld [vmem:[#allocation12 + $0x150] sm:$0xff]
    %v773 = vld [vmem:[#allocation12 + $0x158] sm:$0xff]
    %v774 = vld [vmem:[#allocation12 + $0x160] sm:$0xff]
    %v775 = vld [vmem:[#allocation12 + $0x168] sm:$0xff]
    %v776 = vld [vmem:[#allocation12 + $0x170] sm:$0xff]
    %v777 = vld [vmem:[#allocation12 + $0x178] sm:$0xff]
    %v778 = vld [vmem:[#allocation12 + $0x180] sm:$0xff]
    %v779 = vld [vmem:[#allocation12 + $0x188] sm:$0xff]
    %v780 = vld [vmem:[#allocation12 + $0x190] sm:$0xff]
    %v781 = vld [vmem:[#allocation12 + $0x198] sm:$0xff]
    %v782 = vld [vmem:[#allocation12 + $0x1a0] sm:$0xff]
    %v783 = vld [vmem:[#allocation12 + $0x1a8] sm:$0xff]
    %v784 = vld [vmem:[#allocation12 + $0x1b0] sm:$0xff]
    %v785 = vld [vmem:[#allocation12 + $0x1b8] sm:$0xff]
    %v786 = vld [vmem:[#allocation12 + $0x1c0] sm:$0xff]
    %v787 = vld [vmem:[#allocation12 + $0x1c8] sm:$0xff]
    %v788 = vld [vmem:[#allocation12 + $0x1d0] sm:$0xff]
    %v789 = vld [vmem:[#allocation12 + $0x1d8] sm:$0xff]
    %v790 = vld [vmem:[#allocation12 + $0x1e0] sm:$0xff]
    %v791 = vld [vmem:[#allocation12 + $0x1e8] sm:$0xff]
    %v792 = vld [vmem:[#allocation12 + $0x1f0] sm:$0xff]
    %v793 = vld [vmem:[#allocation12 + $0x1f8] sm:$0xff]
    %v794 = vld [vmem:[#allocation12 + $0x200] sm:$0xff]
    %v795 = vld [vmem:[#allocation12 + $0x208] sm:$0xff]
    %v796 = vld [vmem:[#allocation12 + $0x210] sm:$0xff]
    %v797 = vld [vmem:[#allocation12 + $0x218] sm:$0xff]
    %v798 = vld [vmem:[#allocation12 + $0x220] sm:$0xff]
    %v799 = vld [vmem:[#allocation12 + $0x228] sm:$0xff]
    %v800 = vld [vmem:[#allocation12 + $0x230] sm:$0xff]
    %v801 = vld [vmem:[#allocation12 + $0x238] sm:$0xff]
    %v802 = vld [vmem:[#allocation12 + $0x240] sm:$0xff]
    %v803 = vld [vmem:[#allocation12 + $0x248] sm:$0xff]
    %v804 = vld [vmem:[#allocation12 + $0x250] sm:$0xff]
    %v805 = vld [vmem:[#allocation12 + $0x258] sm:$0xff]
    %v806 = vld [vmem:[#allocation12 + $0x260] sm:$0xff]
    %v807 = vld [vmem:[#allocation12 + $0x268] sm:$0xff]
    %v808 = vld [vmem:[#allocation12 + $0x270] sm:$0xff]
    %v809 = vld [vmem:[#allocation12 + $0x278] sm:$0xff]
    %v810 = vld [vmem:[#allocation12 + $0x280] sm:$0xff]
    %v811 = vld [vmem:[#allocation12 + $0x288] sm:$0xff]
    %v812 = vld [vmem:[#allocation12 + $0x290] sm:$0xff]
    %v813 = vld [vmem:[#allocation12 + $0x298] sm:$0xff]
    %v814 = vld [vmem:[#allocation12 + $0x2a0] sm:$0xff]
    %v815 = vld [vmem:[#allocation12 + $0x2a8] sm:$0xff]
    %v816 = vld [vmem:[#allocation12 + $0x2b0] sm:$0xff]
    %v817 = vld [vmem:[#allocation12 + $0x2b8] sm:$0xff]
    %v818 = vld [vmem:[#allocation12 + $0x2c0] sm:$0xff]
    %v819 = vld [vmem:[#allocation12 + $0x2c8] sm:$0xff]
    %v820 = vld [vmem:[#allocation12 + $0x2d0] sm:$0xff]
    %v821 = vld [vmem:[#allocation12 + $0x2d8] sm:$0xff]
    %v822 = vld [vmem:[#allocation12 + $0x2e0] sm:$0xff]
    %v823 = vld [vmem:[#allocation12 + $0x2e8] sm:$0xff]
    %v824 = vld [vmem:[#allocation12 + $0x2f0] sm:$0xff]
    %v825 = vld [vmem:[#allocation12 + $0x2f8] sm:$0xff]
    %v826 = vld [vmem:[#allocation12 + $0x300] sm:$0xff]
    %v827 = vld [vmem:[#allocation12 + $0x308] sm:$0xff]
    %v828 = vld [vmem:[#allocation12 + $0x310] sm:$0xff]
    %v829 = vld [vmem:[#allocation12 + $0x318] sm:$0xff]
    %v830 = vld [vmem:[#allocation12 + $0x320] sm:$0xff]
    %v831 = vld [vmem:[#allocation12 + $0x328] sm:$0xff]
    %v832 = vld [vmem:[#allocation12 + $0x330] sm:$0xff]
    %v833 = vld [vmem:[#allocation12 + $0x338] sm:$0xff]
    %v834 = vld [vmem:[#allocation12 + $0x340] sm:$0xff]
    %v835 = vld [vmem:[#allocation12 + $0x348] sm:$0xff]
    %v836 = vld [vmem:[#allocation12 + $0x350] sm:$0xff]
    %v837 = vld [vmem:[#allocation12 + $0x358] sm:$0xff]
    %v838 = vld [vmem:[#allocation12 + $0x360] sm:$0xff]
    %v839 = vld [vmem:[#allocation12 + $0x368] sm:$0xff]
    %v840 = vld [vmem:[#allocation12 + $0x370] sm:$0xff]
    %v841 = vld [vmem:[#allocation12 + $0x378] sm:$0xff]
    %v842 = vld [vmem:[#allocation12 + $0x380] sm:$0xff]
    %v843 = vld [vmem:[#allocation12 + $0x388] sm:$0xff]
    %v844 = vld [vmem:[#allocation12 + $0x390] sm:$0xff]
    %v845 = vld [vmem:[#allocation12 + $0x398] sm:$0xff]
    %v846 = vld [vmem:[#allocation12 + $0x3a0] sm:$0xff]
    %v847 = vld [vmem:[#allocation12 + $0x3a8] sm:$0xff]
    %v848 = vld [vmem:[#allocation12 + $0x3b0] sm:$0xff]
    %v849 = vld [vmem:[#allocation12 + $0x3b8] sm:$0xff]
    %v850 = vld [vmem:[#allocation12 + $0x3c0] sm:$0xff]
    %v851 = vld [vmem:[#allocation12 + $0x3c8] sm:$0xff]
    %v852 = vld [vmem:[#allocation12 + $0x3d0] sm:$0xff]
    %v853 = vld [vmem:[#allocation12 + $0x3d8] sm:$0xff]
    %v854 = vld [vmem:[#allocation12 + $0x3e0] sm:$0xff]
    %v855 = vld [vmem:[#allocation12 + $0x3e8] sm:$0xff]
    %v856 = vld [vmem:[#allocation12 + $0x3f0] sm:$0xff]
    %v857 = vld [vmem:[#allocation12 + $0x3f8] sm:$0xff]
    %v858 = vld [vmem:[#allocation12 + $0x400] sm:$0xff]
    %v859 = vld [vmem:[#allocation12 + $0x408] sm:$0xff]
    %v860 = vld [vmem:[#allocation12 + $0x410] sm:$0xff]
    %v861 = vld [vmem:[#allocation12 + $0x418] sm:$0xff]
    %v862 = vld [vmem:[#allocation12 + $0x420] sm:$0xff]
    %v863 = vld [vmem:[#allocation12 + $0x428] sm:$0xff]
    %v864 = vld [vmem:[#allocation12 + $0x430] sm:$0xff]
    %v865 = vld [vmem:[#allocation12 + $0x438] sm:$0xff]
    %v866 = vld [vmem:[#allocation12 + $0x440] sm:$0xff]
    %v867 = vld [vmem:[#allocation12 + $0x448] sm:$0xff]
    %v868 = vld [vmem:[#allocation12 + $0x450] sm:$0xff]
    %v869 = vld [vmem:[#allocation12 + $0x458] sm:$0xff]
    %v870 = vld [vmem:[#allocation12 + $0x460] sm:$0xff]
    %v871 = vld [vmem:[#allocation12 + $0x468] sm:$0xff]
    %v872 = vld [vmem:[#allocation12 + $0x470] sm:$0xff]
    %v873 = vld [vmem:[#allocation12 + $0x478] sm:$0xff]
    %v874 = vld [vmem:[#allocation12 + $0x480] sm:$0xff]
    %v875 = vld [vmem:[#allocation12 + $0x488] sm:$0xff]
    %v876 = vld [vmem:[#allocation12 + $0x490] sm:$0xff]
    %v877 = vld [vmem:[#allocation12 + $0x498] sm:$0xff]
    %v878 = vld [vmem:[#allocation12 + $0x4a0] sm:$0xff]
    %v879 = vld [vmem:[#allocation12 + $0x4a8] sm:$0xff]
    %v880 = vld [vmem:[#allocation12 + $0x4b0] sm:$0xff]
    %v881 = vld [vmem:[#allocation12 + $0x4b8] sm:$0xff]
    %v882 = vld [vmem:[#allocation12 + $0x4c0] sm:$0xff]
    %v883 = vld [vmem:[#allocation12 + $0x4c8] sm:$0xff]
    %v884 = vld [vmem:[#allocation12 + $0x4d0] sm:$0xff]
    %v885 = vld [vmem:[#allocation12 + $0x4d8] sm:$0xff]
    %v886 = vld [vmem:[#allocation12 + $0x4e0] sm:$0xff]
    %v887 = vld [vmem:[#allocation12 + $0x4e8] sm:$0xff]
    %v888 = vld [vmem:[#allocation12 + $0x4f0] sm:$0xff]
    %v889 = vld [vmem:[#allocation12 + $0x4f8] sm:$0xff]
    %v890 = vld [vmem:[#allocation12 + $0x500] sm:$0xff]
    %v891 = vld [vmem:[#allocation12 + $0x508] sm:$0xff]
    %v892 = vld [vmem:[#allocation12 + $0x510] sm:$0xff]
    %v893 = vld [vmem:[#allocation12 + $0x518] sm:$0xff]
    %v894 = vld [vmem:[#allocation12 + $0x520] sm:$0xff]
    %v895 = vld [vmem:[#allocation12 + $0x528] sm:$0xff]
    %v896 = vld [vmem:[#allocation12 + $0x530] sm:$0xff]
    %v897 = vld [vmem:[#allocation12 + $0x538] sm:$0xff]
    %v898 = vld [vmem:[#allocation12 + $0x540] sm:$0xff]
    %v899 = vld [vmem:[#allocation12 + $0x548] sm:$0xff]
    %v900 = vld [vmem:[#allocation12 + $0x550] sm:$0xff]
    %v901 = vld [vmem:[#allocation12 + $0x558] sm:$0xff]
    %v902 = vld [vmem:[#allocation12 + $0x560] sm:$0xff]
    %v903 = vld [vmem:[#allocation12 + $0x568] sm:$0xff]
    %v904 = vld [vmem:[#allocation12 + $0x570] sm:$0xff]
    %v905 = vld [vmem:[#allocation12 + $0x578] sm:$0xff]
    %v906 = vld [vmem:[#allocation12 + $0x580] sm:$0xff]
    %v907 = vld [vmem:[#allocation12 + $0x588] sm:$0xff]
    %v908 = vld [vmem:[#allocation12 + $0x590] sm:$0xff]
    %v909 = vld [vmem:[#allocation12 + $0x598] sm:$0xff]
    %v910 = vld [vmem:[#allocation12 + $0x5a0] sm:$0xff]
    %v911 = vld [vmem:[#allocation12 + $0x5a8] sm:$0xff]
    %v912 = vld [vmem:[#allocation12 + $0x5b0] sm:$0xff]
    %v913 = vld [vmem:[#allocation12 + $0x5b8] sm:$0xff]
    %v914 = vld [vmem:[#allocation12 + $0x5c0] sm:$0xff]
    %v915 = vld [vmem:[#allocation12 + $0x5c8] sm:$0xff]
    %v916 = vld [vmem:[#allocation12 + $0x5d0] sm:$0xff]
    %v917 = vld [vmem:[#allocation12 + $0x5d8] sm:$0xff]
    %v918 = vld [vmem:[#allocation12 + $0x5e0] sm:$0xff]
    %v919 = vld [vmem:[#allocation12 + $0x5e8] sm:$0xff]
    %v920 = vld [vmem:[#allocation12 + $0x5f0] sm:$0xff]
    %v921 = vld [vmem:[#allocation12 + $0x5f8] sm:$0xff]
    %v922 = vld [vmem:[#allocation12 + $0x600] sm:$0xff]
    %v923 = vld [vmem:[#allocation12 + $0x608] sm:$0xff]
    %v924 = vld [vmem:[#allocation12 + $0x610] sm:$0xff]
    %v925 = vld [vmem:[#allocation12 + $0x618] sm:$0xff]
    %v926 = vld [vmem:[#allocation12 + $0x620] sm:$0xff]
    %v927 = vld [vmem:[#allocation12 + $0x628] sm:$0xff]
    %v928 = vld [vmem:[#allocation12 + $0x630] sm:$0xff]
    %v929 = vld [vmem:[#allocation12 + $0x638] sm:$0xff]
    %v930 = vld [vmem:[#allocation12 + $0x640] sm:$0xff]
    %v931 = vld [vmem:[#allocation12 + $0x648] sm:$0xff]
    %v932 = vld [vmem:[#allocation12 + $0x650] sm:$0xff]
    %v933 = vld [vmem:[#allocation12 + $0x658] sm:$0xff]
    %v934 = vld [vmem:[#allocation12 + $0x660] sm:$0xff]
    %v935 = vld [vmem:[#allocation12 + $0x668] sm:$0xff]
    %v936 = vld [vmem:[#allocation12 + $0x670] sm:$0xff]
    %v937 = vld [vmem:[#allocation12 + $0x678] sm:$0xff]
    %v938 = vld [vmem:[#allocation12 + $0x680] sm:$0xff]
    %v939 = vld [vmem:[#allocation12 + $0x688] sm:$0xff]
    %v940 = vld [vmem:[#allocation12 + $0x690] sm:$0xff]
    %v941 = vld [vmem:[#allocation12 + $0x698] sm:$0xff]
    %v942 = vld [vmem:[#allocation12 + $0x6a0] sm:$0xff]
    %v943 = vld [vmem:[#allocation12 + $0x6a8] sm:$0xff]
    %v944 = vld [vmem:[#allocation12 + $0x6b0] sm:$0xff]
    %v945 = vld [vmem:[#allocation12 + $0x6b8] sm:$0xff]
    %v946 = vld [vmem:[#allocation12 + $0x6c0] sm:$0xff]
    %v947 = vld [vmem:[#allocation12 + $0x6c8] sm:$0xff]
    %v948 = vld [vmem:[#allocation12 + $0x6d0] sm:$0xff]
    %v949 = vld [vmem:[#allocation12 + $0x6d8] sm:$0xff]
    %v950 = vld [vmem:[#allocation12 + $0x6e0] sm:$0xff]
    %v951 = vld [vmem:[#allocation12 + $0x6e8] sm:$0xff]
    %v952 = vld [vmem:[#allocation12 + $0x6f0] sm:$0xff]
    %v953 = vld [vmem:[#allocation12 + $0x6f8] sm:$0xff]
    %v954 = vld [vmem:[#allocation12 + $0x700] sm:$0xff]
    %v955 = vld [vmem:[#allocation12 + $0x708] sm:$0xff]
    %v956 = vld [vmem:[#allocation12 + $0x710] sm:$0xff]
    %v957 = vld [vmem:[#allocation12 + $0x718] sm:$0xff]
    %v958 = vld [vmem:[#allocation12 + $0x720] sm:$0xff]
    %v959 = vld [vmem:[#allocation12 + $0x728] sm:$0xff]
    %v960 = vld [vmem:[#allocation12 + $0x730] sm:$0xff]
    %v961 = vld [vmem:[#allocation12 + $0x738] sm:$0xff]
    %v962 = vld [vmem:[#allocation12 + $0x740] sm:$0xff]
    %v963 = vld [vmem:[#allocation12 + $0x748] sm:$0xff]
    %v964 = vld [vmem:[#allocation12 + $0x750] sm:$0xff]
    %v965 = vld [vmem:[#allocation12 + $0x758] sm:$0xff]
    %v966 = vld [vmem:[#allocation12 + $0x760] sm:$0xff]
    %v967 = vld [vmem:[#allocation12 + $0x768] sm:$0xff]
    %v968 = vld [vmem:[#allocation12 + $0x770] sm:$0xff]
    %v969 = vld [vmem:[#allocation12 + $0x778] sm:$0xff]
    %v970 = vld [vmem:[#allocation12 + $0x780] sm:$0xff]
    %v971 = vld [vmem:[#allocation12 + $0x788] sm:$0xff]
    %v972 = vld [vmem:[#allocation12 + $0x790] sm:$0xff]
    %v973 = vld [vmem:[#allocation12 + $0x798] sm:$0xff]
    %v974 = vld [vmem:[#allocation12 + $0x7a0] sm:$0xff]
    %v975 = vld [vmem:[#allocation12 + $0x7a8] sm:$0xff]
    %v976 = vld [vmem:[#allocation12 + $0x7b0] sm:$0xff]
    %v977 = vld [vmem:[#allocation12 + $0x7b8] sm:$0xff]
    %v978 = vld [vmem:[#allocation12 + $0x7c0] sm:$0xff]
    %v979 = vld [vmem:[#allocation12 + $0x7c8] sm:$0xff]
    %v980 = vld [vmem:[#allocation12 + $0x7d0] sm:$0xff]
    %v981 = vld [vmem:[#allocation12 + $0x7d8] sm:$0xff]
    %v982 = vld [vmem:[#allocation12 + $0x7e0] sm:$0xff]
    %v983 = vld [vmem:[#allocation12 + $0x7e8] sm:$0xff]
    %v984 = vld [vmem:[#allocation12 + $0x7f0] sm:$0xff]
    %v985 = vld [vmem:[#allocation12 + $0x7f8] sm:$0xff]
    %986 = vmatprep.subr.mxu0 %v851
    %987 = vmatpush1.msra.mxu0 %v850
    %988 = vmatprep.subr.mxu0 %v843
    %989 = vmatpush1.msra.mxu0 %v842
    %990 = vmatprep.subr.mxu0 %v835
    %991 = vmatpush1.msra.mxu0 %v834
    %992 = vmatprep.subr.mxu0 %v827
    %993 = vmatpush1.msra.mxu0 %v826
    %994 = vmatprep.subr.mxu0 %v819
    %995 = vmatpush1.msra.mxu0 %v818
    %996 = vmatprep.subr.mxu0 %v811
    %997 = vmatpush1.msra.mxu0 %v810
    %998 = vmatprep.subr.mxu0 %v803
    %999 = vmatpush1.msra.mxu0 %v802
    %1000 = vmatprep.subr.mxu0 %v795
    %1001 = vmatpush1.msra.mxu0 %v794
    %1002 = vmatprep.subr.mxu0 %v787
    %1003 = vmatpush1.msra.mxu0 %v786
    %1004 = vmatprep.subr.mxu0 %v779
    %1005 = vmatpush1.msra.mxu0 %v778
    %1006 = vmatprep.subr.mxu0 %v771
    %1007 = vmatpush1.msra.mxu0 %v770
    %1008 = vmatprep.subr.mxu0 %v763
    %1009 = vmatpush1.msra.mxu0 %v762
    %1010 = vmatprep.subr.mxu0 %v755
    %1011 = vmatpush1.msra.mxu0 %v754
    %1012 = vmatprep.subr.mxu0 %v747
    %1013 = vmatpush1.msra.mxu0 %v746
    %1014 = vmatprep.subr.mxu0 %v739
    %1015 = vmatpush1.msra.mxu0 %v738
    %1016 = vmatprep.subr.mxu0 %v731
    %1017 = vmatpush1.msra.mxu0 %v730
    %1018 = vmatprep.subr.mxu0 %v979
    %1019 = vmatpush2.msra.mxu0 %v978
    %1020 = vmatprep.subr.mxu0 %v971
    %1021 = vmatpush2.msra.mxu0 %v970
    %1022 = vmatprep.subr.mxu0 %v963
    %1023 = vmatpush2.msra.mxu0 %v962
    %1024 = vmatprep.subr.mxu0 %v955
    %1025 = vmatpush2.msra.mxu0 %v954
    %1026 = vmatprep.subr.mxu0 %v947
    %1027 = vmatpush2.msra.mxu0 %v946
    %1028 = vmatprep.subr.mxu0 %v939
    %1029 = vmatpush2.msra.mxu0 %v938
    %1030 = vmatprep.subr.mxu0 %v931
    %1031 = vmatpush2.msra.mxu0 %v930
    %1032 = vmatprep.subr.mxu0 %v923
    %1033 = vmatpush2.msra.mxu0 %v922
    %1034 = vmatprep.subr.mxu0 %v915
    %1035 = vmatpush2.msra.mxu0 %v914
    %1036 = vmatprep.subr.mxu0 %v907
    %1037 = vmatpush2.msra.mxu0 %v906
    %1038 = vmatprep.subr.mxu0 %v899
    %1039 = vmatpush2.msra.mxu0 %v898
    %1040 = vmatprep.subr.mxu0 %v891
    %1041 = vmatpush2.msra.mxu0 %v890
    %1042 = vmatprep.subr.mxu0 %v883
    %1043 = vmatpush2.msra.mxu0 %v882
    %1044 = vmatprep.subr.mxu0 %v875
    %1045 = vmatpush2.msra.mxu0 %v874
    %1046 = vmatprep.subr.mxu0 %v867
    %1047 = vmatpush2.msra.mxu0 %v866
    %1048 = vmatprep.subr.mxu0 %v859
    %1049 = vmatpush2.msra.mxu0 %v858
    %1050 = vmatprep.mubr.f32.mxu0 0.0
    %1051 = vmatmul.mubr.f32.gmra.mxu0 0.0
    %v1052 = vpop.f32.mrf.mxu0
    %v1053 = vadd.f32 0.0, %v1052
    %v1054 = vpop.f32.mrf.mxu0
    %v1055 = vadd.f32 0.0, %v1054
    %1056 = vdwg.mxu0
    %1057 = vmatprep.subr.mxu0 %v853
    %1058 = vmatpush1.msra.mxu0 %v852
    %1059 = vmatprep.subr.mxu0 %v845
    %1060 = vmatpush1.msra.mxu0 %v844
    %1061 = vmatprep.subr.mxu0 %v837
    %1062 = vmatpush1.msra.mxu0 %v836
    %1063 = vmatprep.subr.mxu0 %v829
    %1064 = vmatpush1.msra.mxu0 %v828
    %1065 = vmatprep.subr.mxu0 %v821
    %1066 = vmatpush1.msra.mxu0 %v820
    %1067 = vmatprep.subr.mxu0 %v813
    %1068 = vmatpush1.msra.mxu0 %v812
    %1069 = vmatprep.subr.mxu0 %v805
    %1070 = vmatpush1.msra.mxu0 %v804
    %1071 = vmatprep.subr.mxu0 %v797
    %1072 = vmatpush1.msra.mxu0 %v796
    %1073 = vmatprep.subr.mxu0 %v789
    %1074 = vmatpush1.msra.mxu0 %v788
    %1075 = vmatprep.subr.mxu0 %v781
    %1076 = vmatpush1.msra.mxu0 %v780
    %1077 = vmatprep.subr.mxu0 %v773
    %1078 = vmatpush1.msra.mxu0 %v772
    %1079 = vmatprep.subr.mxu0 %v765
    %1080 = vmatpush1.msra.mxu0 %v764
    %1081 = vmatprep.subr.mxu0 %v757
    %1082 = vmatpush1.msra.mxu0 %v756
    %1083 = vmatprep.subr.mxu0 %v749
    %1084 = vmatpush1.msra.mxu0 %v748
    %1085 = vmatprep.subr.mxu0 %v741
    %1086 = vmatpush1.msra.mxu0 %v740
    %1087 = vmatprep.subr.mxu0 %v733
    %1088 = vmatpush1.msra.mxu0 %v732
    %1089 = vmatprep.subr.mxu0 %v981
    %1090 = vmatpush2.msra.mxu0 %v980
    %1091 = vmatprep.subr.mxu0 %v973
    %1092 = vmatpush2.msra.mxu0 %v972
    %1093 = vmatprep.subr.mxu0 %v965
    %1094 = vmatpush2.msra.mxu0 %v964
    %1095 = vmatprep.subr.mxu0 %v957
    %1096 = vmatpush2.msra.mxu0 %v956
    %1097 = vmatprep.subr.mxu0 %v949
    %1098 = vmatpush2.msra.mxu0 %v948
    %1099 = vmatprep.subr.mxu0 %v941
    %1100 = vmatpush2.msra.mxu0 %v940
    %1101 = vmatprep.subr.mxu0 %v933
    %1102 = vmatpush2.msra.mxu0 %v932
    %1103 = vmatprep.subr.mxu0 %v925
    %1104 = vmatpush2.msra.mxu0 %v924
    %1105 = vmatprep.subr.mxu0 %v917
    %1106 = vmatpush2.msra.mxu0 %v916
    %1107 = vmatprep.subr.mxu0 %v909
    %1108 = vmatpush2.msra.mxu0 %v908
    %1109 = vmatprep.subr.mxu0 %v901
    %1110 = vmatpush2.msra.mxu0 %v900
    %1111 = vmatprep.subr.mxu0 %v893
    %1112 = vmatpush2.msra.mxu0 %v892
    %1113 = vmatprep.subr.mxu0 %v885
    %1114 = vmatpush2.msra.mxu0 %v884
    %1115 = vmatprep.subr.mxu0 %v877
    %1116 = vmatpush2.msra.mxu0 %v876
    %1117 = vmatprep.subr.mxu0 %v869
    %1118 = vmatpush2.msra.mxu0 %v868
    %1119 = vmatprep.subr.mxu0 %v861
    %1120 = vmatpush2.msra.mxu0 %v860
    %1121 = vmatprep.mubr.f32.mxu0 0.0
    %1122 = vmatmul.mubr.f32.gmra.mxu0 0.0
    %v1123 = vpop.f32.mrf.mxu0
    %v1124 = vadd.f32 0.0, %v1123
    %v1125 = vpop.f32.mrf.mxu0
    %v1126 = vadd.f32 0.0, %v1125
    %1127 = vdwg.mxu0
    %1128 = vmatprep.subr.mxu0 %v855
    %1129 = vmatpush1.msra.mxu0 %v854
    %1130 = vmatprep.subr.mxu0 %v847
    %1131 = vmatpush1.msra.mxu0 %v846
    %1132 = vmatprep.subr.mxu0 %v839
    %1133 = vmatpush1.msra.mxu0 %v838
    %1134 = vmatprep.subr.mxu0 %v831
    %1135 = vmatpush1.msra.mxu0 %v830
    %1136 = vmatprep.subr.mxu0 %v823
    %1137 = vmatpush1.msra.mxu0 %v822
    %1138 = vmatprep.subr.mxu0 %v815
    %1139 = vmatpush1.msra.mxu0 %v814
    %1140 = vmatprep.subr.mxu0 %v807
    %1141 = vmatpush1.msra.mxu0 %v806
    %1142 = vmatprep.subr.mxu0 %v799
    %1143 = vmatpush1.msra.mxu0 %v798
    %1144 = vmatprep.subr.mxu0 %v791
    %1145 = vmatpush1.msra.mxu0 %v790
    %1146 = vmatprep.subr.mxu0 %v783
    %1147 = vmatpush1.msra.mxu0 %v782
    %1148 = vmatprep.subr.mxu0 %v775
    %1149 = vmatpush1.msra.mxu0 %v774
    %1150 = vmatprep.subr.mxu0 %v767
    %1151 = vmatpush1.msra.mxu0 %v766
    %1152 = vmatprep.subr.mxu0 %v759
    %1153 = vmatpush1.msra.mxu0 %v758
    %1154 = vmatprep.subr.mxu0 %v751
    %1155 = vmatpush1.msra.mxu0 %v750
    %1156 = vmatprep.subr.mxu0 %v743
    %1157 = vmatpush1.msra.mxu0 %v742
    %1158 = vmatprep.subr.mxu0 %v735
    %1159 = vmatpush1.msra.mxu0 %v734
    %1160 = vmatprep.subr.mxu0 %v983
    %1161 = vmatpush2.msra.mxu0 %v982
    %1162 = vmatprep.subr.mxu0 %v975
    %1163 = vmatpush2.msra.mxu0 %v974
    %1164 = vmatprep.subr.mxu0 %v967
    %1165 = vmatpush2.msra.mxu0 %v966
    %1166 = vmatprep.subr.mxu0 %v959
    %1167 = vmatpush2.msra.mxu0 %v958
    %1168 = vmatprep.subr.mxu0 %v951
    %1169 = vmatpush2.msra.mxu0 %v950
    %1170 = vmatprep.subr.mxu0 %v943
    %1171 = vmatpush2.msra.mxu0 %v942
    %1172 = vmatprep.subr.mxu0 %v935
    %1173 = vmatpush2.msra.mxu0 %v934
    %1174 = vmatprep.subr.mxu0 %v927
    %1175 = vmatpush2.msra.mxu0 %v926
    %1176 = vmatprep.subr.mxu0 %v919
    %1177 = vmatpush2.msra.mxu0 %v918
    %1178 = vmatprep.subr.mxu0 %v911
    %1179 = vmatpush2.msra.mxu0 %v910
    %1180 = vmatprep.subr.mxu0 %v903
    %1181 = vmatpush2.msra.mxu0 %v902
    %1182 = vmatprep.subr.mxu0 %v895
    %1183 = vmatpush2.msra.mxu0 %v894
    %1184 = vmatprep.subr.mxu0 %v887
    %1185 = vmatpush2.msra.mxu0 %v886
    %1186 = vmatprep.subr.mxu0 %v879
    %1187 = vmatpush2.msra.mxu0 %v878
    %1188 = vmatprep.subr.mxu0 %v871
    %1189 = vmatpush2.msra.mxu0 %v870
    %1190 = vmatprep.subr.mxu0 %v863
    %1191 = vmatpush2.msra.mxu0 %v862
    %1192 = vmatprep.mubr.f32.mxu0 0.0
    %1193 = vmatmul.mubr.f32.gmra.mxu0 0.0
    %v1194 = vpop.f32.mrf.mxu0
    %v1195 = vadd.f32 0.0, %v1194
    %v1196 = vpop.f32.mrf.mxu0
    %v1197 = vadd.f32 0.0, %v1196
    %1198 = vdwg.mxu0
    %1199 = vmatprep.subr.mxu0 %v857
    %1200 = vmatpush1.msra.mxu0 %v856
    %1201 = vmatprep.subr.mxu0 %v849
    %1202 = vmatpush1.msra.mxu0 %v848
    %1203 = vmatprep.subr.mxu0 %v841
    %1204 = vmatpush1.msra.mxu0 %v840
    %1205 = vmatprep.subr.mxu0 %v833
    %1206 = vmatpush1.msra.mxu0 %v832
    %1207 = vmatprep.subr.mxu0 %v825
    %1208 = vmatpush1.msra.mxu0 %v824
    %1209 = vmatprep.subr.mxu0 %v817
    %1210 = vmatpush1.msra.mxu0 %v816
    %1211 = vmatprep.subr.mxu0 %v809
    %1212 = vmatpush1.msra.mxu0 %v808
    %1213 = vmatprep.subr.mxu0 %v801
    %1214 = vmatpush1.msra.mxu0 %v800
    %1215 = vmatprep.subr.mxu0 %v793
    %1216 = vmatpush1.msra.mxu0 %v792
    %1217 = vmatprep.subr.mxu0 %v785
    %1218 = vmatpush1.msra.mxu0 %v784
    %1219 = vmatprep.subr.mxu0 %v777
    %1220 = vmatpush1.msra.mxu0 %v776
    %1221 = vmatprep.subr.mxu0 %v769
    %1222 = vmatpush1.msra.mxu0 %v768
    %1223 = vmatprep.subr.mxu0 %v761
    %1224 = vmatpush1.msra.mxu0 %v760
    %1225 = vmatprep.subr.mxu0 %v753
    %1226 = vmatpush1.msra.mxu0 %v752
    %1227 = vmatprep.subr.mxu0 %v745
    %1228 = vmatpush1.msra.mxu0 %v744
    %1229 = vmatprep.subr.mxu0 %v737
    %1230 = vmatpush1.msra.mxu0 %v736
    %1231 = vmatprep.subr.mxu0 %v985
    %1232 = vmatpush2.msra.mxu0 %v984
    %1233 = vmatprep.subr.mxu0 %v977
    %1234 = vmatpush2.msra.mxu0 %v976
    %1235 = vmatprep.subr.mxu0 %v969
    %1236 = vmatpush2.msra.mxu0 %v968
    %1237 = vmatprep.subr.mxu0 %v961
    %1238 = vmatpush2.msra.mxu0 %v960
    %1239 = vmatprep.subr.mxu0 %v953
    %1240 = vmatpush2.msra.mxu0 %v952
    %1241 = vmatprep.subr.mxu0 %v945
    %1242 = vmatpush2.msra.mxu0 %v944
    %1243 = vmatprep.subr.mxu0 %v937
    %1244 = vmatpush2.msra.mxu0 %v936
    %1245 = vmatprep.subr.mxu0 %v929
    %1246 = vmatpush2.msra.mxu0 %v928
    %1247 = vmatprep.subr.mxu0 %v921
    %1248 = vmatpush2.msra.mxu0 %v920
    %1249 = vmatprep.subr.mxu0 %v913
    %1250 = vmatpush2.msra.mxu0 %v912
    %1251 = vmatprep.subr.mxu0 %v905
    %1252 = vmatpush2.msra.mxu0 %v904
    %1253 = vmatprep.subr.mxu0 %v897
    %1254 = vmatpush2.msra.mxu0 %v896
    %1255 = vmatprep.subr.mxu0 %v889
    %1256 = vmatpush2.msra.mxu0 %v888
    %1257 = vmatprep.subr.mxu0 %v881
    %1258 = vmatpush2.msra.mxu0 %v880
    %1259 = vmatprep.subr.mxu0 %v873
    %1260 = vmatpush2.msra.mxu0 %v872
    %1261 = vmatprep.subr.mxu0 %v865
    %1262 = vmatpush2.msra.mxu0 %v864
    %1263 = vmatprep.mubr.f32.mxu0 0.0
    %1264 = vmatmul.mubr.f32.gmra.mxu0 0.0
    %v1265 = vpop.f32.mrf.mxu0
    %v1266 = vadd.f32 0.0, %v1265
    %v1267 = vpop.f32.mrf.mxu0
    %v1268 = vadd.f32 0.0, %v1267
    %1269 = vdwg.mxu0
    %v1270 = vld [vmem:[#allocation2] sm:$0xff]
    %v1271 = vld [vmem:[#allocation2 + $0x8] sm:$0xff]
    %v1272 = vld [vmem:[#allocation2 + $0x10] sm:$0xff]
    %v1273 = vld [vmem:[#allocation2 + $0x18] sm:$0xff]
    %v1274 = vadd.f32 %v1270, %v1053
    %v1275 = vadd.f32 %v1271, %v1055
    %v1276 = vadd.f32 %v1272, %v1124
    %v1277 = vadd.f32 %v1273, %v1126
    %v1278 = vxor.u32 %v1274, 2147483648
    %v1279 = vmul.f32 %v1278, 1.442695
    %v1280 = vpow.pop %v1279
    %v1281 = vadd.f32 %v1280, 1.0
    %v1282 = vrcp.pop %v1281
    %v1283 = vmul.f32 1.0, %v1282
    %v1284 = vxor.u32 %v1275, 2147483648
    %v1285 = vmul.f32 %v1284, 1.442695
    %v1286 = vpow.pop %v1285
    %v1287 = vadd.f32 %v1286, 1.0
    %v1288 = vrcp.pop %v1287
    %v1289 = vmul.f32 1.0, %v1288
    %v1290 = vtanh.pop %v1276
    %v1291 = vxor.u32 %v1277, 2147483648
    %v1292 = vmul.f32 %v1291, 1.442695
    %v1293 = vpow.pop %v1292
    %v1294 = vadd.f32 %v1293, 1.0
    %v1295 = vrcp.pop %v1294
    %v1296 = vmul.f32 1.0, %v1295
    %v1297 = vmul.f32 %v1289, 0.0
    %v1298 = vmul.f32 %v1283, %v1290
    %v1299 = vadd.f32 %v1297, %v1298
    %v1300 = vtanh.pop %v1299
    %v1301 = vmul.f32 %v1296, %v1300
    %s1302 = scalar_lea.vmem [#allocation3], 224
    %v1303 = vld [vmem:[%s1302] sm:$0xff]
    %v1304 = vld [vmem:[%s1302 + $0x8] sm:$0xff]
    %v1305 = vld [vmem:[%s1302 + $0x10] sm:$0xff]
    %v1306 = vld [vmem:[%s1302 + $0x18] sm:$0xff]
    %v1307 = vadd.f32 %v1303, %v1195
    %v1308 = vadd.f32 %v1304, %v1197
    %v1309 = vadd.f32 %v1305, %v1266
    %v1310 = vadd.f32 %v1306, %v1268
    %v1311 = vxor.u32 %v1307, 2147483648
    %v1312 = vmul.f32 %v1311, 1.442695
    %v1313 = vpow.pop %v1312
    %v1314 = vadd.f32 %v1313, 1.0
    %v1315 = vrcp.pop %v1314
    %v1316 = vmul.f32 1.0, %v1315
    %v1317 = vxor.u32 %v1308, 2147483648
    %v1318 = vmul.f32 %v1317, 1.442695
    %v1319 = vpow.pop %v1318
    %v1320 = vadd.f32 %v1319, 1.0
    %v1321 = vrcp.pop %v1320
    %v1322 = vmul.f32 1.0, %v1321
    %v1323 = vtanh.pop %v1309
    %v1324 = vxor.u32 %v1310, 2147483648
    %v1325 = vmul.f32 %v1324, 1.442695
    %v1326 = vpow.pop %v1325
    %v1327 = vadd.f32 %v1326, 1.0
    %v1328 = vrcp.pop %v1327
    %v1329 = vmul.f32 1.0, %v1328
    %v1330 = vmul.f32 %v1322, 0.0
    %v1331 = vmul.f32 %v1316, %v1323
    %v1332 = vadd.f32 %v1330, %v1331
    %v1333 = vtanh.pop %v1332
    %v1334 = vmul.f32 %v1329, %v1333
    %1335 = vst [vmem:[#allocation4] sm:$0xff] %v1301
    %s1336 = scalar_lea.vmem [#allocation5], 56
    %1337 = vst [vmem:[%s1336] sm:$0xff] %v1334
    %1338 = vmatprep.subr.mxu0 %v851
    %1339 = vmatpush1.msra.mxu0 %v850
    %1340 = vmatprep.subr.mxu0 %v843
    %1341 = vmatpush1.msra.mxu0 %v842
    %1342 = vmatprep.subr.mxu0 %v835
    %1343 = vmatpush1.msra.mxu0 %v834
    %1344 = vmatprep.subr.mxu0 %v827
    %1345 = vmatpush1.msra.mxu0 %v826
    %1346 = vmatprep.subr.mxu0 %v819
    %1347 = vmatpush1.msra.mxu0 %v818
    %1348 = vmatprep.subr.mxu0 %v811
    %1349 = vmatpush1.msra.mxu0 %v810
    %1350 = vmatprep.subr.mxu0 %v803
    %1351 = vmatpush1.msra.mxu0 %v802
    %1352 = vmatprep.subr.mxu0 %v795
    %1353 = vmatpush1.msra.mxu0 %v794
    %1354 = vmatprep.subr.mxu0 %v787
    %1355 = vmatpush1.msra.mxu0 %v786
    %1356 = vmatprep.subr.mxu0 %v779
    %1357 = vmatpush1.msra.mxu0 %v778
    %1358 = vmatprep.subr.mxu0 %v771
    %1359 = vmatpush1.msra.mxu0 %v770
    %1360 = vmatprep.subr.mxu0 %v763
    %1361 = vmatpush1.msra.mxu0 %v762
    %1362 = vmatprep.subr.mxu0 %v755
    %1363 = vmatpush1.msra.mxu0 %v754
    %1364 = vmatprep.subr.mxu0 %v747
    %1365 = vmatpush1.msra.mxu0 %v746
    %1366 = vmatprep.subr.mxu0 %v739
    %1367 = vmatpush1.msra.mxu0 %v738
    %1368 = vmatprep.subr.mxu0 %v731
    %1369 = vmatpush1.msra.mxu0 %v730
    %1370 = vmatprep.subr.mxu0 %v979
    %1371 = vmatpush2.msra.mxu0 %v978
    %1372 = vmatprep.subr.mxu0 %v971
    %1373 = vmatpush2.msra.mxu0 %v970
    %1374 = vmatprep.subr.mxu0 %v963
    %1375 = vmatpush2.msra.mxu0 %v962
    %1376 = vmatprep.subr.mxu0 %v955
    %1377 = vmatpush2.msra.mxu0 %v954
    %1378 = vmatprep.subr.mxu0 %v947
    %1379 = vmatpush2.msra.mxu0 %v946
    %1380 = vmatprep.subr.mxu0 %v939
    %1381 = vmatpush2.msra.mxu0 %v938
    %1382 = vmatprep.subr.mxu0 %v931
    %1383 = vmatpush2.msra.mxu0 %v930
    %1384 = vmatprep.subr.mxu0 %v923
    %1385 = vmatpush2.msra.mxu0 %v922
    %1386 = vmatprep.subr.mxu0 %v915
    %1387 = vmatpush2.msra.mxu0 %v914
    %1388 = vmatprep.subr.mxu0 %v907
    %1389 = vmatpush2.msra.mxu0 %v906
    %1390 = vmatprep.subr.mxu0 %v899
    %1391 = vmatpush2.msra.mxu0 %v898
    %1392 = vmatprep.subr.mxu0 %v891
    %1393 = vmatpush2.msra.mxu0 %v890
    %1394 = vmatprep.subr.mxu0 %v883
    %1395 = vmatpush2.msra.mxu0 %v882
    %1396 = vmatprep.subr.mxu0 %v875
    %1397 = vmatpush2.msra.mxu0 %v874
    %1398 = vmatprep.subr.mxu0 %v867
    %1399 = vmatpush2.msra.mxu0 %v866
    %1400 = vmatprep.subr.mxu0 %v859
    %1401 = vmatpush2.msra.mxu0 %v858
    %1402 = vmatprep.mubr.f32.mxu0 %v1334
    %1403 = vmatmul.mubr.f32.gmra.mxu0 %v1301
    %v1404 = vpop.f32.mrf.mxu0
    %v1405 = vadd.f32 0.0, %v1404
    %v1406 = vpop.f32.mrf.mxu0
    %v1407 = vadd.f32 0.0, %v1406
    %1408 = vdwg.mxu0
    %1409 = vmatprep.subr.mxu0 %v853
    %1410 = vmatpush1.msra.mxu0 %v852
    %1411 = vmatprep.subr.mxu0 %v845
    %1412 = vmatpush1.msra.mxu0 %v844
    %1413 = vmatprep.subr.mxu0 %v837
    %1414 = vmatpush1.msra.mxu0 %v836
    %1415 = vmatprep.subr.mxu0 %v829
    %1416 = vmatpush1.msra.mxu0 %v828
    %1417 = vmatprep.subr.mxu0 %v821
    %1418 = vmatpush1.msra.mxu0 %v820
    %1419 = vmatprep.subr.mxu0 %v813
    %1420 = vmatpush1.msra.mxu0 %v812
    %1421 = vmatprep.subr.mxu0 %v805
    %1422 = vmatpush1.msra.mxu0 %v804
    %1423 = vmatprep.subr.mxu0 %v797
    %1424 = vmatpush1.msra.mxu0 %v796
    %1425 = vmatprep.subr.mxu0 %v789
    %1426 = vmatpush1.msra.mxu0 %v788
    %1427 = vmatprep.subr.mxu0 %v781
    %1428 = vmatpush1.msra.mxu0 %v780
    %1429 = vmatprep.subr.mxu0 %v773
    %1430 = vmatpush1.msra.mxu0 %v772
    %1431 = vmatprep.subr.mxu0 %v765
    %1432 = vmatpush1.msra.mxu0 %v764
    %1433 = vmatprep.subr.mxu0 %v757
    %1434 = vmatpush1.msra.mxu0 %v756
    %1435 = vmatprep.subr.mxu0 %v749
    %1436 = vmatpush1.msra.mxu0 %v748
    %1437 = vmatprep.subr.mxu0 %v741
    %1438 = vmatpush1.msra.mxu0 %v740
    %1439 = vmatprep.subr.mxu0 %v733
    %1440 = vmatpush1.msra.mxu0 %v732
    %1441 = vmatprep.subr.mxu0 %v981
    %1442 = vmatpush2.msra.mxu0 %v980
    %1443 = vmatprep.subr.mxu0 %v973
    %1444 = vmatpush2.msra.mxu0 %v972
    %1445 = vmatprep.subr.mxu0 %v965
    %1446 = vmatpush2.msra.mxu0 %v964
    %1447 = vmatprep.subr.mxu0 %v957
    %1448 = vmatpush2.msra.mxu0 %v956
    %1449 = vmatprep.subr.mxu0 %v949
    %1450 = vmatpush2.msra.mxu0 %v948
    %1451 = vmatprep.subr.mxu0 %v941
    %1452 = vmatpush2.msra.mxu0 %v940
    %1453 = vmatprep.subr.mxu0 %v933
    %1454 = vmatpush2.msra.mxu0 %v932
    %1455 = vmatprep.subr.mxu0 %v925
    %1456 = vmatpush2.msra.mxu0 %v924
    %1457 = vmatprep.subr.mxu0 %v917
    %1458 = vmatpush2.msra.mxu0 %v916
    %1459 = vmatprep.subr.mxu0 %v909
    %1460 = vmatpush2.msra.mxu0 %v908
    %1461 = vmatprep.subr.mxu0 %v901
    %1462 = vmatpush2.msra.mxu0 %v900
    %1463 = vmatprep.subr.mxu0 %v893
    %1464 = vmatpush2.msra.mxu0 %v892
    %1465 = vmatprep.subr.mxu0 %v885
    %1466 = vmatpush2.msra.mxu0 %v884
    %1467 = vmatprep.subr.mxu0 %v877
    %1468 = vmatpush2.msra.mxu0 %v876
    %1469 = vmatprep.subr.mxu0 %v869
    %1470 = vmatpush2.msra.mxu0 %v868
    %1471 = vmatprep.subr.mxu0 %v861
    %1472 = vmatpush2.msra.mxu0 %v860
    %1473 = vmatprep.mubr.f32.mxu0 %v1334
    %1474 = vmatmul.mubr.f32.gmra.mxu0 %v1301
    %v1475 = vpop.f32.mrf.mxu0
    %v1476 = vadd.f32 0.0, %v1475
    %v1477 = vpop.f32.mrf.mxu0
    %v1478 = vadd.f32 0.0, %v1477
    %1479 = vdwg.mxu0
    %1480 = vmatprep.subr.mxu0 %v855
    %1481 = vmatpush1.msra.mxu0 %v854
    %1482 = vmatprep.subr.mxu0 %v847
    %1483 = vmatpush1.msra.mxu0 %v846
    %1484 = vmatprep.subr.mxu0 %v839
    %1485 = vmatpush1.msra.mxu0 %v838
    %1486 = vmatprep.subr.mxu0 %v831
    %1487 = vmatpush1.msra.mxu0 %v830
    %1488 = vmatprep.subr.mxu0 %v823
    %1489 = vmatpush1.msra.mxu0 %v822
    %1490 = vmatprep.subr.mxu0 %v815
    %1491 = vmatpush1.msra.mxu0 %v814
    %1492 = vmatprep.subr.mxu0 %v807
    %1493 = vmatpush1.msra.mxu0 %v806
    %1494 = vmatprep.subr.mxu0 %v799
    %1495 = vmatpush1.msra.mxu0 %v798
    %1496 = vmatprep.subr.mxu0 %v791
    %1497 = vmatpush1.msra.mxu0 %v790
    %1498 = vmatprep.subr.mxu0 %v783
    %1499 = vmatpush1.msra.mxu0 %v782
    %1500 = vmatprep.subr.mxu0 %v775
    %1501 = vmatpush1.msra.mxu0 %v774
    %1502 = vmatprep.subr.mxu0 %v767
    %1503 = vmatpush1.msra.mxu0 %v766
    %1504 = vmatprep.subr.mxu0 %v759
    %1505 = vmatpush1.msra.mxu0 %v758
    %1506 = vmatprep.subr.mxu0 %v751
    %1507 = vmatpush1.msra.mxu0 %v750
    %1508 = vmatprep.subr.mxu0 %v743
    %1509 = vmatpush1.msra.mxu0 %v742
    %1510 = vmatprep.subr.mxu0 %v735
    %1511 = vmatpush1.msra.mxu0 %v734
    %1512 = vmatprep.subr.mxu0 %v983
    %1513 = vmatpush2.msra.mxu0 %v982
    %1514 = vmatprep.subr.mxu0 %v975
    %1515 = vmatpush2.msra.mxu0 %v974
    %1516 = vmatprep.subr.mxu0 %v967
    %1517 = vmatpush2.msra.mxu0 %v966
    %1518 = vmatprep.subr.mxu0 %v959
    %1519 = vmatpush2.msra.mxu0 %v958
    %1520 = vmatprep.subr.mxu0 %v951
    %1521 = vmatpush2.msra.mxu0 %v950
    %1522 = vmatprep.subr.mxu0 %v943
    %1523 = vmatpush2.msra.mxu0 %v942
    %1524 = vmatprep.subr.mxu0 %v935
    %1525 = vmatpush2.msra.mxu0 %v934
    %1526 = vmatprep.subr.mxu0 %v927
    %1527 = vmatpush2.msra.mxu0 %v926
    %1528 = vmatprep.subr.mxu0 %v919
    %1529 = vmatpush2.msra.mxu0 %v918
    %1530 = vmatprep.subr.mxu0 %v911
    %1531 = vmatpush2.msra.mxu0 %v910
    %1532 = vmatprep.subr.mxu0 %v903
    %1533 = vmatpush2.msra.mxu0 %v902
    %1534 = vmatprep.subr.mxu0 %v895
    %1535 = vmatpush2.msra.mxu0 %v894
    %1536 = vmatprep.subr.mxu0 %v887
    %1537 = vmatpush2.msra.mxu0 %v886
    %1538 = vmatprep.subr.mxu0 %v879
    %1539 = vmatpush2.msra.mxu0 %v878
    %1540 = vmatprep.subr.mxu0 %v871
    %1541 = vmatpush2.msra.mxu0 %v870
    %1542 = vmatprep.subr.mxu0 %v863
    %1543 = vmatpush2.msra.mxu0 %v862
    %1544 = vmatprep.mubr.f32.mxu0 %v1334
    %1545 = vmatmul.mubr.f32.gmra.mxu0 %v1301
    %v1546 = vpop.f32.mrf.mxu0
    %v1547 = vadd.f32 0.0, %v1546
    %v1548 = vpop.f32.mrf.mxu0
    %v1549 = vadd.f32 0.0, %v1548
    %1550 = vdwg.mxu0
    %1551 = vmatprep.subr.mxu0 %v857
    %1552 = vmatpush1.msra.mxu0 %v856
    %1553 = vmatprep.subr.mxu0 %v849
    %1554 = vmatpush1.msra.mxu0 %v848
    %1555 = vmatprep.subr.mxu0 %v841
    %1556 = vmatpush1.msra.mxu0 %v840
    %1557 = vmatprep.subr.mxu0 %v833
    %1558 = vmatpush1.msra.mxu0 %v832
    %1559 = vmatprep.subr.mxu0 %v825
    %1560 = vmatpush1.msra.mxu0 %v824
    %1561 = vmatprep.subr.mxu0 %v817
    %1562 = vmatpush1.msra.mxu0 %v816
    %1563 = vmatprep.subr.mxu0 %v809
    %1564 = vmatpush1.msra.mxu0 %v808
    %1565 = vmatprep.subr.mxu0 %v801
    %1566 = vmatpush1.msra.mxu0 %v800
    %1567 = vmatprep.subr.mxu0 %v793
    %1568 = vmatpush1.msra.mxu0 %v792
    %1569 = vmatprep.subr.mxu0 %v785
    %1570 = vmatpush1.msra.mxu0 %v784
    %1571 = vmatprep.subr.mxu0 %v777
    %1572 = vmatpush1.msra.mxu0 %v776
    %1573 = vmatprep.subr.mxu0 %v769
    %1574 = vmatpush1.msra.mxu0 %v768
    %1575 = vmatprep.subr.mxu0 %v761
    %1576 = vmatpush1.msra.mxu0 %v760
    %1577 = vmatprep.subr.mxu0 %v753
    %1578 = vmatpush1.msra.mxu0 %v752
    %1579 = vmatprep.subr.mxu0 %v745
    %1580 = vmatpush1.msra.mxu0 %v744
    %1581 = vmatprep.subr.mxu0 %v737
    %1582 = vmatpush1.msra.mxu0 %v736
    %1583 = vmatprep.subr.mxu0 %v985
    %1584 = vmatpush2.msra.mxu0 %v984
    %1585 = vmatprep.subr.mxu0 %v977
    %1586 = vmatpush2.msra.mxu0 %v976
    %1587 = vmatprep.subr.mxu0 %v969
    %1588 = vmatpush2.msra.mxu0 %v968
    %1589 = vmatprep.subr.mxu0 %v961
    %1590 = vmatpush2.msra.mxu0 %v960
    %1591 = vmatprep.subr.mxu0 %v953
    %1592 = vmatpush2.msra.mxu0 %v952
    %1593 = vmatprep.subr.mxu0 %v945
    %1594 = vmatpush2.msra.mxu0 %v944
    %1595 = vmatprep.subr.mxu0 %v937
    %1596 = vmatpush2.msra.mxu0 %v936
    %1597 = vmatprep.subr.mxu0 %v929
    %1598 = vmatpush2.msra.mxu0 %v928
    %1599 = vmatprep.subr.mxu0 %v921
    %1600 = vmatpush2.msra.mxu0 %v920
    %1601 = vmatprep.subr.mxu0 %v913
    %1602 = vmatpush2.msra.mxu0 %v912
    %1603 = vmatprep.subr.mxu0 %v905
    %1604 = vmatpush2.msra.mxu0 %v904
    %1605 = vmatprep.subr.mxu0 %v897
    %1606 = vmatpush2.msra.mxu0 %v896
    %1607 = vmatprep.subr.mxu0 %v889
    %1608 = vmatpush2.msra.mxu0 %v888
    %1609 = vmatprep.subr.mxu0 %v881
    %1610 = vmatpush2.msra.mxu0 %v880
    %1611 = vmatprep.subr.mxu0 %v873
    %1612 = vmatpush2.msra.mxu0 %v872
    %1613 = vmatprep.subr.mxu0 %v865
    %1614 = vmatpush2.msra.mxu0 %v864
    %1615 = vmatprep.mubr.f32.mxu0 %v1334
    %1616 = vmatmul.mubr.f32.gmra.mxu0 %v1301
    %v1617 = vpop.f32.mrf.mxu0
    %v1618 = vadd.f32 0.0, %v1617
    %v1619 = vpop.f32.mrf.mxu0
    %v1620 = vadd.f32 0.0, %v1619
    %1621 = vdwg.mxu0
    %s1622 = scalar_lea.vmem [#allocation2], 32
    %v1623 = vld [vmem:[%s1622] sm:$0xff]
    %v1624 = vld [vmem:[%s1622 + $0x8] sm:$0xff]
    %v1625 = vld [vmem:[%s1622 + $0x10] sm:$0xff]
    %v1626 = vld [vmem:[%s1622 + $0x18] sm:$0xff]
    %v1627 = vadd.f32 %v1623, %v1405
    %v1628 = vadd.f32 %v1624, %v1407
    %v1629 = vadd.f32 %v1625, %v1476
    %v1630 = vadd.f32 %v1626, %v1478
    %v1631 = vxor.u32 %v1627, 2147483648
    %v1632 = vmul.f32 %v1631, 1.442695
    %v1633 = vpow.pop %v1632
    %v1634 = vadd.f32 %v1633, 1.0
    %v1635 = vrcp.pop %v1634
    %v1636 = vmul.f32 1.0, %v1635
    %v1637 = vxor.u32 %v1628, 2147483648
    %v1638 = vmul.f32 %v1637, 1.442695
    %v1639 = vpow.pop %v1638
    %v1640 = vadd.f32 %v1639, 1.0
    %v1641 = vrcp.pop %v1640
    %v1642 = vmul.f32 1.0, %v1641
    %v1643 = vtanh.pop %v1629
    %v1644 = vxor.u32 %v1630, 2147483648
    %v1645 = vmul.f32 %v1644, 1.442695
    %v1646 = vpow.pop %v1645
    %v1647 = vadd.f32 %v1646, 1.0
    %v1648 = vrcp.pop %v1647
    %v1649 = vmul.f32 1.0, %v1648
    %v1650 = vmul.f32 %v1642, %v1299
    %v1651 = vmul.f32 %v1636, %v1643
    %v1652 = vadd.f32 %v1650, %v1651
    %v1653 = vtanh.pop %v1652
    %v1654 = vmul.f32 %v1649, %v1653
    %s1655 = scalar_lea.vmem [#allocation3], 192
    %v1656 = vld [vmem:[%s1655] sm:$0xff]
    %v1657 = vld [vmem:[%s1655 + $0x8] sm:$0xff]
    %v1658 = vld [vmem:[%s1655 + $0x10] sm:$0xff]
    %v1659 = vld [vmem:[%s1655 + $0x18] sm:$0xff]
    %v1660 = vadd.f32 %v1656, %v1547
    %v1661 = vadd.f32 %v1657, %v1549
    %v1662 = vadd.f32 %v1658, %v1618
    %v1663 = vadd.f32 %v1659, %v1620
    %v1664 = vxor.u32 %v1660, 2147483648
    %v1665 = vmul.f32 %v1664, 1.442695
    %v1666 = vpow.pop %v1665
    %v1667 = vadd.f32 %v1666, 1.0
    %v1668 = vrcp.pop %v1667
    %v1669 = vmul.f32 1.0, %v1668
    %v1670 = vxor.u32 %v1661, 2147483648
    %v1671 = vmul.f32 %v1670, 1.442695
    %v1672 = vpow.pop %v1671
    %v1673 = vadd.f32 %v1672, 1.0
    %v1674 = vrcp.pop %v1673
    %v1675 = vmul.f32 1.0, %v1674
    %v1676 = vtanh.pop %v1662
    %v1677 = vxor.u32 %v1663, 2147483648
    %v1678 = vmul.f32 %v1677, 1.442695
    %v1679 = vpow.pop %v1678
    %v1680 = vadd.f32 %v1679, 1.0
    %v1681 = vrcp.pop %v1680
    %v1682 = vmul.f32 1.0, %v1681
    %v1683 = vmul.f32 %v1675, %v1332
    %v1684 = vmul.f32 %v1669, %v1676
    %v1685 = vadd.f32 %v1683, %v1684
    %v1686 = vtanh.pop %v1685
    %v1687 = vmul.f32 %v1682, %v1686
    %s1688 = scalar_lea.vmem [#allocation4], 8
    %1689 = vst [vmem:[%s1688] sm:$0xff] %v1654
    %s1690 = scalar_lea.vmem [#allocation5], 48
    %1691 = vst [vmem:[%s1690] sm:$0xff] %v1687
    %1692 = vmatprep.subr.mxu0 %v851
    %1693 = vmatpush1.msra.mxu0 %v850
    %1694 = vmatprep.subr.mxu0 %v843
    %1695 = vmatpush1.msra.mxu0 %v842
    %1696 = vmatprep.subr.mxu0 %v835
    %1697 = vmatpush1.msra.mxu0 %v834
    %1698 = vmatprep.subr.mxu0 %v827
    %1699 = vmatpush1.msra.mxu0 %v826
    %1700 = vmatprep.subr.mxu0 %v819
    %1701 = vmatpush1.msra.mxu0 %v818
    %1702 = vmatprep.subr.mxu0 %v811
    %1703 = vmatpush1.msra.mxu0 %v810
    %1704 = vmatprep.subr.mxu0 %v803
    %1705 = vmatpush1.msra.mxu0 %v802
    %1706 = vmatprep.subr.mxu0 %v795
    %1707 = vmatpush1.msra.mxu0 %v794
    %1708 = vmatprep.subr.mxu0 %v787
    %1709 = vmatpush1.msra.mxu0 %v786
    %1710 = vmatprep.subr.mxu0 %v779
    %1711 = vmatpush1.msra.mxu0 %v778
    %1712 = vmatprep.subr.mxu0 %v771
    %1713 = vmatpush1.msra.mxu0 %v770
    %1714 = vmatprep.subr.mxu0 %v763
    %1715 = vmatpush1.msra.mxu0 %v762
    %1716 = vmatprep.subr.mxu0 %v755
    %1717 = vmatpush1.msra.mxu0 %v754
    %1718 = vmatprep.subr.mxu0 %v747
    %1719 = vmatpush1.msra.mxu0 %v746
    %1720 = vmatprep.subr.mxu0 %v739
    %1721 = vmatpush1.msra.mxu0 %v738
    %1722 = vmatprep.subr.mxu0 %v731
    %1723 = vmatpush1.msra.mxu0 %v730
    %1724 = vmatprep.subr.mxu0 %v979
    %1725 = vmatpush2.msra.mxu0 %v978
    %1726 = vmatprep.subr.mxu0 %v971
    %1727 = vmatpush2.msra.mxu0 %v970
    %1728 = vmatprep.subr.mxu0 %v963
    %1729 = vmatpush2.msra.mxu0 %v962
    %1730 = vmatprep.subr.mxu0 %v955
    %1731 = vmatpush2.msra.mxu0 %v954
    %1732 = vmatprep.subr.mxu0 %v947
    %1733 = vmatpush2.msra.mxu0 %v946
    %1734 = vmatprep.subr.mxu0 %v939
    %1735 = vmatpush2.msra.mxu0 %v938
    %1736 = vmatprep.subr.mxu0 %v931
    %1737 = vmatpush2.msra.mxu0 %v930
    %1738 = vmatprep.subr.mxu0 %v923
    %1739 = vmatpush2.msra.mxu0 %v922
    %1740 = vmatprep.subr.mxu0 %v915
    %1741 = vmatpush2.msra.mxu0 %v914
    %1742 = vmatprep.subr.mxu0 %v907
    %1743 = vmatpush2.msra.mxu0 %v906
    %1744 = vmatprep.subr.mxu0 %v899
    %1745 = vmatpush2.msra.mxu0 %v898
    %1746 = vmatprep.subr.mxu0 %v891
    %1747 = vmatpush2.msra.mxu0 %v890
    %1748 = vmatprep.subr.mxu0 %v883
    %1749 = vmatpush2.msra.mxu0 %v882
    %1750 = vmatprep.subr.mxu0 %v875
    %1751 = vmatpush2.msra.mxu0 %v874
    %1752 = vmatprep.subr.mxu0 %v867
    %1753 = vmatpush2.msra.mxu0 %v866
    %1754 = vmatprep.subr.mxu0 %v859
    %1755 = vmatpush2.msra.mxu0 %v858
    %1756 = vmatprep.mubr.f32.mxu0 %v1687
    %1757 = vmatmul.mubr.f32.gmra.mxu0 %v1654
    %v1758 = vpop.f32.mrf.mxu0
    %v1759 = vadd.f32 0.0, %v1758
    %v1760 = vpop.f32.mrf.mxu0
    %v1761 = vadd.f32 0.0, %v1760
    %1762 = vdwg.mxu0
    %1763 = vmatprep.subr.mxu0 %v853
    %1764 = vmatpush1.msra.mxu0 %v852
    %1765 = vmatprep.subr.mxu0 %v845
    %1766 = vmatpush1.msra.mxu0 %v844
    %1767 = vmatprep.subr.mxu0 %v837
    %1768 = vmatpush1.msra.mxu0 %v836
    %1769 = vmatprep.subr.mxu0 %v829
    %1770 = vmatpush1.msra.mxu0 %v828
    %1771 = vmatprep.subr.mxu0 %v821
    %1772 = vmatpush1.msra.mxu0 %v820
    %1773 = vmatprep.subr.mxu0 %v813
    %1774 = vmatpush1.msra.mxu0 %v812
    %1775 = vmatprep.subr.mxu0 %v805
    %1776 = vmatpush1.msra.mxu0 %v804
    %1777 = vmatprep.subr.mxu0 %v797
    %1778 = vmatpush1.msra.mxu0 %v796
    %1779 = vmatprep.subr.mxu0 %v789
    %1780 = vmatpush1.msra.mxu0 %v788
    %1781 = vmatprep.subr.mxu0 %v781
    %1782 = vmatpush1.msra.mxu0 %v780
    %1783 = vmatprep.subr.mxu0 %v773
    %1784 = vmatpush1.msra.mxu0 %v772
    %1785 = vmatprep.subr.mxu0 %v765
    %1786 = vmatpush1.msra.mxu0 %v764
    %1787 = vmatprep.subr.mxu0 %v757
    %1788 = vmatpush1.msra.mxu0 %v756
    %1789 = vmatprep.subr.mxu0 %v749
    %1790 = vmatpush1.msra.mxu0 %v748
    %1791 = vmatprep.subr.mxu0 %v741
    %1792 = vmatpush1.msra.mxu0 %v740
    %1793 = vmatprep.subr.mxu0 %v733
    %1794 = vmatpush1.msra.mxu0 %v732
    %1795 = vmatprep.subr.mxu0 %v981
    %1796 = vmatpush2.msra.mxu0 %v980
    %1797 = vmatprep.subr.mxu0 %v973
    %1798 = vmatpush2.msra.mxu0 %v972
    %1799 = vmatprep.subr.mxu0 %v965
    %1800 = vmatpush2.msra.mxu0 %v964
    %1801 = vmatprep.subr.mxu0 %v957
    %1802 = vmatpush2.msra.mxu0 %v956
    %1803 = vmatprep.subr.mxu0 %v949
    %1804 = vmatpush2.msra.mxu0 %v948
    %1805 = vmatprep.subr.mxu0 %v941
    %1806 = vmatpush2.msra.mxu0 %v940
    %1807 = vmatprep.subr.mxu0 %v933
    %1808 = vmatpush2.msra.mxu0 %v932
    %1809 = vmatprep.subr.mxu0 %v925
    %1810 = vmatpush2.msra.mxu0 %v924
    %1811 = vmatprep.subr.mxu0 %v917
    %1812 = vmatpush2.msra.mxu0 %v916
    %1813 = vmatprep.subr.mxu0 %v909
    %1814 = vmatpush2.msra.mxu0 %v908
    %1815 = vmatprep.subr.mxu0 %v901
    %1816 = vmatpush2.msra.mxu0 %v900
    %1817 = vmatprep.subr.mxu0 %v893
    %1818 = vmatpush2.msra.mxu0 %v892
    %1819 = vmatprep.subr.mxu0 %v885
    %1820 = vmatpush2.msra.mxu0 %v884
    %1821 = vmatprep.subr.mxu0 %v877
    %1822 = vmatpush2.msra.mxu0 %v876
    %1823 = vmatprep.subr.mxu0 %v869
    %1824 = vmatpush2.msra.mxu0 %v868
    %1825 = vmatprep.subr.mxu0 %v861
    %1826 = vmatpush2.msra.mxu0 %v860
    %1827 = vmatprep.mubr.f32.mxu0 %v1687
    %1828 = vmatmul.mubr.f32.gmra.mxu0 %v1654
    %v1829 = vpop.f32.mrf.mxu0
    %v1830 = vadd.f32 0.0, %v1829
    %v1831 = vpop.f32.mrf.mxu0
    %v1832 = vadd.f32 0.0, %v1831
    %1833 = vdwg.mxu0
    %1834 = vmatprep.subr.mxu0 %v855
    %1835 = vmatpush1.msra.mxu0 %v854
    %1836 = vmatprep.subr.mxu0 %v847
    %1837 = vmatpush1.msra.mxu0 %v846
    %1838 = vmatprep.subr.mxu0 %v839
    %1839 = vmatpush1.msra.mxu0 %v838
    %1840 = vmatprep.subr.mxu0 %v831
    %1841 = vmatpush1.msra.mxu0 %v830
    %1842 = vmatprep.subr.mxu0 %v823
    %1843 = vmatpush1.msra.mxu0 %v822
    %1844 = vmatprep.subr.mxu0 %v815
    %1845 = vmatpush1.msra.mxu0 %v814
    %1846 = vmatprep.subr.mxu0 %v807
    %1847 = vmatpush1.msra.mxu0 %v806
    %1848 = vmatprep.subr.mxu0 %v799
    %1849 = vmatpush1.msra.mxu0 %v798
    %1850 = vmatprep.subr.mxu0 %v791
    %1851 = vmatpush1.msra.mxu0 %v790
    %1852 = vmatprep.subr.mxu0 %v783
    %1853 = vmatpush1.msra.mxu0 %v782
    %1854 = vmatprep.subr.mxu0 %v775
    %1855 = vmatpush1.msra.mxu0 %v774
    %1856 = vmatprep.subr.mxu0 %v767
    %1857 = vmatpush1.msra.mxu0 %v766
    %1858 = vmatprep.subr.mxu0 %v759
    %1859 = vmatpush1.msra.mxu0 %v758
    %1860 = vmatprep.subr.mxu0 %v751
    %1861 = vmatpush1.msra.mxu0 %v750
    %1862 = vmatprep.subr.mxu0 %v743
    %1863 = vmatpush1.msra.mxu0 %v742
    %1864 = vmatprep.subr.mxu0 %v735
    %1865 = vmatpush1.msra.mxu0 %v734
    %1866 = vmatprep.subr.mxu0 %v983
    %1867 = vmatpush2.msra.mxu0 %v982
    %1868 = vmatprep.subr.mxu0 %v975
    %1869 = vmatpush2.msra.mxu0 %v974
    %1870 = vmatprep.subr.mxu0 %v967
    %1871 = vmatpush2.msra.mxu0 %v966
    %1872 = vmatprep.subr.mxu0 %v959
    %1873 = vmatpush2.msra.mxu0 %v958
    %1874 = vmatprep.subr.mxu0 %v951
    %1875 = vmatpush2.msra.mxu0 %v950
    %1876 = vmatprep.subr.mxu0 %v943
    %1877 = vmatpush2.msra.mxu0 %v942
    %1878 = vmatprep.subr.mxu0 %v935
    %1879 = vmatpush2.msra.mxu0 %v934
    %1880 = vmatprep.subr.mxu0 %v927
    %1881 = vmatpush2.msra.mxu0 %v926
    %1882 = vmatprep.subr.mxu0 %v919
    %1883 = vmatpush2.msra.mxu0 %v918
    %1884 = vmatprep.subr.mxu0 %v911
    %1885 = vmatpush2.msra.mxu0 %v910
    %1886 = vmatprep.subr.mxu0 %v903
    %1887 = vmatpush2.msra.mxu0 %v902
    %1888 = vmatprep.subr.mxu0 %v895
    %1889 = vmatpush2.msra.mxu0 %v894
    %1890 = vmatprep.subr.mxu0 %v887
    %1891 = vmatpush2.msra.mxu0 %v886
    %1892 = vmatprep.subr.mxu0 %v879
    %1893 = vmatpush2.msra.mxu0 %v878
    %1894 = vmatprep.subr.mxu0 %v871
    %1895 = vmatpush2.msra.mxu0 %v870
    %1896 = vmatprep.subr.mxu0 %v863
    %1897 = vmatpush2.msra.mxu0 %v862
    %1898 = vmatprep.mubr.f32.mxu0 %v1687
    %1899 = vmatmul.mubr.f32.gmra.mxu0 %v1654
    %v1900 = vpop.f32.mrf.mxu0
    %v1901 = vadd.f32 0.0, %v1900
    %v1902 = vpop.f32.mrf.mxu0
    %v1903 = vadd.f32 0.0, %v1902
    %1904 = vdwg.mxu0
    %1905 = vmatprep.subr.mxu0 %v857
    %1906 = vmatpush1.msra.mxu0 %v856
    %1907 = vmatprep.subr.mxu0 %v849
    %1908 = vmatpush1.msra.mxu0 %v848
    %1909 = vmatprep.subr.mxu0 %v841
    %1910 = vmatpush1.msra.mxu0 %v840
    %1911 = vmatprep.subr.mxu0 %v833
    %1912 = vmatpush1.msra.mxu0 %v832
    %1913 = vmatprep.subr.mxu0 %v825
    %1914 = vmatpush1.msra.mxu0 %v824
    %1915 = vmatprep.subr.mxu0 %v817
    %1916 = vmatpush1.msra.mxu0 %v816
    %1917 = vmatprep.subr.mxu0 %v809
    %1918 = vmatpush1.msra.mxu0 %v808
    %1919 = vmatprep.subr.mxu0 %v801
    %1920 = vmatpush1.msra.mxu0 %v800
    %1921 = vmatprep.subr.mxu0 %v793
    %1922 = vmatpush1.msra.mxu0 %v792
    %1923 = vmatprep.subr.mxu0 %v785
    %1924 = vmatpush1.msra.mxu0 %v784
    %1925 = vmatprep.subr.mxu0 %v777
    %1926 = vmatpush1.msra.mxu0 %v776
    %1927 = vmatprep.subr.mxu0 %v769
    %1928 = vmatpush1.msra.mxu0 %v768
    %1929 = vmatprep.subr.mxu0 %v761
    %1930 = vmatpush1.msra.mxu0 %v760
    %1931 = vmatprep.subr.mxu0 %v753
    %1932 = vmatpush1.msra.mxu0 %v752
    %1933 = vmatprep.subr.mxu0 %v745
    %1934 = vmatpush1.msra.mxu0 %v744
    %1935 = vmatprep.subr.mxu0 %v737
    %1936 = vmatpush1.msra.mxu0 %v736
    %1937 = vmatprep.subr.mxu0 %v985
    %1938 = vmatpush2.msra.mxu0 %v984
    %1939 = vmatprep.subr.mxu0 %v977
    %1940 = vmatpush2.msra.mxu0 %v976
    %1941 = vmatprep.subr.mxu0 %v969
    %1942 = vmatpush2.msra.mxu0 %v968
    %1943 = vmatprep.subr.mxu0 %v961
    %1944 = vmatpush2.msra.mxu0 %v960
    %1945 = vmatprep.subr.mxu0 %v953
    %1946 = vmatpush2.msra.mxu0 %v952
    %1947 = vmatprep.subr.mxu0 %v945
    %1948 = vmatpush2.msra.mxu0 %v944
    %1949 = vmatprep.subr.mxu0 %v937
    %1950 = vmatpush2.msra.mxu0 %v936
    %1951 = vmatprep.subr.mxu0 %v929
    %1952 = vmatpush2.msra.mxu0 %v928
    %1953 = vmatprep.subr.mxu0 %v921
    %1954 = vmatpush2.msra.mxu0 %v920
    %1955 = vmatprep.subr.mxu0 %v913
    %1956 = vmatpush2.msra.mxu0 %v912
    %1957 = vmatprep.subr.mxu0 %v905
    %1958 = vmatpush2.msra.mxu0 %v904
    %1959 = vmatprep.subr.mxu0 %v897
    %1960 = vmatpush2.msra.mxu0 %v896
    %1961 = vmatprep.subr.mxu0 %v889
    %1962 = vmatpush2.msra.mxu0 %v888
    %1963 = vmatprep.subr.mxu0 %v881
    %1964 = vmatpush2.msra.mxu0 %v880
    %1965 = vmatprep.subr.mxu0 %v873
    %1966 = vmatpush2.msra.mxu0 %v872
    %1967 = vmatprep.subr.mxu0 %v865
    %1968 = vmatpush2.msra.mxu0 %v864
    %1969 = vmatprep.mubr.f32.mxu0 %v1687
    %1970 = vmatmul.mubr.f32.gmra.mxu0 %v1654
    %v1971 = vpop.f32.mrf.mxu0
    %v1972 = vadd.f32 0.0, %v1971
    %v1973 = vpop.f32.mrf.mxu0
    %v1974 = vadd.f32 0.0, %v1973
    %1975 = vdwg.mxu0
    %s1976 = scalar_lea.vmem [#allocation2], 64
    %v1977 = vld [vmem:[%s1976] sm:$0xff]
    %v1978 = vld [vmem:[%s1976 + $0x8] sm:$0xff]
    %v1979 = vld [vmem:[%s1976 + $0x10] sm:$0xff]
    %v1980 = vld [vmem:[%s1976 + $0x18] sm:$0xff]
    %v1981 = vadd.f32 %v1977, %v1759
    %v1982 = vadd.f32 %v1978, %v1761
    %v1983 = vadd.f32 %v1979, %v1830
    %v1984 = vadd.f32 %v1980, %v1832
    %v1985 = vxor.u32 %v1981, 2147483648
    %v1986 = vmul.f32 %v1985, 1.442695
    %v1987 = vpow.pop %v1986
    %v1988 = vadd.f32 %v1987, 1.0
    %v1989 = vrcp.pop %v1988
    %v1990 = vmul.f32 1.0, %v1989
    %v1991 = vxor.u32 %v1982, 2147483648
    %v1992 = vmul.f32 %v1991, 1.442695
    %v1993 = vpow.pop %v1992
    %v1994 = vadd.f32 %v1993, 1.0
    %v1995 = vrcp.pop %v1994
    %v1996 = vmul.f32 1.0, %v1995
    %v1997 = vtanh.pop %v1983
    %v1998 = vxor.u32 %v1984, 2147483648
    %v1999 = vmul.f32 %v1998, 1.442695
    %v2000 = vpow.pop %v1999
    %v2001 = vadd.f32 %v2000, 1.0
    %v2002 = vrcp.pop %v2001
    %v2003 = vmul.f32 1.0, %v2002
    %v2004 = vmul.f32 %v1996, %v1652
    %v2005 = vmul.f32 %v1990, %v1997
    %v2006 = vadd.f32 %v2004, %v2005
    %v2007 = vtanh.pop %v2006
    %v2008 = vmul.f32 %v2003, %v2007
    %s2009 = scalar_lea.vmem [#allocation3], 160
    %v2010 = vld [vmem:[%s2009] sm:$0xff]
    %v2011 = vld [vmem:[%s2009 + $0x8] sm:$0xff]
    %v2012 = vld [vmem:[%s2009 + $0x10] sm:$0xff]
    %v2013 = vld [vmem:[%s2009 + $0x18] sm:$0xff]
    %v2014 = vadd.f32 %v2010, %v1901
    %v2015 = vadd.f32 %v2011, %v1903
    %v2016 = vadd.f32 %v2012, %v1972
    %v2017 = vadd.f32 %v2013, %v1974
    %v2018 = vxor.u32 %v2014, 2147483648
    %v2019 = vmul.f32 %v2018, 1.442695
    %v2020 = vpow.pop %v2019
    %v2021 = vadd.f32 %v2020, 1.0
    %v2022 = vrcp.pop %v2021
    %v2023 = vmul.f32 1.0, %v2022
    %v2024 = vxor.u32 %v2015, 2147483648
    %v2025 = vmul.f32 %v2024, 1.442695
    %v2026 = vpow.pop %v2025
    %v2027 = vadd.f32 %v2026, 1.0
    %v2028 = vrcp.pop %v2027
    %v2029 = vmul.f32 1.0, %v2028
    %v2030 = vtanh.pop %v2016
    %v2031 = vxor.u32 %v2017, 2147483648
    %v2032 = vmul.f32 %v2031, 1.442695
    %v2033 = vpow.pop %v2032
    %v2034 = vadd.f32 %v2033, 1.0
    %v2035 = vrcp.pop %v2034
    %v2036 = vmul.f32 1.0, %v2035
    %v2037 = vmul.f32 %v2029, %v1685
    %v2038 = vmul.f32 %v2023, %v2030
    %v2039 = vadd.f32 %v2037, %v2038
    %v2040 = vtanh.pop %v2039
    %v2041 = vmul.f32 %v2036, %v2040
    %s2042 = scalar_lea.vmem [#allocation4], 16
    %2043 = vst [vmem:[%s2042] sm:$0xff] %v2008
    %s2044 = scalar_lea.vmem [#allocation5], 40
    %2045 = vst [vmem:[%s2044] sm:$0xff] %v2041
    %2046 = vmatprep.subr.mxu0 %v851
    %2047 = vmatpush1.msra.mxu0 %v850
    %2048 = vmatprep.subr.mxu0 %v843
    %2049 = vmatpush1.msra.mxu0 %v842
    %2050 = vmatprep.subr.mxu0 %v835
    %2051 = vmatpush1.msra.mxu0 %v834
    %2052 = vmatprep.subr.mxu0 %v827
    %2053 = vmatpush1.msra.mxu0 %v826
    %2054 = vmatprep.subr.mxu0 %v819
    %2055 = vmatpush1.msra.mxu0 %v818
    %2056 = vmatprep.subr.mxu0 %v811
    %2057 = vmatpush1.msra.mxu0 %v810
    %2058 = vmatprep.subr.mxu0 %v803
    %2059 = vmatpush1.msra.mxu0 %v802
    %2060 = vmatprep.subr.mxu0 %v795
    %2061 = vmatpush1.msra.mxu0 %v794
    %2062 = vmatprep.subr.mxu0 %v787
    %2063 = vmatpush1.msra.mxu0 %v786
    %2064 = vmatprep.subr.mxu0 %v779
    %2065 = vmatpush1.msra.mxu0 %v778
    %2066 = vmatprep.subr.mxu0 %v771
    %2067 = vmatpush1.msra.mxu0 %v770
    %2068 = vmatprep.subr.mxu0 %v763
    %2069 = vmatpush1.msra.mxu0 %v762
    %2070 = vmatprep.subr.mxu0 %v755
    %2071 = vmatpush1.msra.mxu0 %v754
    %2072 = vmatprep.subr.mxu0 %v747
    %2073 = vmatpush1.msra.mxu0 %v746
    %2074 = vmatprep.subr.mxu0 %v739
    %2075 = vmatpush1.msra.mxu0 %v738
    %2076 = vmatprep.subr.mxu0 %v731
    %2077 = vmatpush1.msra.mxu0 %v730
    %2078 = vmatprep.subr.mxu0 %v979
    %2079 = vmatpush2.msra.mxu0 %v978
    %2080 = vmatprep.subr.mxu0 %v971
    %2081 = vmatpush2.msra.mxu0 %v970
    %2082 = vmatprep.subr.mxu0 %v963
    %2083 = vmatpush2.msra.mxu0 %v962
    %2084 = vmatprep.subr.mxu0 %v955
    %2085 = vmatpush2.msra.mxu0 %v954
    %2086 = vmatprep.subr.mxu0 %v947
    %2087 = vmatpush2.msra.mxu0 %v946
    %2088 = vmatprep.subr.mxu0 %v939
    %2089 = vmatpush2.msra.mxu0 %v938
    %2090 = vmatprep.subr.mxu0 %v931
    %2091 = vmatpush2.msra.mxu0 %v930
    %2092 = vmatprep.subr.mxu0 %v923
    %2093 = vmatpush2.msra.mxu0 %v922
    %2094 = vmatprep.subr.mxu0 %v915
    %2095 = vmatpush2.msra.mxu0 %v914
    %2096 = vmatprep.subr.mxu0 %v907
    %2097 = vmatpush2.msra.mxu0 %v906
    %2098 = vmatprep.subr.mxu0 %v899
    %2099 = vmatpush2.msra.mxu0 %v898
    %2100 = vmatprep.subr.mxu0 %v891
    %2101 = vmatpush2.msra.mxu0 %v890
    %2102 = vmatprep.subr.mxu0 %v883
    %2103 = vmatpush2.msra.mxu0 %v882
    %2104 = vmatprep.subr.mxu0 %v875
    %2105 = vmatpush2.msra.mxu0 %v874
    %2106 = vmatprep.subr.mxu0 %v867
    %2107 = vmatpush2.msra.mxu0 %v866
    %2108 = vmatprep.subr.mxu0 %v859
    %2109 = vmatpush2.msra.mxu0 %v858
    %2110 = vmatprep.mubr.f32.mxu0 %v2041
    %2111 = vmatmul.mubr.f32.gmra.mxu0 %v2008
    %v2112 = vpop.f32.mrf.mxu0
    %v2113 = vadd.f32 0.0, %v2112
    %v2114 = vpop.f32.mrf.mxu0
    %v2115 = vadd.f32 0.0, %v2114
    %2116 = vdwg.mxu0
    %2117 = vmatprep.subr.mxu0 %v853
    %2118 = vmatpush1.msra.mxu0 %v852
    %2119 = vmatprep.subr.mxu0 %v845
    %2120 = vmatpush1.msra.mxu0 %v844
    %2121 = vmatprep.subr.mxu0 %v837
    %2122 = vmatpush1.msra.mxu0 %v836
    %2123 = vmatprep.subr.mxu0 %v829
    %2124 = vmatpush1.msra.mxu0 %v828
    %2125 = vmatprep.subr.mxu0 %v821
    %2126 = vmatpush1.msra.mxu0 %v820
    %2127 = vmatprep.subr.mxu0 %v813
    %2128 = vmatpush1.msra.mxu0 %v812
    %2129 = vmatprep.subr.mxu0 %v805
    %2130 = vmatpush1.msra.mxu0 %v804
    %2131 = vmatprep.subr.mxu0 %v797
    %2132 = vmatpush1.msra.mxu0 %v796
    %2133 = vmatprep.subr.mxu0 %v789
    %2134 = vmatpush1.msra.mxu0 %v788
    %2135 = vmatprep.subr.mxu0 %v781
    %2136 = vmatpush1.msra.mxu0 %v780
    %2137 = vmatprep.subr.mxu0 %v773
    %2138 = vmatpush1.msra.mxu0 %v772
    %2139 = vmatprep.subr.mxu0 %v765
    %2140 = vmatpush1.msra.mxu0 %v764
    %2141 = vmatprep.subr.mxu0 %v757
    %2142 = vmatpush1.msra.mxu0 %v756
    %2143 = vmatprep.subr.mxu0 %v749
    %2144 = vmatpush1.msra.mxu0 %v748
    %2145 = vmatprep.subr.mxu0 %v741
    %2146 = vmatpush1.msra.mxu0 %v740
    %2147 = vmatprep.subr.mxu0 %v733
    %2148 = vmatpush1.msra.mxu0 %v732
    %2149 = vmatprep.subr.mxu0 %v981
    %2150 = vmatpush2.msra.mxu0 %v980
    %2151 = vmatprep.subr.mxu0 %v973
    %2152 = vmatpush2.msra.mxu0 %v972
    %2153 = vmatprep.subr.mxu0 %v965
    %2154 = vmatpush2.msra.mxu0 %v964
    %2155 = vmatprep.subr.mxu0 %v957
    %2156 = vmatpush2.msra.mxu0 %v956
    %2157 = vmatprep.subr.mxu0 %v949
    %2158 = vmatpush2.msra.mxu0 %v948
    %2159 = vmatprep.subr.mxu0 %v941
    %2160 = vmatpush2.msra.mxu0 %v940
    %2161 = vmatprep.subr.mxu0 %v933
    %2162 = vmatpush2.msra.mxu0 %v932
    %2163 = vmatprep.subr.mxu0 %v925
    %2164 = vmatpush2.msra.mxu0 %v924
    %2165 = vmatprep.subr.mxu0 %v917
    %2166 = vmatpush2.msra.mxu0 %v916
    %2167 = vmatprep.subr.mxu0 %v909
    %2168 = vmatpush2.msra.mxu0 %v908
    %2169 = vmatprep.subr.mxu0 %v901
    %2170 = vmatpush2.msra.mxu0 %v900
    %2171 = vmatprep.subr.mxu0 %v893
    %2172 = vmatpush2.msra.mxu0 %v892
    %2173 = vmatprep.subr.mxu0 %v885
    %2174 = vmatpush2.msra.mxu0 %v884
    %2175 = vmatprep.subr.mxu0 %v877
    %2176 = vmatpush2.msra.mxu0 %v876
    %2177 = vmatprep.subr.mxu0 %v869
    %2178 = vmatpush2.msra.mxu0 %v868
    %2179 = vmatprep.subr.mxu0 %v861
    %2180 = vmatpush2.msra.mxu0 %v860
    %2181 = vmatprep.mubr.f32.mxu0 %v2041
    %2182 = vmatmul.mubr.f32.gmra.mxu0 %v2008
    %v2183 = vpop.f32.mrf.mxu0
    %v2184 = vadd.f32 0.0, %v2183
    %v2185 = vpop.f32.mrf.mxu0
    %v2186 = vadd.f32 0.0, %v2185
    %2187 = vdwg.mxu0
    %2188 = vmatprep.subr.mxu0 %v855
    %2189 = vmatpush1.msra.mxu0 %v854
    %2190 = vmatprep.subr.mxu0 %v847
    %2191 = vmatpush1.msra.mxu0 %v846
    %2192 = vmatprep.subr.mxu0 %v839
    %2193 = vmatpush1.msra.mxu0 %v838
    %2194 = vmatprep.subr.mxu0 %v831
    %2195 = vmatpush1.msra.mxu0 %v830
    %2196 = vmatprep.subr.mxu0 %v823
    %2197 = vmatpush1.msra.mxu0 %v822
    %2198 = vmatprep.subr.mxu0 %v815
    %2199 = vmatpush1.msra.mxu0 %v814
    %2200 = vmatprep.subr.mxu0 %v807
    %2201 = vmatpush1.msra.mxu0 %v806
    %2202 = vmatprep.subr.mxu0 %v799
    %2203 = vmatpush1.msra.mxu0 %v798
    %2204 = vmatprep.subr.mxu0 %v791
    %2205 = vmatpush1.msra.mxu0 %v790
    %2206 = vmatprep.subr.mxu0 %v783
    %2207 = vmatpush1.msra.mxu0 %v782
    %2208 = vmatprep.subr.mxu0 %v775
    %2209 = vmatpush1.msra.mxu0 %v774
    %2210 = vmatprep.subr.mxu0 %v767
    %2211 = vmatpush1.msra.mxu0 %v766
    %2212 = vmatprep.subr.mxu0 %v759
    %2213 = vmatpush1.msra.mxu0 %v758
    %2214 = vmatprep.subr.mxu0 %v751
    %2215 = vmatpush1.msra.mxu0 %v750
    %2216 = vmatprep.subr.mxu0 %v743
    %2217 = vmatpush1.msra.mxu0 %v742
    %2218 = vmatprep.subr.mxu0 %v735
    %2219 = vmatpush1.msra.mxu0 %v734
    %2220 = vmatprep.subr.mxu0 %v983
    %2221 = vmatpush2.msra.mxu0 %v982
    %2222 = vmatprep.subr.mxu0 %v975
    %2223 = vmatpush2.msra.mxu0 %v974
    %2224 = vmatprep.subr.mxu0 %v967
    %2225 = vmatpush2.msra.mxu0 %v966
    %2226 = vmatprep.subr.mxu0 %v959
    %2227 = vmatpush2.msra.mxu0 %v958
    %2228 = vmatprep.subr.mxu0 %v951
    %2229 = vmatpush2.msra.mxu0 %v950
    %2230 = vmatprep.subr.mxu0 %v943
    %2231 = vmatpush2.msra.mxu0 %v942
    %2232 = vmatprep.subr.mxu0 %v935
    %2233 = vmatpush2.msra.mxu0 %v934
    %2234 = vmatprep.subr.mxu0 %v927
    %2235 = vmatpush2.msra.mxu0 %v926
    %2236 = vmatprep.subr.mxu0 %v919
    %2237 = vmatpush2.msra.mxu0 %v918
    %2238 = vmatprep.subr.mxu0 %v911
    %2239 = vmatpush2.msra.mxu0 %v910
    %2240 = vmatprep.subr.mxu0 %v903
    %2241 = vmatpush2.msra.mxu0 %v902
    %2242 = vmatprep.subr.mxu0 %v895
    %2243 = vmatpush2.msra.mxu0 %v894
    %2244 = vmatprep.subr.mxu0 %v887
    %2245 = vmatpush2.msra.mxu0 %v886
    %2246 = vmatprep.subr.mxu0 %v879
    %2247 = vmatpush2.msra.mxu0 %v878
    %2248 = vmatprep.subr.mxu0 %v871
    %2249 = vmatpush2.msra.mxu0 %v870
    %2250 = vmatprep.subr.mxu0 %v863
    %2251 = vmatpush2.msra.mxu0 %v862
    %2252 = vmatprep.mubr.f32.mxu0 %v2041
    %2253 = vmatmul.mubr.f32.gmra.mxu0 %v2008
    %v2254 = vpop.f32.mrf.mxu0
    %v2255 = vadd.f32 0.0, %v2254
    %v2256 = vpop.f32.mrf.mxu0
    %v2257 = vadd.f32 0.0, %v2256
    %2258 = vdwg.mxu0
    %2259 = vmatprep.subr.mxu0 %v857
    %2260 = vmatpush1.msra.mxu0 %v856
    %2261 = vmatprep.subr.mxu0 %v849
    %2262 = vmatpush1.msra.mxu0 %v848
    %2263 = vmatprep.subr.mxu0 %v841
    %2264 = vmatpush1.msra.mxu0 %v840
    %2265 = vmatprep.subr.mxu0 %v833
    %2266 = vmatpush1.msra.mxu0 %v832
    %2267 = vmatprep.subr.mxu0 %v825
    %2268 = vmatpush1.msra.mxu0 %v824
    %2269 = vmatprep.subr.mxu0 %v817
    %2270 = vmatpush1.msra.mxu0 %v816
    %2271 = vmatprep.subr.mxu0 %v809
    %2272 = vmatpush1.msra.mxu0 %v808
    %2273 = vmatprep.subr.mxu0 %v801
    %2274 = vmatpush1.msra.mxu0 %v800
    %2275 = vmatprep.subr.mxu0 %v793
    %2276 = vmatpush1.msra.mxu0 %v792
    %2277 = vmatprep.subr.mxu0 %v785
    %2278 = vmatpush1.msra.mxu0 %v784
    %2279 = vmatprep.subr.mxu0 %v777
    %2280 = vmatpush1.msra.mxu0 %v776
    %2281 = vmatprep.subr.mxu0 %v769
    %2282 = vmatpush1.msra.mxu0 %v768
    %2283 = vmatprep.subr.mxu0 %v761
    %2284 = vmatpush1.msra.mxu0 %v760
    %2285 = vmatprep.subr.mxu0 %v753
    %2286 = vmatpush1.msra.mxu0 %v752
    %2287 = vmatprep.subr.mxu0 %v745
    %2288 = vmatpush1.msra.mxu0 %v744
    %2289 = vmatprep.subr.mxu0 %v737
    %2290 = vmatpush1.msra.mxu0 %v736
    %2291 = vmatprep.subr.mxu0 %v985
    %2292 = vmatpush2.msra.mxu0 %v984
    %2293 = vmatprep.subr.mxu0 %v977
    %2294 = vmatpush2.msra.mxu0 %v976
    %2295 = vmatprep.subr.mxu0 %v969
    %2296 = vmatpush2.msra.mxu0 %v968
    %2297 = vmatprep.subr.mxu0 %v961
    %2298 = vmatpush2.msra.mxu0 %v960
    %2299 = vmatprep.subr.mxu0 %v953
    %2300 = vmatpush2.msra.mxu0 %v952
    %2301 = vmatprep.subr.mxu0 %v945
    %2302 = vmatpush2.msra.mxu0 %v944
    %2303 = vmatprep.subr.mxu0 %v937
    %2304 = vmatpush2.msra.mxu0 %v936
    %2305 = vmatprep.subr.mxu0 %v929
    %2306 = vmatpush2.msra.mxu0 %v928
    %2307 = vmatprep.subr.mxu0 %v921
    %2308 = vmatpush2.msra.mxu0 %v920
    %2309 = vmatprep.subr.mxu0 %v913
    %2310 = vmatpush2.msra.mxu0 %v912
    %2311 = vmatprep.subr.mxu0 %v905
    %2312 = vmatpush2.msra.mxu0 %v904
    %2313 = vmatprep.subr.mxu0 %v897
    %2314 = vmatpush2.msra.mxu0 %v896
    %2315 = vmatprep.subr.mxu0 %v889
    %2316 = vmatpush2.msra.mxu0 %v888
    %2317 = vmatprep.subr.mxu0 %v881
    %2318 = vmatpush2.msra.mxu0 %v880
    %2319 = vmatprep.subr.mxu0 %v873
    %2320 = vmatpush2.msra.mxu0 %v872
    %2321 = vmatprep.subr.mxu0 %v865
    %2322 = vmatpush2.msra.mxu0 %v864
    %2323 = vmatprep.mubr.f32.mxu0 %v2041
    %2324 = vmatmul.mubr.f32.gmra.mxu0 %v2008
    %v2325 = vpop.f32.mrf.mxu0
    %v2326 = vadd.f32 0.0, %v2325
    %v2327 = vpop.f32.mrf.mxu0
    %v2328 = vadd.f32 0.0, %v2327
    %2329 = vdwg.mxu0
    %s2330 = scalar_lea.vmem [#allocation2], 96
    %v2331 = vld [vmem:[%s2330] sm:$0xff]
    %v2332 = vld [vmem:[%s2330 + $0x8] sm:$0xff]
    %v2333 = vld [vmem:[%s2330 + $0x10] sm:$0xff]
    %v2334 = vld [vmem:[%s2330 + $0x18] sm:$0xff]
    %v2335 = vadd.f32 %v2331, %v2113
    %v2336 = vadd.f32 %v2332, %v2115
    %v2337 = vadd.f32 %v2333, %v2184
    %v2338 = vadd.f32 %v2334, %v2186
    %v2339 = vxor.u32 %v2335, 2147483648
    %v2340 = vmul.f32 %v2339, 1.442695
    %v2341 = vpow.pop %v2340
    %v2342 = vadd.f32 %v2341, 1.0
    %v2343 = vrcp.pop %v2342
    %v2344 = vmul.f32 1.0, %v2343
    %v2345 = vxor.u32 %v2336, 2147483648
    %v2346 = vmul.f32 %v2345, 1.442695
    %v2347 = vpow.pop %v2346
    %v2348 = vadd.f32 %v2347, 1.0
    %v2349 = vrcp.pop %v2348
    %v2350 = vmul.f32 1.0, %v2349
    %v2351 = vtanh.pop %v2337
    %v2352 = vxor.u32 %v2338, 2147483648
    %v2353 = vmul.f32 %v2352, 1.442695
    %v2354 = vpow.pop %v2353
    %v2355 = vadd.f32 %v2354, 1.0
    %v2356 = vrcp.pop %v2355
    %v2357 = vmul.f32 1.0, %v2356
    %v2358 = vmul.f32 %v2350, %v2006
    %v2359 = vmul.f32 %v2344, %v2351
    %v2360 = vadd.f32 %v2358, %v2359
    %v2361 = vtanh.pop %v2360
    %v2362 = vmul.f32 %v2357, %v2361
    %s2363 = scalar_lea.vmem [#allocation3], 128
    %v2364 = vld [vmem:[%s2363] sm:$0xff]
    %v2365 = vld [vmem:[%s2363 + $0x8] sm:$0xff]
    %v2366 = vld [vmem:[%s2363 + $0x10] sm:$0xff]
    %v2367 = vld [vmem:[%s2363 + $0x18] sm:$0xff]
    %v2368 = vadd.f32 %v2364, %v2255
    %v2369 = vadd.f32 %v2365, %v2257
    %v2370 = vadd.f32 %v2366, %v2326
    %v2371 = vadd.f32 %v2367, %v2328
    %v2372 = vxor.u32 %v2368, 2147483648
    %v2373 = vmul.f32 %v2372, 1.442695
    %v2374 = vpow.pop %v2373
    %v2375 = vadd.f32 %v2374, 1.0
    %v2376 = vrcp.pop %v2375
    %v2377 = vmul.f32 1.0, %v2376
    %v2378 = vxor.u32 %v2369, 2147483648
    %v2379 = vmul.f32 %v2378, 1.442695
    %v2380 = vpow.pop %v2379
    %v2381 = vadd.f32 %v2380, 1.0
    %v2382 = vrcp.pop %v2381
    %v2383 = vmul.f32 1.0, %v2382
    %v2384 = vtanh.pop %v2370
    %v2385 = vxor.u32 %v2371, 2147483648
    %v2386 = vmul.f32 %v2385, 1.442695
    %v2387 = vpow.pop %v2386
    %v2388 = vadd.f32 %v2387, 1.0
    %v2389 = vrcp.pop %v2388
    %v2390 = vmul.f32 1.0, %v2389
    %v2391 = vmul.f32 %v2383, %v2039
    %v2392 = vmul.f32 %v2377, %v2384
    %v2393 = vadd.f32 %v2391, %v2392
    %v2394 = vtanh.pop %v2393
    %v2395 = vmul.f32 %v2390, %v2394
    %s2396 = scalar_lea.vmem [#allocation4], 24
    %2397 = vst [vmem:[%s2396] sm:$0xff] %v2362
    %s2398 = scalar_lea.vmem [#allocation5], 32
    %2399 = vst [vmem:[%s2398] sm:$0xff] %v2395
    %2400 = vmatprep.subr.mxu0 %v851
    %2401 = vmatpush1.msra.mxu0 %v850
    %2402 = vmatprep.subr.mxu0 %v843
    %2403 = vmatpush1.msra.mxu0 %v842
    %2404 = vmatprep.subr.mxu0 %v835
    %2405 = vmatpush1.msra.mxu0 %v834
    %2406 = vmatprep.subr.mxu0 %v827
    %2407 = vmatpush1.msra.mxu0 %v826
    %2408 = vmatprep.subr.mxu0 %v819
    %2409 = vmatpush1.msra.mxu0 %v818
    %2410 = vmatprep.subr.mxu0 %v811
    %2411 = vmatpush1.msra.mxu0 %v810
    %2412 = vmatprep.subr.mxu0 %v803
    %2413 = vmatpush1.msra.mxu0 %v802
    %2414 = vmatprep.subr.mxu0 %v795
    %2415 = vmatpush1.msra.mxu0 %v794
    %2416 = vmatprep.subr.mxu0 %v787
    %2417 = vmatpush1.msra.mxu0 %v786
    %2418 = vmatprep.subr.mxu0 %v779
    %2419 = vmatpush1.msra.mxu0 %v778
    %2420 = vmatprep.subr.mxu0 %v771
    %2421 = vmatpush1.msra.mxu0 %v770
    %2422 = vmatprep.subr.mxu0 %v763
    %2423 = vmatpush1.msra.mxu0 %v762
    %2424 = vmatprep.subr.mxu0 %v755
    %2425 = vmatpush1.msra.mxu0 %v754
    %2426 = vmatprep.subr.mxu0 %v747
    %2427 = vmatpush1.msra.mxu0 %v746
    %2428 = vmatprep.subr.mxu0 %v739
    %2429 = vmatpush1.msra.mxu0 %v738
    %2430 = vmatprep.subr.mxu0 %v731
    %2431 = vmatpush1.msra.mxu0 %v730
    %2432 = vmatprep.subr.mxu0 %v979
    %2433 = vmatpush2.msra.mxu0 %v978
    %2434 = vmatprep.subr.mxu0 %v971
    %2435 = vmatpush2.msra.mxu0 %v970
    %2436 = vmatprep.subr.mxu0 %v963
    %2437 = vmatpush2.msra.mxu0 %v962
    %2438 = vmatprep.subr.mxu0 %v955
    %2439 = vmatpush2.msra.mxu0 %v954
    %2440 = vmatprep.subr.mxu0 %v947
    %2441 = vmatpush2.msra.mxu0 %v946
    %2442 = vmatprep.subr.mxu0 %v939
    %2443 = vmatpush2.msra.mxu0 %v938
    %2444 = vmatprep.subr.mxu0 %v931
    %2445 = vmatpush2.msra.mxu0 %v930
    %2446 = vmatprep.subr.mxu0 %v923
    %2447 = vmatpush2.msra.mxu0 %v922
    %2448 = vmatprep.subr.mxu0 %v915
    %2449 = vmatpush2.msra.mxu0 %v914
    %2450 = vmatprep.subr.mxu0 %v907
    %2451 = vmatpush2.msra.mxu0 %v906
    %2452 = vmatprep.subr.mxu0 %v899
    %2453 = vmatpush2.msra.mxu0 %v898
    %2454 = vmatprep.subr.mxu0 %v891
    %2455 = vmatpush2.msra.mxu0 %v890
    %2456 = vmatprep.subr.mxu0 %v883
    %2457 = vmatpush2.msra.mxu0 %v882
    %2458 = vmatprep.subr.mxu0 %v875
    %2459 = vmatpush2.msra.mxu0 %v874
    %2460 = vmatprep.subr.mxu0 %v867
    %2461 = vmatpush2.msra.mxu0 %v866
    %2462 = vmatprep.subr.mxu0 %v859
    %2463 = vmatpush2.msra.mxu0 %v858
    %2464 = vmatprep.mubr.f32.mxu0 %v2395
    %2465 = vmatmul.mubr.f32.gmra.mxu0 %v2362
    %v2466 = vpop.f32.mrf.mxu0
    %v2467 = vadd.f32 0.0, %v2466
    %v2468 = vpop.f32.mrf.mxu0
    %v2469 = vadd.f32 0.0, %v2468
    %2470 = vdwg.mxu0
    %2471 = vmatprep.subr.mxu0 %v853
    %2472 = vmatpush1.msra.mxu0 %v852
    %2473 = vmatprep.subr.mxu0 %v845
    %2474 = vmatpush1.msra.mxu0 %v844
    %2475 = vmatprep.subr.mxu0 %v837
    %2476 = vmatpush1.msra.mxu0 %v836
    %2477 = vmatprep.subr.mxu0 %v829
    %2478 = vmatpush1.msra.mxu0 %v828
    %2479 = vmatprep.subr.mxu0 %v821
    %2480 = vmatpush1.msra.mxu0 %v820
    %2481 = vmatprep.subr.mxu0 %v813
    %2482 = vmatpush1.msra.mxu0 %v812
    %2483 = vmatprep.subr.mxu0 %v805
    %2484 = vmatpush1.msra.mxu0 %v804
    %2485 = vmatprep.subr.mxu0 %v797
    %2486 = vmatpush1.msra.mxu0 %v796
    %2487 = vmatprep.subr.mxu0 %v789
    %2488 = vmatpush1.msra.mxu0 %v788
    %2489 = vmatprep.subr.mxu0 %v781
    %2490 = vmatpush1.msra.mxu0 %v780
    %2491 = vmatprep.subr.mxu0 %v773
    %2492 = vmatpush1.msra.mxu0 %v772
    %2493 = vmatprep.subr.mxu0 %v765
    %2494 = vmatpush1.msra.mxu0 %v764
    %2495 = vmatprep.subr.mxu0 %v757
    %2496 = vmatpush1.msra.mxu0 %v756
    %2497 = vmatprep.subr.mxu0 %v749
    %2498 = vmatpush1.msra.mxu0 %v748
    %2499 = vmatprep.subr.mxu0 %v741
    %2500 = vmatpush1.msra.mxu0 %v740
    %2501 = vmatprep.subr.mxu0 %v733
    %2502 = vmatpush1.msra.mxu0 %v732
    %2503 = vmatprep.subr.mxu0 %v981
    %2504 = vmatpush2.msra.mxu0 %v980
    %2505 = vmatprep.subr.mxu0 %v973
    %2506 = vmatpush2.msra.mxu0 %v972
    %2507 = vmatprep.subr.mxu0 %v965
    %2508 = vmatpush2.msra.mxu0 %v964
    %2509 = vmatprep.subr.mxu0 %v957
    %2510 = vmatpush2.msra.mxu0 %v956
    %2511 = vmatprep.subr.mxu0 %v949
    %2512 = vmatpush2.msra.mxu0 %v948
    %2513 = vmatprep.subr.mxu0 %v941
    %2514 = vmatpush2.msra.mxu0 %v940
    %2515 = vmatprep.subr.mxu0 %v933
    %2516 = vmatpush2.msra.mxu0 %v932
    %2517 = vmatprep.subr.mxu0 %v925
    %2518 = vmatpush2.msra.mxu0 %v924
    %2519 = vmatprep.subr.mxu0 %v917
    %2520 = vmatpush2.msra.mxu0 %v916
    %2521 = vmatprep.subr.mxu0 %v909
    %2522 = vmatpush2.msra.mxu0 %v908
    %2523 = vmatprep.subr.mxu0 %v901
    %2524 = vmatpush2.msra.mxu0 %v900
    %2525 = vmatprep.subr.mxu0 %v893
    %2526 = vmatpush2.msra.mxu0 %v892
    %2527 = vmatprep.subr.mxu0 %v885
    %2528 = vmatpush2.msra.mxu0 %v884
    %2529 = vmatprep.subr.mxu0 %v877
    %2530 = vmatpush2.msra.mxu0 %v876
    %2531 = vmatprep.subr.mxu0 %v869
    %2532 = vmatpush2.msra.mxu0 %v868
    %2533 = vmatprep.subr.mxu0 %v861
    %2534 = vmatpush2.msra.mxu0 %v860
    %2535 = vmatprep.mubr.f32.mxu0 %v2395
    %2536 = vmatmul.mubr.f32.gmra.mxu0 %v2362
    %v2537 = vpop.f32.mrf.mxu0
    %v2538 = vadd.f32 0.0, %v2537
    %v2539 = vpop.f32.mrf.mxu0
    %v2540 = vadd.f32 0.0, %v2539
    %2541 = vdwg.mxu0
    %2542 = vmatprep.subr.mxu0 %v855
    %2543 = vmatpush1.msra.mxu0 %v854
    %2544 = vmatprep.subr.mxu0 %v847
    %2545 = vmatpush1.msra.mxu0 %v846
    %2546 = vmatprep.subr.mxu0 %v839
    %2547 = vmatpush1.msra.mxu0 %v838
    %2548 = vmatprep.subr.mxu0 %v831
    %2549 = vmatpush1.msra.mxu0 %v830
    %2550 = vmatprep.subr.mxu0 %v823
    %2551 = vmatpush1.msra.mxu0 %v822
    %2552 = vmatprep.subr.mxu0 %v815
    %2553 = vmatpush1.msra.mxu0 %v814
    %2554 = vmatprep.subr.mxu0 %v807
    %2555 = vmatpush1.msra.mxu0 %v806
    %2556 = vmatprep.subr.mxu0 %v799
    %2557 = vmatpush1.msra.mxu0 %v798
    %2558 = vmatprep.subr.mxu0 %v791
    %2559 = vmatpush1.msra.mxu0 %v790
    %2560 = vmatprep.subr.mxu0 %v783
    %2561 = vmatpush1.msra.mxu0 %v782
    %2562 = vmatprep.subr.mxu0 %v775
    %2563 = vmatpush1.msra.mxu0 %v774
    %2564 = vmatprep.subr.mxu0 %v767
    %2565 = vmatpush1.msra.mxu0 %v766
    %2566 = vmatprep.subr.mxu0 %v759
    %2567 = vmatpush1.msra.mxu0 %v758
    %2568 = vmatprep.subr.mxu0 %v751
    %2569 = vmatpush1.msra.mxu0 %v750
    %2570 = vmatprep.subr.mxu0 %v743
    %2571 = vmatpush1.msra.mxu0 %v742
    %2572 = vmatprep.subr.mxu0 %v735
    %2573 = vmatpush1.msra.mxu0 %v734
    %2574 = vmatprep.subr.mxu0 %v983
    %2575 = vmatpush2.msra.mxu0 %v982
    %2576 = vmatprep.subr.mxu0 %v975
    %2577 = vmatpush2.msra.mxu0 %v974
    %2578 = vmatprep.subr.mxu0 %v967
    %2579 = vmatpush2.msra.mxu0 %v966
    %2580 = vmatprep.subr.mxu0 %v959
    %2581 = vmatpush2.msra.mxu0 %v958
    %2582 = vmatprep.subr.mxu0 %v951
    %2583 = vmatpush2.msra.mxu0 %v950
    %2584 = vmatprep.subr.mxu0 %v943
    %2585 = vmatpush2.msra.mxu0 %v942
    %2586 = vmatprep.subr.mxu0 %v935
    %2587 = vmatpush2.msra.mxu0 %v934
    %2588 = vmatprep.subr.mxu0 %v927
    %2589 = vmatpush2.msra.mxu0 %v926
    %2590 = vmatprep.subr.mxu0 %v919
    %2591 = vmatpush2.msra.mxu0 %v918
    %2592 = vmatprep.subr.mxu0 %v911
    %2593 = vmatpush2.msra.mxu0 %v910
    %2594 = vmatprep.subr.mxu0 %v903
    %2595 = vmatpush2.msra.mxu0 %v902
    %2596 = vmatprep.subr.mxu0 %v895
    %2597 = vmatpush2.msra.mxu0 %v894
    %2598 = vmatprep.subr.mxu0 %v887
    %2599 = vmatpush2.msra.mxu0 %v886
    %2600 = vmatprep.subr.mxu0 %v879
    %2601 = vmatpush2.msra.mxu0 %v878
    %2602 = vmatprep.subr.mxu0 %v871
    %2603 = vmatpush2.msra.mxu0 %v870
    %2604 = vmatprep.subr.mxu0 %v863
    %2605 = vmatpush2.msra.mxu0 %v862
    %2606 = vmatprep.mubr.f32.mxu0 %v2395
    %2607 = vmatmul.mubr.f32.gmra.mxu0 %v2362
    %v2608 = vpop.f32.mrf.mxu0
    %v2609 = vadd.f32 0.0, %v2608
    %v2610 = vpop.f32.mrf.mxu0
    %v2611 = vadd.f32 0.0, %v2610
    %2612 = vdwg.mxu0
    %2613 = vmatprep.subr.mxu0 %v857
    %2614 = vmatpush1.msra.mxu0 %v856
    %2615 = vmatprep.subr.mxu0 %v849
    %2616 = vmatpush1.msra.mxu0 %v848
    %2617 = vmatprep.subr.mxu0 %v841
    %2618 = vmatpush1.msra.mxu0 %v840
    %2619 = vmatprep.subr.mxu0 %v833
    %2620 = vmatpush1.msra.mxu0 %v832
    %2621 = vmatprep.subr.mxu0 %v825
    %2622 = vmatpush1.msra.mxu0 %v824
    %2623 = vmatprep.subr.mxu0 %v817
    %2624 = vmatpush1.msra.mxu0 %v816
    %2625 = vmatprep.subr.mxu0 %v809
    %2626 = vmatpush1.msra.mxu0 %v808
    %2627 = vmatprep.subr.mxu0 %v801
    %2628 = vmatpush1.msra.mxu0 %v800
    %2629 = vmatprep.subr.mxu0 %v793
    %2630 = vmatpush1.msra.mxu0 %v792
    %2631 = vmatprep.subr.mxu0 %v785
    %2632 = vmatpush1.msra.mxu0 %v784
    %2633 = vmatprep.subr.mxu0 %v777
    %2634 = vmatpush1.msra.mxu0 %v776
    %2635 = vmatprep.subr.mxu0 %v769
    %2636 = vmatpush1.msra.mxu0 %v768
    %2637 = vmatprep.subr.mxu0 %v761
    %2638 = vmatpush1.msra.mxu0 %v760
    %2639 = vmatprep.subr.mxu0 %v753
    %2640 = vmatpush1.msra.mxu0 %v752
    %2641 = vmatprep.subr.mxu0 %v745
    %2642 = vmatpush1.msra.mxu0 %v744
    %2643 = vmatprep.subr.mxu0 %v737
    %2644 = vmatpush1.msra.mxu0 %v736
    %2645 = vmatprep.subr.mxu0 %v985
    %2646 = vmatpush2.msra.mxu0 %v984
    %2647 = vmatprep.subr.mxu0 %v977
    %2648 = vmatpush2.msra.mxu0 %v976
    %2649 = vmatprep.subr.mxu0 %v969
    %2650 = vmatpush2.msra.mxu0 %v968
    %2651 = vmatprep.subr.mxu0 %v961
    %2652 = vmatpush2.msra.mxu0 %v960
    %2653 = vmatprep.subr.mxu0 %v953
    %2654 = vmatpush2.msra.mxu0 %v952
    %2655 = vmatprep.subr.mxu0 %v945
    %2656 = vmatpush2.msra.mxu0 %v944
    %2657 = vmatprep.subr.mxu0 %v937
    %2658 = vmatpush2.msra.mxu0 %v936
    %2659 = vmatprep.subr.mxu0 %v929
    %2660 = vmatpush2.msra.mxu0 %v928
    %2661 = vmatprep.subr.mxu0 %v921
    %2662 = vmatpush2.msra.mxu0 %v920
    %2663 = vmatprep.subr.mxu0 %v913
    %2664 = vmatpush2.msra.mxu0 %v912
    %2665 = vmatprep.subr.mxu0 %v905
    %2666 = vmatpush2.msra.mxu0 %v904
    %2667 = vmatprep.subr.mxu0 %v897
    %2668 = vmatpush2.msra.mxu0 %v896
    %2669 = vmatprep.subr.mxu0 %v889
    %2670 = vmatpush2.msra.mxu0 %v888
    %2671 = vmatprep.subr.mxu0 %v881
    %2672 = vmatpush2.msra.mxu0 %v880
    %2673 = vmatprep.subr.mxu0 %v873
    %2674 = vmatpush2.msra.mxu0 %v872
    %2675 = vmatprep.subr.mxu0 %v865
    %2676 = vmatpush2.msra.mxu0 %v864
    %2677 = vmatprep.mubr.f32.mxu0 %v2395
    %2678 = vmatmul.mubr.f32.gmra.mxu0 %v2362
    %v2679 = vpop.f32.mrf.mxu0
    %v2680 = vadd.f32 0.0, %v2679
    %v2681 = vpop.f32.mrf.mxu0
    %v2682 = vadd.f32 0.0, %v2681
    %2683 = vdwg.mxu0
    %s2684 = scalar_lea.vmem [#allocation2], 128
    %v2685 = vld [vmem:[%s2684] sm:$0xff]
    %v2686 = vld [vmem:[%s2684 + $0x8] sm:$0xff]
    %v2687 = vld [vmem:[%s2684 + $0x10] sm:$0xff]
    %v2688 = vld [vmem:[%s2684 + $0x18] sm:$0xff]
    %v2689 = vadd.f32 %v2685, %v2467
    %v2690 = vadd.f32 %v2686, %v2469
    %v2691 = vadd.f32 %v2687, %v2538
    %v2692 = vadd.f32 %v2688, %v2540
    %v2693 = vxor.u32 %v2689, 2147483648
    %v2694 = vmul.f32 %v2693, 1.442695
    %v2695 = vpow.pop %v2694
    %v2696 = vadd.f32 %v2695, 1.0
    %v2697 = vrcp.pop %v2696
    %v2698 = vmul.f32 1.0, %v2697
    %v2699 = vxor.u32 %v2690, 2147483648
    %v2700 = vmul.f32 %v2699, 1.442695
    %v2701 = vpow.pop %v2700
    %v2702 = vadd.f32 %v2701, 1.0
    %v2703 = vrcp.pop %v2702
    %v2704 = vmul.f32 1.0, %v2703
    %v2705 = vtanh.pop %v2691
    %v2706 = vxor.u32 %v2692, 2147483648
    %v2707 = vmul.f32 %v2706, 1.442695
    %v2708 = vpow.pop %v2707
    %v2709 = vadd.f32 %v2708, 1.0
    %v2710 = vrcp.pop %v2709
    %v2711 = vmul.f32 1.0, %v2710
    %v2712 = vmul.f32 %v2704, %v2360
    %v2713 = vmul.f32 %v2698, %v2705
    %v2714 = vadd.f32 %v2712, %v2713
    %v2715 = vtanh.pop %v2714
    %v2716 = vmul.f32 %v2711, %v2715
    %s2717 = scalar_lea.vmem [#allocation3], 96
    %v2718 = vld [vmem:[%s2717] sm:$0xff]
    %v2719 = vld [vmem:[%s2717 + $0x8] sm:$0xff]
    %v2720 = vld [vmem:[%s2717 + $0x10] sm:$0xff]
    %v2721 = vld [vmem:[%s2717 + $0x18] sm:$0xff]
    %v2722 = vadd.f32 %v2718, %v2609
    %v2723 = vadd.f32 %v2719, %v2611
    %v2724 = vadd.f32 %v2720, %v2680
    %v2725 = vadd.f32 %v2721, %v2682
    %v2726 = vxor.u32 %v2722, 2147483648
    %v2727 = vmul.f32 %v2726, 1.442695
    %v2728 = vpow.pop %v2727
    %v2729 = vadd.f32 %v2728, 1.0
    %v2730 = vrcp.pop %v2729
    %v2731 = vmul.f32 1.0, %v2730
    %v2732 = vxor.u32 %v2723, 2147483648
    %v2733 = vmul.f32 %v2732, 1.442695
    %v2734 = vpow.pop %v2733
    %v2735 = vadd.f32 %v2734, 1.0
    %v2736 = vrcp.pop %v2735
    %v2737 = vmul.f32 1.0, %v2736
    %v2738 = vtanh.pop %v2724
    %v2739 = vxor.u32 %v2725, 2147483648
    %v2740 = vmul.f32 %v2739, 1.442695
    %v2741 = vpow.pop %v2740
    %v2742 = vadd.f32 %v2741, 1.0
    %v2743 = vrcp.pop %v2742
    %v2744 = vmul.f32 1.0, %v2743
    %v2745 = vmul.f32 %v2737, %v2393
    %v2746 = vmul.f32 %v2731, %v2738
    %v2747 = vadd.f32 %v2745, %v2746
    %v2748 = vtanh.pop %v2747
    %v2749 = vmul.f32 %v2744, %v2748
    %s2750 = scalar_lea.vmem [#allocation4], 32
    %2751 = vst [vmem:[%s2750] sm:$0xff] %v2716
    %s2752 = scalar_lea.vmem [#allocation5], 24
    %2753 = vst [vmem:[%s2752] sm:$0xff] %v2749
    %2754 = vmatprep.subr.mxu0 %v851
    %2755 = vmatpush1.msra.mxu0 %v850
    %2756 = vmatprep.subr.mxu0 %v843
    %2757 = vmatpush1.msra.mxu0 %v842
    %2758 = vmatprep.subr.mxu0 %v835
    %2759 = vmatpush1.msra.mxu0 %v834
    %2760 = vmatprep.subr.mxu0 %v827
    %2761 = vmatpush1.msra.mxu0 %v826
    %2762 = vmatprep.subr.mxu0 %v819
    %2763 = vmatpush1.msra.mxu0 %v818
    %2764 = vmatprep.subr.mxu0 %v811
    %2765 = vmatpush1.msra.mxu0 %v810
    %2766 = vmatprep.subr.mxu0 %v803
    %2767 = vmatpush1.msra.mxu0 %v802
    %2768 = vmatprep.subr.mxu0 %v795
    %2769 = vmatpush1.msra.mxu0 %v794
    %2770 = vmatprep.subr.mxu0 %v787
    %2771 = vmatpush1.msra.mxu0 %v786
    %2772 = vmatprep.subr.mxu0 %v779
    %2773 = vmatpush1.msra.mxu0 %v778
    %2774 = vmatprep.subr.mxu0 %v771
    %2775 = vmatpush1.msra.mxu0 %v770
    %2776 = vmatprep.subr.mxu0 %v763
    %2777 = vmatpush1.msra.mxu0 %v762
    %2778 = vmatprep.subr.mxu0 %v755
    %2779 = vmatpush1.msra.mxu0 %v754
    %2780 = vmatprep.subr.mxu0 %v747
    %2781 = vmatpush1.msra.mxu0 %v746
    %2782 = vmatprep.subr.mxu0 %v739
    %2783 = vmatpush1.msra.mxu0 %v738
    %2784 = vmatprep.subr.mxu0 %v731
    %2785 = vmatpush1.msra.mxu0 %v730
    %2786 = vmatprep.subr.mxu0 %v979
    %2787 = vmatpush2.msra.mxu0 %v978
    %2788 = vmatprep.subr.mxu0 %v971
    %2789 = vmatpush2.msra.mxu0 %v970
    %2790 = vmatprep.subr.mxu0 %v963
    %2791 = vmatpush2.msra.mxu0 %v962
    %2792 = vmatprep.subr.mxu0 %v955
    %2793 = vmatpush2.msra.mxu0 %v954
    %2794 = vmatprep.subr.mxu0 %v947
    %2795 = vmatpush2.msra.mxu0 %v946
    %2796 = vmatprep.subr.mxu0 %v939
    %2797 = vmatpush2.msra.mxu0 %v938
    %2798 = vmatprep.subr.mxu0 %v931
    %2799 = vmatpush2.msra.mxu0 %v930
    %2800 = vmatprep.subr.mxu0 %v923
    %2801 = vmatpush2.msra.mxu0 %v922
    %2802 = vmatprep.subr.mxu0 %v915
    %2803 = vmatpush2.msra.mxu0 %v914
    %2804 = vmatprep.subr.mxu0 %v907
    %2805 = vmatpush2.msra.mxu0 %v906
    %2806 = vmatprep.subr.mxu0 %v899
    %2807 = vmatpush2.msra.mxu0 %v898
    %2808 = vmatprep.subr.mxu0 %v891
    %2809 = vmatpush2.msra.mxu0 %v890
    %2810 = vmatprep.subr.mxu0 %v883
    %2811 = vmatpush2.msra.mxu0 %v882
    %2812 = vmatprep.subr.mxu0 %v875
    %2813 = vmatpush2.msra.mxu0 %v874
    %2814 = vmatprep.subr.mxu0 %v867
    %2815 = vmatpush2.msra.mxu0 %v866
    %2816 = vmatprep.subr.mxu0 %v859
    %2817 = vmatpush2.msra.mxu0 %v858
    %2818 = vmatprep.mubr.f32.mxu0 %v2749
    %2819 = vmatmul.mubr.f32.gmra.mxu0 %v2716
    %v2820 = vpop.f32.mrf.mxu0
    %v2821 = vadd.f32 0.0, %v2820
    %v2822 = vpop.f32.mrf.mxu0
    %v2823 = vadd.f32 0.0, %v2822
    %2824 = vdwg.mxu0
    %2825 = vmatprep.subr.mxu0 %v853
    %2826 = vmatpush1.msra.mxu0 %v852
    %2827 = vmatprep.subr.mxu0 %v845
    %2828 = vmatpush1.msra.mxu0 %v844
    %2829 = vmatprep.subr.mxu0 %v837
    %2830 = vmatpush1.msra.mxu0 %v836
    %2831 = vmatprep.subr.mxu0 %v829
    %2832 = vmatpush1.msra.mxu0 %v828
    %2833 = vmatprep.subr.mxu0 %v821
    %2834 = vmatpush1.msra.mxu0 %v820
    %2835 = vmatprep.subr.mxu0 %v813
    %2836 = vmatpush1.msra.mxu0 %v812
    %2837 = vmatprep.subr.mxu0 %v805
    %2838 = vmatpush1.msra.mxu0 %v804
    %2839 = vmatprep.subr.mxu0 %v797
    %2840 = vmatpush1.msra.mxu0 %v796
    %2841 = vmatprep.subr.mxu0 %v789
    %2842 = vmatpush1.msra.mxu0 %v788
    %2843 = vmatprep.subr.mxu0 %v781
    %2844 = vmatpush1.msra.mxu0 %v780
    %2845 = vmatprep.subr.mxu0 %v773
    %2846 = vmatpush1.msra.mxu0 %v772
    %2847 = vmatprep.subr.mxu0 %v765
    %2848 = vmatpush1.msra.mxu0 %v764
    %2849 = vmatprep.subr.mxu0 %v757
    %2850 = vmatpush1.msra.mxu0 %v756
    %2851 = vmatprep.subr.mxu0 %v749
    %2852 = vmatpush1.msra.mxu0 %v748
    %2853 = vmatprep.subr.mxu0 %v741
    %2854 = vmatpush1.msra.mxu0 %v740
    %2855 = vmatprep.subr.mxu0 %v733
    %2856 = vmatpush1.msra.mxu0 %v732
    %2857 = vmatprep.subr.mxu0 %v981
    %2858 = vmatpush2.msra.mxu0 %v980
    %2859 = vmatprep.subr.mxu0 %v973
    %2860 = vmatpush2.msra.mxu0 %v972
    %2861 = vmatprep.subr.mxu0 %v965
    %2862 = vmatpush2.msra.mxu0 %v964
    %2863 = vmatprep.subr.mxu0 %v957
    %2864 = vmatpush2.msra.mxu0 %v956
    %2865 = vmatprep.subr.mxu0 %v949
    %2866 = vmatpush2.msra.mxu0 %v948
    %2867 = vmatprep.subr.mxu0 %v941
    %2868 = vmatpush2.msra.mxu0 %v940
    %2869 = vmatprep.subr.mxu0 %v933
    %2870 = vmatpush2.msra.mxu0 %v932
    %2871 = vmatprep.subr.mxu0 %v925
    %2872 = vmatpush2.msra.mxu0 %v924
    %2873 = vmatprep.subr.mxu0 %v917
    %2874 = vmatpush2.msra.mxu0 %v916
    %2875 = vmatprep.subr.mxu0 %v909
    %2876 = vmatpush2.msra.mxu0 %v908
    %2877 = vmatprep.subr.mxu0 %v901
    %2878 = vmatpush2.msra.mxu0 %v900
    %2879 = vmatprep.subr.mxu0 %v893
    %2880 = vmatpush2.msra.mxu0 %v892
    %2881 = vmatprep.subr.mxu0 %v885
    %2882 = vmatpush2.msra.mxu0 %v884
    %2883 = vmatprep.subr.mxu0 %v877
    %2884 = vmatpush2.msra.mxu0 %v876
    %2885 = vmatprep.subr.mxu0 %v869
    %2886 = vmatpush2.msra.mxu0 %v868
    %2887 = vmatprep.subr.mxu0 %v861
    %2888 = vmatpush2.msra.mxu0 %v860
    %2889 = vmatprep.mubr.f32.mxu0 %v2749
    %2890 = vmatmul.mubr.f32.gmra.mxu0 %v2716
    %v2891 = vpop.f32.mrf.mxu0
    %v2892 = vadd.f32 0.0, %v2891
    %v2893 = vpop.f32.mrf.mxu0
    %v2894 = vadd.f32 0.0, %v2893
    %2895 = vdwg.mxu0
    %2896 = vmatprep.subr.mxu0 %v855
    %2897 = vmatpush1.msra.mxu0 %v854
    %2898 = vmatprep.subr.mxu0 %v847
    %2899 = vmatpush1.msra.mxu0 %v846
    %2900 = vmatprep.subr.mxu0 %v839
    %2901 = vmatpush1.msra.mxu0 %v838
    %2902 = vmatprep.subr.mxu0 %v831
    %2903 = vmatpush1.msra.mxu0 %v830
    %2904 = vmatprep.subr.mxu0 %v823
    %2905 = vmatpush1.msra.mxu0 %v822
    %2906 = vmatprep.subr.mxu0 %v815
    %2907 = vmatpush1.msra.mxu0 %v814
    %2908 = vmatprep.subr.mxu0 %v807
    %2909 = vmatpush1.msra.mxu0 %v806
    %2910 = vmatprep.subr.mxu0 %v799
    %2911 = vmatpush1.msra.mxu0 %v798
    %2912 = vmatprep.subr.mxu0 %v791
    %2913 = vmatpush1.msra.mxu0 %v790
    %2914 = vmatprep.subr.mxu0 %v783
    %2915 = vmatpush1.msra.mxu0 %v782
    %2916 = vmatprep.subr.mxu0 %v775
    %2917 = vmatpush1.msra.mxu0 %v774
    %2918 = vmatprep.subr.mxu0 %v767
    %2919 = vmatpush1.msra.mxu0 %v766
    %2920 = vmatprep.subr.mxu0 %v759
    %2921 = vmatpush1.msra.mxu0 %v758
    %2922 = vmatprep.subr.mxu0 %v751
    %2923 = vmatpush1.msra.mxu0 %v750
    %2924 = vmatprep.subr.mxu0 %v743
    %2925 = vmatpush1.msra.mxu0 %v742
    %2926 = vmatprep.subr.mxu0 %v735
    %2927 = vmatpush1.msra.mxu0 %v734
    %2928 = vmatprep.subr.mxu0 %v983
    %2929 = vmatpush2.msra.mxu0 %v982
    %2930 = vmatprep.subr.mxu0 %v975
    %2931 = vmatpush2.msra.mxu0 %v974
    %2932 = vmatprep.subr.mxu0 %v967
    %2933 = vmatpush2.msra.mxu0 %v966
    %2934 = vmatprep.subr.mxu0 %v959
    %2935 = vmatpush2.msra.mxu0 %v958
    %2936 = vmatprep.subr.mxu0 %v951
    %2937 = vmatpush2.msra.mxu0 %v950
    %2938 = vmatprep.subr.mxu0 %v943
    %2939 = vmatpush2.msra.mxu0 %v942
    %2940 = vmatprep.subr.mxu0 %v935
    %2941 = vmatpush2.msra.mxu0 %v934
    %2942 = vmatprep.subr.mxu0 %v927
    %2943 = vmatpush2.msra.mxu0 %v926
    %2944 = vmatprep.subr.mxu0 %v919
    %2945 = vmatpush2.msra.mxu0 %v918
    %2946 = vmatprep.subr.mxu0 %v911
    %2947 = vmatpush2.msra.mxu0 %v910
    %2948 = vmatprep.subr.mxu0 %v903
    %2949 = vmatpush2.msra.mxu0 %v902
    %2950 = vmatprep.subr.mxu0 %v895
    %2951 = vmatpush2.msra.mxu0 %v894
    %2952 = vmatprep.subr.mxu0 %v887
    %2953 = vmatpush2.msra.mxu0 %v886
    %2954 = vmatprep.subr.mxu0 %v879
    %2955 = vmatpush2.msra.mxu0 %v878
    %2956 = vmatprep.subr.mxu0 %v871
    %2957 = vmatpush2.msra.mxu0 %v870
    %2958 = vmatprep.subr.mxu0 %v863
    %2959 = vmatpush2.msra.mxu0 %v862
    %2960 = vmatprep.mubr.f32.mxu0 %v2749
    %2961 = vmatmul.mubr.f32.gmra.mxu0 %v2716
    %v2962 = vpop.f32.mrf.mxu0
    %v2963 = vadd.f32 0.0, %v2962
    %v2964 = vpop.f32.mrf.mxu0
    %v2965 = vadd.f32 0.0, %v2964
    %2966 = vdwg.mxu0
    %2967 = vmatprep.subr.mxu0 %v857
    %2968 = vmatpush1.msra.mxu0 %v856
    %2969 = vmatprep.subr.mxu0 %v849
    %2970 = vmatpush1.msra.mxu0 %v848
    %2971 = vmatprep.subr.mxu0 %v841
    %2972 = vmatpush1.msra.mxu0 %v840
    %2973 = vmatprep.subr.mxu0 %v833
    %2974 = vmatpush1.msra.mxu0 %v832
    %2975 = vmatprep.subr.mxu0 %v825
    %2976 = vmatpush1.msra.mxu0 %v824
    %2977 = vmatprep.subr.mxu0 %v817
    %2978 = vmatpush1.msra.mxu0 %v816
    %2979 = vmatprep.subr.mxu0 %v809
    %2980 = vmatpush1.msra.mxu0 %v808
    %2981 = vmatprep.subr.mxu0 %v801
    %2982 = vmatpush1.msra.mxu0 %v800
    %2983 = vmatprep.subr.mxu0 %v793
    %2984 = vmatpush1.msra.mxu0 %v792
    %2985 = vmatprep.subr.mxu0 %v785
    %2986 = vmatpush1.msra.mxu0 %v784
    %2987 = vmatprep.subr.mxu0 %v777
    %2988 = vmatpush1.msra.mxu0 %v776
    %2989 = vmatprep.subr.mxu0 %v769
    %2990 = vmatpush1.msra.mxu0 %v768
    %2991 = vmatprep.subr.mxu0 %v761
    %2992 = vmatpush1.msra.mxu0 %v760
    %2993 = vmatprep.subr.mxu0 %v753
    %2994 = vmatpush1.msra.mxu0 %v752
    %2995 = vmatprep.subr.mxu0 %v745
    %2996 = vmatpush1.msra.mxu0 %v744
    %2997 = vmatprep.subr.mxu0 %v737
    %2998 = vmatpush1.msra.mxu0 %v736
    %2999 = vmatprep.subr.mxu0 %v985
    %3000 = vmatpush2.msra.mxu0 %v984
    %3001 = vmatprep.subr.mxu0 %v977
    %3002 = vmatpush2.msra.mxu0 %v976
    %3003 = vmatprep.subr.mxu0 %v969
    %3004 = vmatpush2.msra.mxu0 %v968
    %3005 = vmatprep.subr.mxu0 %v961
    %3006 = vmatpush2.msra.mxu0 %v960
    %3007 = vmatprep.subr.mxu0 %v953
    %3008 = vmatpush2.msra.mxu0 %v952
    %3009 = vmatprep.subr.mxu0 %v945
    %3010 = vmatpush2.msra.mxu0 %v944
    %3011 = vmatprep.subr.mxu0 %v937
    %3012 = vmatpush2.msra.mxu0 %v936
    %3013 = vmatprep.subr.mxu0 %v929
    %3014 = vmatpush2.msra.mxu0 %v928
    %3015 = vmatprep.subr.mxu0 %v921
    %3016 = vmatpush2.msra.mxu0 %v920
    %3017 = vmatprep.subr.mxu0 %v913
    %3018 = vmatpush2.msra.mxu0 %v912
    %3019 = vmatprep.subr.mxu0 %v905
    %3020 = vmatpush2.msra.mxu0 %v904
    %3021 = vmatprep.subr.mxu0 %v897
    %3022 = vmatpush2.msra.mxu0 %v896
    %3023 = vmatprep.subr.mxu0 %v889
    %3024 = vmatpush2.msra.mxu0 %v888
    %3025 = vmatprep.subr.mxu0 %v881
    %3026 = vmatpush2.msra.mxu0 %v880
    %3027 = vmatprep.subr.mxu0 %v873
    %3028 = vmatpush2.msra.mxu0 %v872
    %3029 = vmatprep.subr.mxu0 %v865
    %3030 = vmatpush2.msra.mxu0 %v864
    %3031 = vmatprep.mubr.f32.mxu0 %v2749
    %3032 = vmatmul.mubr.f32.gmra.mxu0 %v2716
    %v3033 = vpop.f32.mrf.mxu0
    %v3034 = vadd.f32 0.0, %v3033
    %v3035 = vpop.f32.mrf.mxu0
    %v3036 = vadd.f32 0.0, %v3035
    %3037 = vdwg.mxu0
    %s3038 = scalar_lea.vmem [#allocation2], 160
    %v3039 = vld [vmem:[%s3038] sm:$0xff]
    %v3040 = vld [vmem:[%s3038 + $0x8] sm:$0xff]
    %v3041 = vld [vmem:[%s3038 + $0x10] sm:$0xff]
    %v3042 = vld [vmem:[%s3038 + $0x18] sm:$0xff]
    %v3043 = vadd.f32 %v3039, %v2821
    %v3044 = vadd.f32 %v3040, %v2823
    %v3045 = vadd.f32 %v3041, %v2892
    %v3046 = vadd.f32 %v3042, %v2894
    %v3047 = vxor.u32 %v3043, 2147483648
    %v3048 = vmul.f32 %v3047, 1.442695
    %v3049 = vpow.pop %v3048
    %v3050 = vadd.f32 %v3049, 1.0
    %v3051 = vrcp.pop %v3050
    %v3052 = vmul.f32 1.0, %v3051
    %v3053 = vxor.u32 %v3044, 2147483648
    %v3054 = vmul.f32 %v3053, 1.442695
    %v3055 = vpow.pop %v3054
    %v3056 = vadd.f32 %v3055, 1.0
    %v3057 = vrcp.pop %v3056
    %v3058 = vmul.f32 1.0, %v3057
    %v3059 = vtanh.pop %v3045
    %v3060 = vxor.u32 %v3046, 2147483648
    %v3061 = vmul.f32 %v3060, 1.442695
    %v3062 = vpow.pop %v3061
    %v3063 = vadd.f32 %v3062, 1.0
    %v3064 = vrcp.pop %v3063
    %v3065 = vmul.f32 1.0, %v3064
    %v3066 = vmul.f32 %v3058, %v2714
    %v3067 = vmul.f32 %v3052, %v3059
    %v3068 = vadd.f32 %v3066, %v3067
    %v3069 = vtanh.pop %v3068
    %v3070 = vmul.f32 %v3065, %v3069
    %s3071 = scalar_lea.vmem [#allocation3], 64
    %v3072 = vld [vmem:[%s3071] sm:$0xff]
    %v3073 = vld [vmem:[%s3071 + $0x8] sm:$0xff]
    %v3074 = vld [vmem:[%s3071 + $0x10] sm:$0xff]
    %v3075 = vld [vmem:[%s3071 + $0x18] sm:$0xff]
    %v3076 = vadd.f32 %v3072, %v2963
    %v3077 = vadd.f32 %v3073, %v2965
    %v3078 = vadd.f32 %v3074, %v3034
    %v3079 = vadd.f32 %v3075, %v3036
    %v3080 = vxor.u32 %v3076, 2147483648
    %v3081 = vmul.f32 %v3080, 1.442695
    %v3082 = vpow.pop %v3081
    %v3083 = vadd.f32 %v3082, 1.0
    %v3084 = vrcp.pop %v3083
    %v3085 = vmul.f32 1.0, %v3084
    %v3086 = vxor.u32 %v3077, 2147483648
    %v3087 = vmul.f32 %v3086, 1.442695
    %v3088 = vpow.pop %v3087
    %v3089 = vadd.f32 %v3088, 1.0
    %v3090 = vrcp.pop %v3089
    %v3091 = vmul.f32 1.0, %v3090
    %v3092 = vtanh.pop %v3078
    %v3093 = vxor.u32 %v3079, 2147483648
    %v3094 = vmul.f32 %v3093, 1.442695
    %v3095 = vpow.pop %v3094
    %v3096 = vadd.f32 %v3095, 1.0
    %v3097 = vrcp.pop %v3096
    %v3098 = vmul.f32 1.0, %v3097
    %v3099 = vmul.f32 %v3091, %v2747
    %v3100 = vmul.f32 %v3085, %v3092
    %v3101 = vadd.f32 %v3099, %v3100
    %v3102 = vtanh.pop %v3101
    %v3103 = vmul.f32 %v3098, %v3102
    %s3104 = scalar_lea.vmem [#allocation4], 40
    %3105 = vst [vmem:[%s3104] sm:$0xff] %v3070
    %s3106 = scalar_lea.vmem [#allocation5], 16
    %3107 = vst [vmem:[%s3106] sm:$0xff] %v3103
    %3108 = vmatprep.subr.mxu0 %v851
    %3109 = vmatpush1.msra.mxu0 %v850
    %3110 = vmatprep.subr.mxu0 %v843
    %3111 = vmatpush1.msra.mxu0 %v842
    %3112 = vmatprep.subr.mxu0 %v835
    %3113 = vmatpush1.msra.mxu0 %v834
    %3114 = vmatprep.subr.mxu0 %v827
    %3115 = vmatpush1.msra.mxu0 %v826
    %3116 = vmatprep.subr.mxu0 %v819
    %3117 = vmatpush1.msra.mxu0 %v818
    %3118 = vmatprep.subr.mxu0 %v811
    %3119 = vmatpush1.msra.mxu0 %v810
    %3120 = vmatprep.subr.mxu0 %v803
    %3121 = vmatpush1.msra.mxu0 %v802
    %3122 = vmatprep.subr.mxu0 %v795
    %3123 = vmatpush1.msra.mxu0 %v794
    %3124 = vmatprep.subr.mxu0 %v787
    %3125 = vmatpush1.msra.mxu0 %v786
    %3126 = vmatprep.subr.mxu0 %v779
    %3127 = vmatpush1.msra.mxu0 %v778
    %3128 = vmatprep.subr.mxu0 %v771
    %3129 = vmatpush1.msra.mxu0 %v770
    %3130 = vmatprep.subr.mxu0 %v763
    %3131 = vmatpush1.msra.mxu0 %v762
    %3132 = vmatprep.subr.mxu0 %v755
    %3133 = vmatpush1.msra.mxu0 %v754
    %3134 = vmatprep.subr.mxu0 %v747
    %3135 = vmatpush1.msra.mxu0 %v746
    %3136 = vmatprep.subr.mxu0 %v739
    %3137 = vmatpush1.msra.mxu0 %v738
    %3138 = vmatprep.subr.mxu0 %v731
    %3139 = vmatpush1.msra.mxu0 %v730
    %3140 = vmatprep.subr.mxu0 %v979
    %3141 = vmatpush2.msra.mxu0 %v978
    %3142 = vmatprep.subr.mxu0 %v971
    %3143 = vmatpush2.msra.mxu0 %v970
    %3144 = vmatprep.subr.mxu0 %v963
    %3145 = vmatpush2.msra.mxu0 %v962
    %3146 = vmatprep.subr.mxu0 %v955
    %3147 = vmatpush2.msra.mxu0 %v954
    %3148 = vmatprep.subr.mxu0 %v947
    %3149 = vmatpush2.msra.mxu0 %v946
    %3150 = vmatprep.subr.mxu0 %v939
    %3151 = vmatpush2.msra.mxu0 %v938
    %3152 = vmatprep.subr.mxu0 %v931
    %3153 = vmatpush2.msra.mxu0 %v930
    %3154 = vmatprep.subr.mxu0 %v923
    %3155 = vmatpush2.msra.mxu0 %v922
    %3156 = vmatprep.subr.mxu0 %v915
    %3157 = vmatpush2.msra.mxu0 %v914
    %3158 = vmatprep.subr.mxu0 %v907
    %3159 = vmatpush2.msra.mxu0 %v906
    %3160 = vmatprep.subr.mxu0 %v899
    %3161 = vmatpush2.msra.mxu0 %v898
    %3162 = vmatprep.subr.mxu0 %v891
    %3163 = vmatpush2.msra.mxu0 %v890
    %3164 = vmatprep.subr.mxu0 %v883
    %3165 = vmatpush2.msra.mxu0 %v882
    %3166 = vmatprep.subr.mxu0 %v875
    %3167 = vmatpush2.msra.mxu0 %v874
    %3168 = vmatprep.subr.mxu0 %v867
    %3169 = vmatpush2.msra.mxu0 %v866
    %3170 = vmatprep.subr.mxu0 %v859
    %3171 = vmatpush2.msra.mxu0 %v858
    %3172 = vmatprep.mubr.f32.mxu0 %v3103
    %3173 = vmatmul.mubr.f32.gmra.mxu0 %v3070
    %v3174 = vpop.f32.mrf.mxu0
    %v3175 = vadd.f32 0.0, %v3174
    %v3176 = vpop.f32.mrf.mxu0
    %v3177 = vadd.f32 0.0, %v3176
    %3178 = vdwg.mxu0
    %3179 = vmatprep.subr.mxu0 %v853
    %3180 = vmatpush1.msra.mxu0 %v852
    %3181 = vmatprep.subr.mxu0 %v845
    %3182 = vmatpush1.msra.mxu0 %v844
    %3183 = vmatprep.subr.mxu0 %v837
    %3184 = vmatpush1.msra.mxu0 %v836
    %3185 = vmatprep.subr.mxu0 %v829
    %3186 = vmatpush1.msra.mxu0 %v828
    %3187 = vmatprep.subr.mxu0 %v821
    %3188 = vmatpush1.msra.mxu0 %v820
    %3189 = vmatprep.subr.mxu0 %v813
    %3190 = vmatpush1.msra.mxu0 %v812
    %3191 = vmatprep.subr.mxu0 %v805
    %3192 = vmatpush1.msra.mxu0 %v804
    %3193 = vmatprep.subr.mxu0 %v797
    %3194 = vmatpush1.msra.mxu0 %v796
    %3195 = vmatprep.subr.mxu0 %v789
    %3196 = vmatpush1.msra.mxu0 %v788
    %3197 = vmatprep.subr.mxu0 %v781
    %3198 = vmatpush1.msra.mxu0 %v780
    %3199 = vmatprep.subr.mxu0 %v773
    %3200 = vmatpush1.msra.mxu0 %v772
    %3201 = vmatprep.subr.mxu0 %v765
    %3202 = vmatpush1.msra.mxu0 %v764
    %3203 = vmatprep.subr.mxu0 %v757
    %3204 = vmatpush1.msra.mxu0 %v756
    %3205 = vmatprep.subr.mxu0 %v749
    %3206 = vmatpush1.msra.mxu0 %v748
    %3207 = vmatprep.subr.mxu0 %v741
    %3208 = vmatpush1.msra.mxu0 %v740
    %3209 = vmatprep.subr.mxu0 %v733
    %3210 = vmatpush1.msra.mxu0 %v732
    %3211 = vmatprep.subr.mxu0 %v981
    %3212 = vmatpush2.msra.mxu0 %v980
    %3213 = vmatprep.subr.mxu0 %v973
    %3214 = vmatpush2.msra.mxu0 %v972
    %3215 = vmatprep.subr.mxu0 %v965
    %3216 = vmatpush2.msra.mxu0 %v964
    %3217 = vmatprep.subr.mxu0 %v957
    %3218 = vmatpush2.msra.mxu0 %v956
    %3219 = vmatprep.subr.mxu0 %v949
    %3220 = vmatpush2.msra.mxu0 %v948
    %3221 = vmatprep.subr.mxu0 %v941
    %3222 = vmatpush2.msra.mxu0 %v940
    %3223 = vmatprep.subr.mxu0 %v933
    %3224 = vmatpush2.msra.mxu0 %v932
    %3225 = vmatprep.subr.mxu0 %v925
    %3226 = vmatpush2.msra.mxu0 %v924
    %3227 = vmatprep.subr.mxu0 %v917
    %3228 = vmatpush2.msra.mxu0 %v916
    %3229 = vmatprep.subr.mxu0 %v909
    %3230 = vmatpush2.msra.mxu0 %v908
    %3231 = vmatprep.subr.mxu0 %v901
    %3232 = vmatpush2.msra.mxu0 %v900
    %3233 = vmatprep.subr.mxu0 %v893
    %3234 = vmatpush2.msra.mxu0 %v892
    %3235 = vmatprep.subr.mxu0 %v885
    %3236 = vmatpush2.msra.mxu0 %v884
    %3237 = vmatprep.subr.mxu0 %v877
    %3238 = vmatpush2.msra.mxu0 %v876
    %3239 = vmatprep.subr.mxu0 %v869
    %3240 = vmatpush2.msra.mxu0 %v868
    %3241 = vmatprep.subr.mxu0 %v861
    %3242 = vmatpush2.msra.mxu0 %v860
    %3243 = vmatprep.mubr.f32.mxu0 %v3103
    %3244 = vmatmul.mubr.f32.gmra.mxu0 %v3070
    %v3245 = vpop.f32.mrf.mxu0
    %v3246 = vadd.f32 0.0, %v3245
    %v3247 = vpop.f32.mrf.mxu0
    %v3248 = vadd.f32 0.0, %v3247
    %3249 = vdwg.mxu0
    %3250 = vmatprep.subr.mxu0 %v855
    %3251 = vmatpush1.msra.mxu0 %v854
    %3252 = vmatprep.subr.mxu0 %v847
    %3253 = vmatpush1.msra.mxu0 %v846
    %3254 = vmatprep.subr.mxu0 %v839
    %3255 = vmatpush1.msra.mxu0 %v838
    %3256 = vmatprep.subr.mxu0 %v831
    %3257 = vmatpush1.msra.mxu0 %v830
    %3258 = vmatprep.subr.mxu0 %v823
    %3259 = vmatpush1.msra.mxu0 %v822
    %3260 = vmatprep.subr.mxu0 %v815
    %3261 = vmatpush1.msra.mxu0 %v814
    %3262 = vmatprep.subr.mxu0 %v807
    %3263 = vmatpush1.msra.mxu0 %v806
    %3264 = vmatprep.subr.mxu0 %v799
    %3265 = vmatpush1.msra.mxu0 %v798
    %3266 = vmatprep.subr.mxu0 %v791
    %3267 = vmatpush1.msra.mxu0 %v790
    %3268 = vmatprep.subr.mxu0 %v783
    %3269 = vmatpush1.msra.mxu0 %v782
    %3270 = vmatprep.subr.mxu0 %v775
    %3271 = vmatpush1.msra.mxu0 %v774
    %3272 = vmatprep.subr.mxu0 %v767
    %3273 = vmatpush1.msra.mxu0 %v766
    %3274 = vmatprep.subr.mxu0 %v759
    %3275 = vmatpush1.msra.mxu0 %v758
    %3276 = vmatprep.subr.mxu0 %v751
    %3277 = vmatpush1.msra.mxu0 %v750
    %3278 = vmatprep.subr.mxu0 %v743
    %3279 = vmatpush1.msra.mxu0 %v742
    %3280 = vmatprep.subr.mxu0 %v735
    %3281 = vmatpush1.msra.mxu0 %v734
    %3282 = vmatprep.subr.mxu0 %v983
    %3283 = vmatpush2.msra.mxu0 %v982
    %3284 = vmatprep.subr.mxu0 %v975
    %3285 = vmatpush2.msra.mxu0 %v974
    %3286 = vmatprep.subr.mxu0 %v967
    %3287 = vmatpush2.msra.mxu0 %v966
    %3288 = vmatprep.subr.mxu0 %v959
    %3289 = vmatpush2.msra.mxu0 %v958
    %3290 = vmatprep.subr.mxu0 %v951
    %3291 = vmatpush2.msra.mxu0 %v950
    %3292 = vmatprep.subr.mxu0 %v943
    %3293 = vmatpush2.msra.mxu0 %v942
    %3294 = vmatprep.subr.mxu0 %v935
    %3295 = vmatpush2.msra.mxu0 %v934
    %3296 = vmatprep.subr.mxu0 %v927
    %3297 = vmatpush2.msra.mxu0 %v926
    %3298 = vmatprep.subr.mxu0 %v919
    %3299 = vmatpush2.msra.mxu0 %v918
    %3300 = vmatprep.subr.mxu0 %v911
    %3301 = vmatpush2.msra.mxu0 %v910
    %3302 = vmatprep.subr.mxu0 %v903
    %3303 = vmatpush2.msra.mxu0 %v902
    %3304 = vmatprep.subr.mxu0 %v895
    %3305 = vmatpush2.msra.mxu0 %v894
    %3306 = vmatprep.subr.mxu0 %v887
    %3307 = vmatpush2.msra.mxu0 %v886
    %3308 = vmatprep.subr.mxu0 %v879
    %3309 = vmatpush2.msra.mxu0 %v878
    %3310 = vmatprep.subr.mxu0 %v871
    %3311 = vmatpush2.msra.mxu0 %v870
    %3312 = vmatprep.subr.mxu0 %v863
    %3313 = vmatpush2.msra.mxu0 %v862
    %3314 = vmatprep.mubr.f32.mxu0 %v3103
    %3315 = vmatmul.mubr.f32.gmra.mxu0 %v3070
    %v3316 = vpop.f32.mrf.mxu0
    %v3317 = vadd.f32 0.0, %v3316
    %v3318 = vpop.f32.mrf.mxu0
    %v3319 = vadd.f32 0.0, %v3318
    %3320 = vdwg.mxu0
    %3321 = vmatprep.subr.mxu0 %v857
    %3322 = vmatpush1.msra.mxu0 %v856
    %3323 = vmatprep.subr.mxu0 %v849
    %3324 = vmatpush1.msra.mxu0 %v848
    %3325 = vmatprep.subr.mxu0 %v841
    %3326 = vmatpush1.msra.mxu0 %v840
    %3327 = vmatprep.subr.mxu0 %v833
    %3328 = vmatpush1.msra.mxu0 %v832
    %3329 = vmatprep.subr.mxu0 %v825
    %3330 = vmatpush1.msra.mxu0 %v824
    %3331 = vmatprep.subr.mxu0 %v817
    %3332 = vmatpush1.msra.mxu0 %v816
    %3333 = vmatprep.subr.mxu0 %v809
    %3334 = vmatpush1.msra.mxu0 %v808
    %3335 = vmatprep.subr.mxu0 %v801
    %3336 = vmatpush1.msra.mxu0 %v800
    %3337 = vmatprep.subr.mxu0 %v793
    %3338 = vmatpush1.msra.mxu0 %v792
    %3339 = vmatprep.subr.mxu0 %v785
    %3340 = vmatpush1.msra.mxu0 %v784
    %3341 = vmatprep.subr.mxu0 %v777
    %3342 = vmatpush1.msra.mxu0 %v776
    %3343 = vmatprep.subr.mxu0 %v769
    %3344 = vmatpush1.msra.mxu0 %v768
    %3345 = vmatprep.subr.mxu0 %v761
    %3346 = vmatpush1.msra.mxu0 %v760
    %3347 = vmatprep.subr.mxu0 %v753
    %3348 = vmatpush1.msra.mxu0 %v752
    %3349 = vmatprep.subr.mxu0 %v745
    %3350 = vmatpush1.msra.mxu0 %v744
    %3351 = vmatprep.subr.mxu0 %v737
    %3352 = vmatpush1.msra.mxu0 %v736
    %3353 = vmatprep.subr.mxu0 %v985
    %3354 = vmatpush2.msra.mxu0 %v984
    %3355 = vmatprep.subr.mxu0 %v977
    %3356 = vmatpush2.msra.mxu0 %v976
    %3357 = vmatprep.subr.mxu0 %v969
    %3358 = vmatpush2.msra.mxu0 %v968
    %3359 = vmatprep.subr.mxu0 %v961
    %3360 = vmatpush2.msra.mxu0 %v960
    %3361 = vmatprep.subr.mxu0 %v953
    %3362 = vmatpush2.msra.mxu0 %v952
    %3363 = vmatprep.subr.mxu0 %v945
    %3364 = vmatpush2.msra.mxu0 %v944
    %3365 = vmatprep.subr.mxu0 %v937
    %3366 = vmatpush2.msra.mxu0 %v936
    %3367 = vmatprep.subr.mxu0 %v929
    %3368 = vmatpush2.msra.mxu0 %v928
    %3369 = vmatprep.subr.mxu0 %v921
    %3370 = vmatpush2.msra.mxu0 %v920
    %3371 = vmatprep.subr.mxu0 %v913
    %3372 = vmatpush2.msra.mxu0 %v912
    %3373 = vmatprep.subr.mxu0 %v905
    %3374 = vmatpush2.msra.mxu0 %v904
    %3375 = vmatprep.subr.mxu0 %v897
    %3376 = vmatpush2.msra.mxu0 %v896
    %3377 = vmatprep.subr.mxu0 %v889
    %3378 = vmatpush2.msra.mxu0 %v888
    %3379 = vmatprep.subr.mxu0 %v881
    %3380 = vmatpush2.msra.mxu0 %v880
    %3381 = vmatprep.subr.mxu0 %v873
    %3382 = vmatpush2.msra.mxu0 %v872
    %3383 = vmatprep.subr.mxu0 %v865
    %3384 = vmatpush2.msra.mxu0 %v864
    %3385 = vmatprep.mubr.f32.mxu0 %v3103
    %3386 = vmatmul.mubr.f32.gmra.mxu0 %v3070
    %v3387 = vpop.f32.mrf.mxu0
    %v3388 = vadd.f32 0.0, %v3387
    %v3389 = vpop.f32.mrf.mxu0
    %v3390 = vadd.f32 0.0, %v3389
    %3391 = vdwg.mxu0
    %s3392 = scalar_lea.vmem [#allocation2], 192
    %v3393 = vld [vmem:[%s3392] sm:$0xff]
    %v3394 = vld [vmem:[%s3392 + $0x8] sm:$0xff]
    %v3395 = vld [vmem:[%s3392 + $0x10] sm:$0xff]
    %v3396 = vld [vmem:[%s3392 + $0x18] sm:$0xff]
    %v3397 = vadd.f32 %v3393, %v3175
    %v3398 = vadd.f32 %v3394, %v3177
    %v3399 = vadd.f32 %v3395, %v3246
    %v3400 = vadd.f32 %v3396, %v3248
    %v3401 = vxor.u32 %v3397, 2147483648
    %v3402 = vmul.f32 %v3401, 1.442695
    %v3403 = vpow.pop %v3402
    %v3404 = vadd.f32 %v3403, 1.0
    %v3405 = vrcp.pop %v3404
    %v3406 = vmul.f32 1.0, %v3405
    %v3407 = vxor.u32 %v3398, 2147483648
    %v3408 = vmul.f32 %v3407, 1.442695
    %v3409 = vpow.pop %v3408
    %v3410 = vadd.f32 %v3409, 1.0
    %v3411 = vrcp.pop %v3410
    %v3412 = vmul.f32 1.0, %v3411
    %v3413 = vtanh.pop %v3399
    %v3414 = vxor.u32 %v3400, 2147483648
    %v3415 = vmul.f32 %v3414, 1.442695
    %v3416 = vpow.pop %v3415
    %v3417 = vadd.f32 %v3416, 1.0
    %v3418 = vrcp.pop %v3417
    %v3419 = vmul.f32 1.0, %v3418
    %v3420 = vmul.f32 %v3412, %v3068
    %v3421 = vmul.f32 %v3406, %v3413
    %v3422 = vadd.f32 %v3420, %v3421
    %v3423 = vtanh.pop %v3422
    %v3424 = vmul.f32 %v3419, %v3423
    %s3425 = scalar_lea.vmem [#allocation3], 32
    %v3426 = vld [vmem:[%s3425] sm:$0xff]
    %v3427 = vld [vmem:[%s3425 + $0x8] sm:$0xff]
    %v3428 = vld [vmem:[%s3425 + $0x10] sm:$0xff]
    %v3429 = vld [vmem:[%s3425 + $0x18] sm:$0xff]
    %v3430 = vadd.f32 %v3426, %v3317
    %v3431 = vadd.f32 %v3427, %v3319
    %v3432 = vadd.f32 %v3428, %v3388
    %v3433 = vadd.f32 %v3429, %v3390
    %v3434 = vxor.u32 %v3430, 2147483648
    %v3435 = vmul.f32 %v3434, 1.442695
    %v3436 = vpow.pop %v3435
    %v3437 = vadd.f32 %v3436, 1.0
    %v3438 = vrcp.pop %v3437
    %v3439 = vmul.f32 1.0, %v3438
    %v3440 = vxor.u32 %v3431, 2147483648
    %v3441 = vmul.f32 %v3440, 1.442695
    %v3442 = vpow.pop %v3441
    %v3443 = vadd.f32 %v3442, 1.0
    %v3444 = vrcp.pop %v3443
    %v3445 = vmul.f32 1.0, %v3444
    %v3446 = vtanh.pop %v3432
    %v3447 = vxor.u32 %v3433, 2147483648
    %v3448 = vmul.f32 %v3447, 1.442695
    %v3449 = vpow.pop %v3448
    %v3450 = vadd.f32 %v3449, 1.0
    %v3451 = vrcp.pop %v3450
    %v3452 = vmul.f32 1.0, %v3451
    %v3453 = vmul.f32 %v3445, %v3101
    %v3454 = vmul.f32 %v3439, %v3446
    %v3455 = vadd.f32 %v3453, %v3454
    %v3456 = vtanh.pop %v3455
    %v3457 = vmul.f32 %v3452, %v3456
    %s3458 = scalar_lea.vmem [#allocation4], 48
    %3459 = vst [vmem:[%s3458] sm:$0xff] %v3424
    %s3460 = scalar_lea.vmem [#allocation5], 8
    %3461 = vst [vmem:[%s3460] sm:$0xff] %v3457
    %3462 = vmatprep.subr.mxu0 %v851
    %3463 = vmatpush1.msra.mxu0 %v850
    %3464 = vmatprep.subr.mxu0 %v843
    %3465 = vmatpush1.msra.mxu0 %v842
    %3466 = vmatprep.subr.mxu0 %v835
    %3467 = vmatpush1.msra.mxu0 %v834
    %3468 = vmatprep.subr.mxu0 %v827
    %3469 = vmatpush1.msra.mxu0 %v826
    %3470 = vmatprep.subr.mxu0 %v819
    %3471 = vmatpush1.msra.mxu0 %v818
    %3472 = vmatprep.subr.mxu0 %v811
    %3473 = vmatpush1.msra.mxu0 %v810
    %3474 = vmatprep.subr.mxu0 %v803
    %3475 = vmatpush1.msra.mxu0 %v802
    %3476 = vmatprep.subr.mxu0 %v795
    %3477 = vmatpush1.msra.mxu0 %v794
    %3478 = vmatprep.subr.mxu0 %v787
    %3479 = vmatpush1.msra.mxu0 %v786
    %3480 = vmatprep.subr.mxu0 %v779
    %3481 = vmatpush1.msra.mxu0 %v778
    %3482 = vmatprep.subr.mxu0 %v771
    %3483 = vmatpush1.msra.mxu0 %v770
    %3484 = vmatprep.subr.mxu0 %v763
    %3485 = vmatpush1.msra.mxu0 %v762
    %3486 = vmatprep.subr.mxu0 %v755
    %3487 = vmatpush1.msra.mxu0 %v754
    %3488 = vmatprep.subr.mxu0 %v747
    %3489 = vmatpush1.msra.mxu0 %v746
    %3490 = vmatprep.subr.mxu0 %v739
    %3491 = vmatpush1.msra.mxu0 %v738
    %3492 = vmatprep.subr.mxu0 %v731
    %3493 = vmatpush1.msra.mxu0 %v730
    %3494 = vmatprep.subr.mxu0 %v979
    %3495 = vmatpush2.msra.mxu0 %v978
    %3496 = vmatprep.subr.mxu0 %v971
    %3497 = vmatpush2.msra.mxu0 %v970
    %3498 = vmatprep.subr.mxu0 %v963
    %3499 = vmatpush2.msra.mxu0 %v962
    %3500 = vmatprep.subr.mxu0 %v955
    %3501 = vmatpush2.msra.mxu0 %v954
    %3502 = vmatprep.subr.mxu0 %v947
    %3503 = vmatpush2.msra.mxu0 %v946
    %3504 = vmatprep.subr.mxu0 %v939
    %3505 = vmatpush2.msra.mxu0 %v938
    %3506 = vmatprep.subr.mxu0 %v931
    %3507 = vmatpush2.msra.mxu0 %v930
    %3508 = vmatprep.subr.mxu0 %v923
    %3509 = vmatpush2.msra.mxu0 %v922
    %3510 = vmatprep.subr.mxu0 %v915
    %3511 = vmatpush2.msra.mxu0 %v914
    %3512 = vmatprep.subr.mxu0 %v907
    %3513 = vmatpush2.msra.mxu0 %v906
    %3514 = vmatprep.subr.mxu0 %v899
    %3515 = vmatpush2.msra.mxu0 %v898
    %3516 = vmatprep.subr.mxu0 %v891
    %3517 = vmatpush2.msra.mxu0 %v890
    %3518 = vmatprep.subr.mxu0 %v883
    %3519 = vmatpush2.msra.mxu0 %v882
    %3520 = vmatprep.subr.mxu0 %v875
    %3521 = vmatpush2.msra.mxu0 %v874
    %3522 = vmatprep.subr.mxu0 %v867
    %3523 = vmatpush2.msra.mxu0 %v866
    %3524 = vmatprep.subr.mxu0 %v859
    %3525 = vmatpush2.msra.mxu0 %v858
    %3526 = vmatprep.mubr.f32.mxu0 %v3457
    %3527 = vmatmul.mubr.f32.gmra.mxu0 %v3424
    %v3528 = vpop.f32.mrf.mxu0
    %v3529 = vadd.f32 0.0, %v3528
    %v3530 = vpop.f32.mrf.mxu0
    %v3531 = vadd.f32 0.0, %v3530
    %3532 = vdwg.mxu0
    %3533 = vmatprep.subr.mxu0 %v853
    %3534 = vmatpush1.msra.mxu0 %v852
    %3535 = vmatprep.subr.mxu0 %v845
    %3536 = vmatpush1.msra.mxu0 %v844
    %3537 = vmatprep.subr.mxu0 %v837
    %3538 = vmatpush1.msra.mxu0 %v836
    %3539 = vmatprep.subr.mxu0 %v829
    %3540 = vmatpush1.msra.mxu0 %v828
    %3541 = vmatprep.subr.mxu0 %v821
    %3542 = vmatpush1.msra.mxu0 %v820
    %3543 = vmatprep.subr.mxu0 %v813
    %3544 = vmatpush1.msra.mxu0 %v812
    %3545 = vmatprep.subr.mxu0 %v805
    %3546 = vmatpush1.msra.mxu0 %v804
    %3547 = vmatprep.subr.mxu0 %v797
    %3548 = vmatpush1.msra.mxu0 %v796
    %3549 = vmatprep.subr.mxu0 %v789
    %3550 = vmatpush1.msra.mxu0 %v788
    %3551 = vmatprep.subr.mxu0 %v781
    %3552 = vmatpush1.msra.mxu0 %v780
    %3553 = vmatprep.subr.mxu0 %v773
    %3554 = vmatpush1.msra.mxu0 %v772
    %3555 = vmatprep.subr.mxu0 %v765
    %3556 = vmatpush1.msra.mxu0 %v764
    %3557 = vmatprep.subr.mxu0 %v757
    %3558 = vmatpush1.msra.mxu0 %v756
    %3559 = vmatprep.subr.mxu0 %v749
    %3560 = vmatpush1.msra.mxu0 %v748
    %3561 = vmatprep.subr.mxu0 %v741
    %3562 = vmatpush1.msra.mxu0 %v740
    %3563 = vmatprep.subr.mxu0 %v733
    %3564 = vmatpush1.msra.mxu0 %v732
    %3565 = vmatprep.subr.mxu0 %v981
    %3566 = vmatpush2.msra.mxu0 %v980
    %3567 = vmatprep.subr.mxu0 %v973
    %3568 = vmatpush2.msra.mxu0 %v972
    %3569 = vmatprep.subr.mxu0 %v965
    %3570 = vmatpush2.msra.mxu0 %v964
    %3571 = vmatprep.subr.mxu0 %v957
    %3572 = vmatpush2.msra.mxu0 %v956
    %3573 = vmatprep.subr.mxu0 %v949
    %3574 = vmatpush2.msra.mxu0 %v948
    %3575 = vmatprep.subr.mxu0 %v941
    %3576 = vmatpush2.msra.mxu0 %v940
    %3577 = vmatprep.subr.mxu0 %v933
    %3578 = vmatpush2.msra.mxu0 %v932
    %3579 = vmatprep.subr.mxu0 %v925
    %3580 = vmatpush2.msra.mxu0 %v924
    %3581 = vmatprep.subr.mxu0 %v917
    %3582 = vmatpush2.msra.mxu0 %v916
    %3583 = vmatprep.subr.mxu0 %v909
    %3584 = vmatpush2.msra.mxu0 %v908
    %3585 = vmatprep.subr.mxu0 %v901
    %3586 = vmatpush2.msra.mxu0 %v900
    %3587 = vmatprep.subr.mxu0 %v893
    %3588 = vmatpush2.msra.mxu0 %v892
    %3589 = vmatprep.subr.mxu0 %v885
    %3590 = vmatpush2.msra.mxu0 %v884
    %3591 = vmatprep.subr.mxu0 %v877
    %3592 = vmatpush2.msra.mxu0 %v876
    %3593 = vmatprep.subr.mxu0 %v869
    %3594 = vmatpush2.msra.mxu0 %v868
    %3595 = vmatprep.subr.mxu0 %v861
    %3596 = vmatpush2.msra.mxu0 %v860
    %3597 = vmatprep.mubr.f32.mxu0 %v3457
    %3598 = vmatmul.mubr.f32.gmra.mxu0 %v3424
    %v3599 = vpop.f32.mrf.mxu0
    %v3600 = vadd.f32 0.0, %v3599
    %v3601 = vpop.f32.mrf.mxu0
    %v3602 = vadd.f32 0.0, %v3601
    %3603 = vdwg.mxu0
    %3604 = vmatprep.subr.mxu0 %v855
    %3605 = vmatpush1.msra.mxu0 %v854
    %3606 = vmatprep.subr.mxu0 %v847
    %3607 = vmatpush1.msra.mxu0 %v846
    %3608 = vmatprep.subr.mxu0 %v839
    %3609 = vmatpush1.msra.mxu0 %v838
    %3610 = vmatprep.subr.mxu0 %v831
    %3611 = vmatpush1.msra.mxu0 %v830
    %3612 = vmatprep.subr.mxu0 %v823
    %3613 = vmatpush1.msra.mxu0 %v822
    %3614 = vmatprep.subr.mxu0 %v815
    %3615 = vmatpush1.msra.mxu0 %v814
    %3616 = vmatprep.subr.mxu0 %v807
    %3617 = vmatpush1.msra.mxu0 %v806
    %3618 = vmatprep.subr.mxu0 %v799
    %3619 = vmatpush1.msra.mxu0 %v798
    %3620 = vmatprep.subr.mxu0 %v791
    %3621 = vmatpush1.msra.mxu0 %v790
    %3622 = vmatprep.subr.mxu0 %v783
    %3623 = vmatpush1.msra.mxu0 %v782
    %3624 = vmatprep.subr.mxu0 %v775
    %3625 = vmatpush1.msra.mxu0 %v774
    %3626 = vmatprep.subr.mxu0 %v767
    %3627 = vmatpush1.msra.mxu0 %v766
    %3628 = vmatprep.subr.mxu0 %v759
    %3629 = vmatpush1.msra.mxu0 %v758
    %3630 = vmatprep.subr.mxu0 %v751
    %3631 = vmatpush1.msra.mxu0 %v750
    %3632 = vmatprep.subr.mxu0 %v743
    %3633 = vmatpush1.msra.mxu0 %v742
    %3634 = vmatprep.subr.mxu0 %v735
    %3635 = vmatpush1.msra.mxu0 %v734
    %3636 = vmatprep.subr.mxu0 %v983
    %3637 = vmatpush2.msra.mxu0 %v982
    %3638 = vmatprep.subr.mxu0 %v975
    %3639 = vmatpush2.msra.mxu0 %v974
    %3640 = vmatprep.subr.mxu0 %v967
    %3641 = vmatpush2.msra.mxu0 %v966
    %3642 = vmatprep.subr.mxu0 %v959
    %3643 = vmatpush2.msra.mxu0 %v958
    %3644 = vmatprep.subr.mxu0 %v951
    %3645 = vmatpush2.msra.mxu0 %v950
    %3646 = vmatprep.subr.mxu0 %v943
    %3647 = vmatpush2.msra.mxu0 %v942
    %3648 = vmatprep.subr.mxu0 %v935
    %3649 = vmatpush2.msra.mxu0 %v934
    %3650 = vmatprep.subr.mxu0 %v927
    %3651 = vmatpush2.msra.mxu0 %v926
    %3652 = vmatprep.subr.mxu0 %v919
    %3653 = vmatpush2.msra.mxu0 %v918
    %3654 = vmatprep.subr.mxu0 %v911
    %3655 = vmatpush2.msra.mxu0 %v910
    %3656 = vmatprep.subr.mxu0 %v903
    %3657 = vmatpush2.msra.mxu0 %v902
    %3658 = vmatprep.subr.mxu0 %v895
    %3659 = vmatpush2.msra.mxu0 %v894
    %3660 = vmatprep.subr.mxu0 %v887
    %3661 = vmatpush2.msra.mxu0 %v886
    %3662 = vmatprep.subr.mxu0 %v879
    %3663 = vmatpush2.msra.mxu0 %v878
    %3664 = vmatprep.subr.mxu0 %v871
    %3665 = vmatpush2.msra.mxu0 %v870
    %3666 = vmatprep.subr.mxu0 %v863
    %3667 = vmatpush2.msra.mxu0 %v862
    %3668 = vmatprep.mubr.f32.mxu0 %v3457
    %3669 = vmatmul.mubr.f32.gmra.mxu0 %v3424
    %v3670 = vpop.f32.mrf.mxu0
    %v3671 = vadd.f32 0.0, %v3670
    %v3672 = vpop.f32.mrf.mxu0
    %v3673 = vadd.f32 0.0, %v3672
    %3674 = vdwg.mxu0
    %3675 = vmatprep.subr.mxu0 %v857
    %3676 = vmatpush1.msra.mxu0 %v856
    %3677 = vmatprep.subr.mxu0 %v849
    %3678 = vmatpush1.msra.mxu0 %v848
    %3679 = vmatprep.subr.mxu0 %v841
    %3680 = vmatpush1.msra.mxu0 %v840
    %3681 = vmatprep.subr.mxu0 %v833
    %3682 = vmatpush1.msra.mxu0 %v832
    %3683 = vmatprep.subr.mxu0 %v825
    %3684 = vmatpush1.msra.mxu0 %v824
    %3685 = vmatprep.subr.mxu0 %v817
    %3686 = vmatpush1.msra.mxu0 %v816
    %3687 = vmatprep.subr.mxu0 %v809
    %3688 = vmatpush1.msra.mxu0 %v808
    %3689 = vmatprep.subr.mxu0 %v801
    %3690 = vmatpush1.msra.mxu0 %v800
    %3691 = vmatprep.subr.mxu0 %v793
    %3692 = vmatpush1.msra.mxu0 %v792
    %3693 = vmatprep.subr.mxu0 %v785
    %3694 = vmatpush1.msra.mxu0 %v784
    %3695 = vmatprep.subr.mxu0 %v777
    %3696 = vmatpush1.msra.mxu0 %v776
    %3697 = vmatprep.subr.mxu0 %v769
    %3698 = vmatpush1.msra.mxu0 %v768
    %3699 = vmatprep.subr.mxu0 %v761
    %3700 = vmatpush1.msra.mxu0 %v760
    %3701 = vmatprep.subr.mxu0 %v753
    %3702 = vmatpush1.msra.mxu0 %v752
    %3703 = vmatprep.subr.mxu0 %v745
    %3704 = vmatpush1.msra.mxu0 %v744
    %3705 = vmatprep.subr.mxu0 %v737
    %3706 = vmatpush1.msra.mxu0 %v736
    %3707 = vmatprep.subr.mxu0 %v985
    %3708 = vmatpush2.msra.mxu0 %v984
    %3709 = vmatprep.subr.mxu0 %v977
    %3710 = vmatpush2.msra.mxu0 %v976
    %3711 = vmatprep.subr.mxu0 %v969
    %3712 = vmatpush2.msra.mxu0 %v968
    %3713 = vmatprep.subr.mxu0 %v961
    %3714 = vmatpush2.msra.mxu0 %v960
    %3715 = vmatprep.subr.mxu0 %v953
    %3716 = vmatpush2.msra.mxu0 %v952
    %3717 = vmatprep.subr.mxu0 %v945
    %3718 = vmatpush2.msra.mxu0 %v944
    %3719 = vmatprep.subr.mxu0 %v937
    %3720 = vmatpush2.msra.mxu0 %v936
    %3721 = vmatprep.subr.mxu0 %v929
    %3722 = vmatpush2.msra.mxu0 %v928
    %3723 = vmatprep.subr.mxu0 %v921
    %3724 = vmatpush2.msra.mxu0 %v920
    %3725 = vmatprep.subr.mxu0 %v913
    %3726 = vmatpush2.msra.mxu0 %v912
    %3727 = vmatprep.subr.mxu0 %v905
    %3728 = vmatpush2.msra.mxu0 %v904
    %3729 = vmatprep.subr.mxu0 %v897
    %3730 = vmatpush2.msra.mxu0 %v896
    %3731 = vmatprep.subr.mxu0 %v889
    %3732 = vmatpush2.msra.mxu0 %v888
    %3733 = vmatprep.subr.mxu0 %v881
    %3734 = vmatpush2.msra.mxu0 %v880
    %3735 = vmatprep.subr.mxu0 %v873
    %3736 = vmatpush2.msra.mxu0 %v872
    %3737 = vmatprep.subr.mxu0 %v865
    %3738 = vmatpush2.msra.mxu0 %v864
    %3739 = vmatprep.mubr.f32.mxu0 %v3457
    %3740 = vmatmul.mubr.f32.gmra.mxu0 %v3424
    %v3741 = vpop.f32.mrf.mxu0
    %v3742 = vadd.f32 0.0, %v3741
    %v3743 = vpop.f32.mrf.mxu0
    %v3744 = vadd.f32 0.0, %v3743
    %3745 = vdwg.mxu0
    %s3746 = scalar_lea.vmem [#allocation2], 224
    %v3747 = vld [vmem:[%s3746] sm:$0xff]
    %v3748 = vld [vmem:[%s3746 + $0x8] sm:$0xff]
    %v3749 = vld [vmem:[%s3746 + $0x10] sm:$0xff]
    %v3750 = vld [vmem:[%s3746 + $0x18] sm:$0xff]
    %v3751 = vadd.f32 %v3747, %v3529
    %v3752 = vadd.f32 %v3748, %v3531
    %v3753 = vadd.f32 %v3749, %v3600
    %v3754 = vadd.f32 %v3750, %v3602
    %v3755 = vxor.u32 %v3751, 2147483648
    %v3756 = vmul.f32 %v3755, 1.442695
    %v3757 = vpow.pop %v3756
    %v3758 = vadd.f32 %v3757, 1.0
    %v3759 = vrcp.pop %v3758
    %v3760 = vmul.f32 1.0, %v3759
    %v3761 = vxor.u32 %v3752, 2147483648
    %v3762 = vmul.f32 %v3761, 1.442695
    %v3763 = vpow.pop %v3762
    %v3764 = vadd.f32 %v3763, 1.0
    %v3765 = vrcp.pop %v3764
    %v3766 = vmul.f32 1.0, %v3765
    %v3767 = vtanh.pop %v3753
    %v3768 = vxor.u32 %v3754, 2147483648
    %v3769 = vmul.f32 %v3768, 1.442695
    %v3770 = vpow.pop %v3769
    %v3771 = vadd.f32 %v3770, 1.0
    %v3772 = vrcp.pop %v3771
    %v3773 = vmul.f32 1.0, %v3772
    %v3774 = vmul.f32 %v3766, %v3422
    %v3775 = vmul.f32 %v3760, %v3767
    %v3776 = vadd.f32 %v3774, %v3775
    %v3777 = vtanh.pop %v3776
    %v3778 = vmul.f32 %v3773, %v3777
    %v3779 = vld [vmem:[#allocation3] sm:$0xff]
    %v3780 = vld [vmem:[#allocation3 + $0x8] sm:$0xff]
    %v3781 = vld [vmem:[#allocation3 + $0x10] sm:$0xff]
    %v3782 = vld [vmem:[#allocation3 + $0x18] sm:$0xff]
    %v3783 = vadd.f32 %v3779, %v3671
    %v3784 = vadd.f32 %v3780, %v3673
    %v3785 = vadd.f32 %v3781, %v3742
    %v3786 = vadd.f32 %v3782, %v3744
    %v3787 = vxor.u32 %v3783, 2147483648
    %v3788 = vmul.f32 %v3787, 1.442695
    %v3789 = vpow.pop %v3788
    %v3790 = vadd.f32 %v3789, 1.0
    %v3791 = vrcp.pop %v3790
    %v3792 = vmul.f32 1.0, %v3791
    %v3793 = vxor.u32 %v3784, 2147483648
    %v3794 = vmul.f32 %v3793, 1.442695
    %v3795 = vpow.pop %v3794
    %v3796 = vadd.f32 %v3795, 1.0
    %v3797 = vrcp.pop %v3796
    %v3798 = vmul.f32 1.0, %v3797
    %v3799 = vtanh.pop %v3785
    %v3800 = vxor.u32 %v3786, 2147483648
    %v3801 = vmul.f32 %v3800, 1.442695
    %v3802 = vpow.pop %v3801
    %v3803 = vadd.f32 %v3802, 1.0
    %v3804 = vrcp.pop %v3803
    %v3805 = vmul.f32 1.0, %v3804
    %v3806 = vmul.f32 %v3798, %v3455
    %v3807 = vmul.f32 %v3792, %v3799
    %v3808 = vadd.f32 %v3806, %v3807
    %v3809 = vtanh.pop %v3808
    %v3810 = vmul.f32 %v3805, %v3809
    %s3811 = scalar_lea.vmem [#allocation4], 56
    %3812 = vst [vmem:[%s3811] sm:$0xff] %v3778
    %3813 = vst [vmem:[#allocation5] sm:$0xff] %v3810
    %v3814 = vld [vmem:[#allocation14] sm:$0xff]
    %v3815 = vld [vmem:[#allocation14 + $0x8] sm:$0xff]
    %v3816 = vld [vmem:[#allocation14 + $0x10] sm:$0xff]
    %v3817 = vld [vmem:[#allocation14 + $0x18] sm:$0xff]
    %v3818 = vld [vmem:[#allocation14 + $0x20] sm:$0xff]
    %v3819 = vld [vmem:[#allocation14 + $0x28] sm:$0xff]
    %v3820 = vld [vmem:[#allocation14 + $0x30] sm:$0xff]
    %v3821 = vld [vmem:[#allocation14 + $0x38] sm:$0xff]
    %v3822 = vld [vmem:[#allocation14 + $0x40] sm:$0xff]
    %v3823 = vld [vmem:[#allocation14 + $0x48] sm:$0xff]
    %v3824 = vld [vmem:[#allocation14 + $0x50] sm:$0xff]
    %v3825 = vld [vmem:[#allocation14 + $0x58] sm:$0xff]
    %v3826 = vld [vmem:[#allocation14 + $0x60] sm:$0xff]
    %v3827 = vld [vmem:[#allocation14 + $0x68] sm:$0xff]
    %v3828 = vld [vmem:[#allocation14 + $0x70] sm:$0xff]
    %v3829 = vld [vmem:[#allocation14 + $0x78] sm:$0xff]
    %v3830 = vld [vmem:[#allocation15] sm:$0xff]
    %v3831 = vld [vmem:[#allocation15 + $0x8] sm:$0xff]
    %v3832 = vld [vmem:[#allocation15 + $0x10] sm:$0xff]
    %v3833 = vld [vmem:[#allocation15 + $0x18] sm:$0xff]
    %v3834 = vld [vmem:[#allocation15 + $0x20] sm:$0xff]
    %v3835 = vld [vmem:[#allocation15 + $0x28] sm:$0xff]
    %v3836 = vld [vmem:[#allocation15 + $0x30] sm:$0xff]
    %v3837 = vld [vmem:[#allocation15 + $0x38] sm:$0xff]
    %v3838 = vld [vmem:[#allocation15 + $0x40] sm:$0xff]
    %v3839 = vld [vmem:[#allocation15 + $0x48] sm:$0xff]
    %v3840 = vld [vmem:[#allocation15 + $0x50] sm:$0xff]
    %v3841 = vld [vmem:[#allocation15 + $0x58] sm:$0xff]
    %v3842 = vld [vmem:[#allocation15 + $0x60] sm:$0xff]
    %v3843 = vld [vmem:[#allocation15 + $0x68] sm:$0xff]
    %v3844 = vld [vmem:[#allocation15 + $0x70] sm:$0xff]
    %v3845 = vld [vmem:[#allocation15 + $0x78] sm:$0xff]
    %v3846 = vld [vmem:[#allocation4] sm:$0xff]
    %v3847 = vld [vmem:[#allocation4 + $0x8] sm:$0xff]
    %v3848 = vld [vmem:[#allocation4 + $0x10] sm:$0xff]
    %v3849 = vld [vmem:[#allocation4 + $0x18] sm:$0xff]
    %v3850 = vld [vmem:[#allocation4 + $0x20] sm:$0xff]
    %v3851 = vld [vmem:[#allocation4 + $0x28] sm:$0xff]
    %v3852 = vld [vmem:[#allocation4 + $0x30] sm:$0xff]
    %v3853 = vld [vmem:[#allocation4 + $0x38] sm:$0xff]
    %v3854 = vld [vmem:[#allocation5] sm:$0xff]
    %v3855 = vld [vmem:[#allocation5 + $0x8] sm:$0xff]
    %v3856 = vld [vmem:[#allocation5 + $0x10] sm:$0xff]
    %v3857 = vld [vmem:[#allocation5 + $0x18] sm:$0xff]
    %v3858 = vld [vmem:[#allocation5 + $0x20] sm:$0xff]
    %v3859 = vld [vmem:[#allocation5 + $0x28] sm:$0xff]
    %v3860 = vld [vmem:[#allocation5 + $0x30] sm:$0xff]
    %v3861 = vld [vmem:[#allocation5 + $0x38] sm:$0xff]
    %3862 = vmatprep.subr.mxu0 0.0
    %3863 = vmatpush1.msra.mxu0 %v3845
    %3864 = vmatprep.subr.mxu0 0.0
    %3865 = vmatpush1.msra.mxu0 %v3844
    %3866 = vmatprep.subr.mxu0 0.0
    %3867 = vmatpush1.msra.mxu0 %v3843
    %3868 = vmatprep.subr.mxu0 0.0
    %3869 = vmatpush1.msra.mxu0 %v3842
    %3870 = vmatprep.subr.mxu0 0.0
    %3871 = vmatpush1.msra.mxu0 %v3841
    %3872 = vmatprep.subr.mxu0 0.0
    %3873 = vmatpush1.msra.mxu0 %v3840
    %3874 = vmatprep.subr.mxu0 0.0
    %3875 = vmatpush1.msra.mxu0 %v3839
    %3876 = vmatprep.subr.mxu0 0.0
    %3877 = vmatpush1.msra.mxu0 %v3838
    %3878 = vmatprep.subr.mxu0 0.0
    %3879 = vmatpush1.msra.mxu0 %v3837
    %3880 = vmatprep.subr.mxu0 0.0
    %3881 = vmatpush1.msra.mxu0 %v3836
    %3882 = vmatprep.subr.mxu0 0.0
    %3883 = vmatpush1.msra.mxu0 %v3835
    %3884 = vmatprep.subr.mxu0 0.0
    %3885 = vmatpush1.msra.mxu0 %v3834
    %3886 = vmatprep.subr.mxu0 0.0
    %3887 = vmatpush1.msra.mxu0 %v3833
    %3888 = vmatprep.subr.mxu0 0.0
    %3889 = vmatpush1.msra.mxu0 %v3832
    %3890 = vmatprep.subr.mxu0 0.0
    %3891 = vmatpush1.msra.mxu0 %v3831
    %3892 = vmatprep.subr.mxu0 0.0
    %3893 = vmatpush1.msra.mxu0 %v3830
    %3894 = vmatprep.subr.mxu0 0.0
    %3895 = vmatpush2.msra.mxu0 0.0
    %3896 = vmatprep.subr.mxu0 0.0
    %3897 = vmatpush2.msra.mxu0 0.0
    %3898 = vmatprep.subr.mxu0 0.0
    %3899 = vmatpush2.msra.mxu0 0.0
    %3900 = vmatprep.subr.mxu0 0.0
    %3901 = vmatpush2.msra.mxu0 0.0
    %3902 = vmatprep.subr.mxu0 0.0
    %3903 = vmatpush2.msra.mxu0 0.0
    %3904 = vmatprep.subr.mxu0 0.0
    %3905 = vmatpush2.msra.mxu0 0.0
    %3906 = vmatprep.subr.mxu0 0.0
    %3907 = vmatpush2.msra.mxu0 0.0
    %3908 = vmatprep.subr.mxu0 0.0
    %3909 = vmatpush2.msra.mxu0 0.0
    %3910 = vmatprep.subr.mxu0 0.0
    %3911 = vmatpush2.msra.mxu0 0.0
    %3912 = vmatprep.subr.mxu0 0.0
    %3913 = vmatpush2.msra.mxu0 0.0
    %3914 = vmatprep.subr.mxu0 0.0
    %3915 = vmatpush2.msra.mxu0 0.0
    %3916 = vmatprep.subr.mxu0 0.0
    %3917 = vmatpush2.msra.mxu0 0.0
    %3918 = vmatprep.subr.mxu0 0.0
    %3919 = vmatpush2.msra.mxu0 0.0
    %3920 = vmatprep.subr.mxu0 0.0
    %3921 = vmatpush2.msra.mxu0 0.0
    %3922 = vmatprep.subr.mxu0 0.0
    %3923 = vmatpush2.msra.mxu0 0.0
    %3924 = vmatprep.subr.mxu0 0.0
    %3925 = vmatpush2.msra.mxu0 0.0
    %3926 = vmatprep.mubr.f32.mxu0 0.0
    %3927 = vmatmul.mubr.f32.gmra.mxu0 %v3854
    %v3928 = vpop.f32.mrf.mxu0
    %v3929 = vadd.f32 0.0, %v3928
    %v3930 = vpop.f32.mrf.mxu0
    %3931 = vmatprep.mubr.f32.mxu0 0.0
    %3932 = vmatmul.mubr.f32.gmra.mxu0 %v3855
    %v3933 = vpop.f32.mrf.mxu0
    %v3934 = vadd.f32 0.0, %v3933
    %v3935 = vpop.f32.mrf.mxu0
    %3936 = vmatprep.mubr.f32.mxu0 0.0
    %3937 = vmatmul.mubr.f32.gmra.mxu0 %v3856
    %v3938 = vpop.f32.mrf.mxu0
    %v3939 = vadd.f32 0.0, %v3938
    %v3940 = vpop.f32.mrf.mxu0
    %3941 = vmatprep.mubr.f32.mxu0 0.0
    %3942 = vmatmul.mubr.f32.gmra.mxu0 %v3857
    %v3943 = vpop.f32.mrf.mxu0
    %v3944 = vadd.f32 0.0, %v3943
    %v3945 = vpop.f32.mrf.mxu0
    %3946 = vmatprep.mubr.f32.mxu0 0.0
    %3947 = vmatmul.mubr.f32.gmra.mxu0 %v3858
    %v3948 = vpop.f32.mrf.mxu0
    %v3949 = vadd.f32 0.0, %v3948
    %v3950 = vpop.f32.mrf.mxu0
    %3951 = vmatprep.mubr.f32.mxu0 0.0
    %3952 = vmatmul.mubr.f32.gmra.mxu0 %v3859
    %v3953 = vpop.f32.mrf.mxu0
    %v3954 = vadd.f32 0.0, %v3953
    %v3955 = vpop.f32.mrf.mxu0
    %3956 = vmatprep.mubr.f32.mxu0 0.0
    %3957 = vmatmul.mubr.f32.gmra.mxu0 %v3860
    %v3958 = vpop.f32.mrf.mxu0
    %v3959 = vadd.f32 0.0, %v3958
    %v3960 = vpop.f32.mrf.mxu0
    %3961 = vmatprep.mubr.f32.mxu0 0.0
    %3962 = vmatmul.mubr.f32.gmra.mxu0 %v3861
    %v3963 = vpop.f32.mrf.mxu0
    %v3964 = vadd.f32 0.0, %v3963
    %v3965 = vpop.f32.mrf.mxu0
    %3966 = vdwg.mxu0
    %3967 = vmatprep.subr.mxu0 0.0
    %3968 = vmatpush1.msra.mxu0 %v3829
    %3969 = vmatprep.subr.mxu0 0.0
    %3970 = vmatpush1.msra.mxu0 %v3828
    %3971 = vmatprep.subr.mxu0 0.0
    %3972 = vmatpush1.msra.mxu0 %v3827
    %3973 = vmatprep.subr.mxu0 0.0
    %3974 = vmatpush1.msra.mxu0 %v3826
    %3975 = vmatprep.subr.mxu0 0.0
    %3976 = vmatpush1.msra.mxu0 %v3825
    %3977 = vmatprep.subr.mxu0 0.0
    %3978 = vmatpush1.msra.mxu0 %v3824
    %3979 = vmatprep.subr.mxu0 0.0
    %3980 = vmatpush1.msra.mxu0 %v3823
    %3981 = vmatprep.subr.mxu0 0.0
    %3982 = vmatpush1.msra.mxu0 %v3822
    %3983 = vmatprep.subr.mxu0 0.0
    %3984 = vmatpush1.msra.mxu0 %v3821
    %3985 = vmatprep.subr.mxu0 0.0
    %3986 = vmatpush1.msra.mxu0 %v3820
    %3987 = vmatprep.subr.mxu0 0.0
    %3988 = vmatpush1.msra.mxu0 %v3819
    %3989 = vmatprep.subr.mxu0 0.0
    %3990 = vmatpush1.msra.mxu0 %v3818
    %3991 = vmatprep.subr.mxu0 0.0
    %3992 = vmatpush1.msra.mxu0 %v3817
    %3993 = vmatprep.subr.mxu0 0.0
    %3994 = vmatpush1.msra.mxu0 %v3816
    %3995 = vmatprep.subr.mxu0 0.0
    %3996 = vmatpush1.msra.mxu0 %v3815
    %3997 = vmatprep.subr.mxu0 0.0
    %3998 = vmatpush1.msra.mxu0 %v3814
    %3999 = vmatprep.subr.mxu0 0.0
    %4000 = vmatpush2.msra.mxu0 0.0
    %4001 = vmatprep.subr.mxu0 0.0
    %4002 = vmatpush2.msra.mxu0 0.0
    %4003 = vmatprep.subr.mxu0 0.0
    %4004 = vmatpush2.msra.mxu0 0.0
    %4005 = vmatprep.subr.mxu0 0.0
    %4006 = vmatpush2.msra.mxu0 0.0
    %4007 = vmatprep.subr.mxu0 0.0
    %4008 = vmatpush2.msra.mxu0 0.0
    %4009 = vmatprep.subr.mxu0 0.0
    %4010 = vmatpush2.msra.mxu0 0.0
    %4011 = vmatprep.subr.mxu0 0.0
    %4012 = vmatpush2.msra.mxu0 0.0
    %4013 = vmatprep.subr.mxu0 0.0
    %4014 = vmatpush2.msra.mxu0 0.0
    %4015 = vmatprep.subr.mxu0 0.0
    %4016 = vmatpush2.msra.mxu0 0.0
    %4017 = vmatprep.subr.mxu0 0.0
    %4018 = vmatpush2.msra.mxu0 0.0
    %4019 = vmatprep.subr.mxu0 0.0
    %4020 = vmatpush2.msra.mxu0 0.0
    %4021 = vmatprep.subr.mxu0 0.0
    %4022 = vmatpush2.msra.mxu0 0.0
    %4023 = vmatprep.subr.mxu0 0.0
    %4024 = vmatpush2.msra.mxu0 0.0
    %4025 = vmatprep.subr.mxu0 0.0
    %4026 = vmatpush2.msra.mxu0 0.0
    %4027 = vmatprep.subr.mxu0 0.0
    %4028 = vmatpush2.msra.mxu0 0.0
    %4029 = vmatprep.subr.mxu0 0.0
    %4030 = vmatpush2.msra.mxu0 0.0
    %4031 = vmatprep.mubr.f32.mxu0 0.0
    %4032 = vmatmul.mubr.f32.gmra.mxu0 %v3846
    %v4033 = vpop.f32.mrf.mxu0
    %v4034 = vadd.f32 %v3929, %v4033
    %v4035 = vpop.f32.mrf.mxu0
    %4036 = vmatprep.mubr.f32.mxu0 0.0
    %4037 = vmatmul.mubr.f32.gmra.mxu0 %v3847
    %v4038 = vpop.f32.mrf.mxu0
    %v4039 = vadd.f32 %v3934, %v4038
    %v4040 = vpop.f32.mrf.mxu0
    %4041 = vmatprep.mubr.f32.mxu0 0.0
    %4042 = vmatmul.mubr.f32.gmra.mxu0 %v3848
    %v4043 = vpop.f32.mrf.mxu0
    %v4044 = vadd.f32 %v3939, %v4043
    %v4045 = vpop.f32.mrf.mxu0
    %4046 = vmatprep.mubr.f32.mxu0 0.0
    %4047 = vmatmul.mubr.f32.gmra.mxu0 %v3849
    %v4048 = vpop.f32.mrf.mxu0
    %v4049 = vadd.f32 %v3944, %v4048
    %v4050 = vpop.f32.mrf.mxu0
    %4051 = vmatprep.mubr.f32.mxu0 0.0
    %4052 = vmatmul.mubr.f32.gmra.mxu0 %v3850
    %v4053 = vpop.f32.mrf.mxu0
    %v4054 = vadd.f32 %v3949, %v4053
    %v4055 = vpop.f32.mrf.mxu0
    %4056 = vmatprep.mubr.f32.mxu0 0.0
    %4057 = vmatmul.mubr.f32.gmra.mxu0 %v3851
    %v4058 = vpop.f32.mrf.mxu0
    %v4059 = vadd.f32 %v3954, %v4058
    %v4060 = vpop.f32.mrf.mxu0
    %4061 = vmatprep.mubr.f32.mxu0 0.0
    %4062 = vmatmul.mubr.f32.gmra.mxu0 %v3852
    %v4063 = vpop.f32.mrf.mxu0
    %v4064 = vadd.f32 %v3959, %v4063
    %v4065 = vpop.f32.mrf.mxu0
    %4066 = vmatprep.mubr.f32.mxu0 0.0
    %4067 = vmatmul.mubr.f32.gmra.mxu0 %v3853
    %v4068 = vpop.f32.mrf.mxu0
    %v4069 = vadd.f32 %v3964, %v4068
    %v4070 = vpop.f32.mrf.mxu0
    %4071 = vdwg.mxu0
    %v4072 = vld [vmem:[%s6] sm:$0x1]
    %v4074 = vlaneseq
    %v4075 = vshrl.u32 %v4074, 7
    %v4076 = vsub.s32 0, %v4075
    %v4077 = vrot.slane %v4072, %v4076
    %v4079 = vadd.f32 %v4034, %v4077
    %v4080 = vadd.f32 %v4039, %v4077
    %v4081 = vadd.f32 %v4044, %v4077
    %v4082 = vadd.f32 %v4049, %v4077
    %v4083 = vadd.f32 %v4054, %v4077
    %v4084 = vadd.f32 %v4059, %v4077
    %v4085 = vadd.f32 %v4064, %v4077
    %v4086 = vadd.f32 %v4069, %v4077
    %4087 = vst [vmem:[#allocation17] sm:$0xff] %v4079
    %4088 = vst [vmem:[#allocation17 + $0x8] sm:$0xff] %v4080
    %4089 = vst [vmem:[#allocation17 + $0x10] sm:$0xff] %v4081
    %4090 = vst [vmem:[#allocation17 + $0x18] sm:$0xff] %v4082
    %4091 = vst [vmem:[#allocation17 + $0x20] sm:$0xff] %v4083
    %4092 = vst [vmem:[#allocation17 + $0x28] sm:$0xff] %v4084
    %4093 = vst [vmem:[#allocation17 + $0x30] sm:$0xff] %v4085
    %4094 = vst [vmem:[#allocation17 + $0x38] sm:$0xff] %v4086
    // Predicated region
    $region54: #{tpu_custom_call.1} parent=1 // pred_check
      _
    $region55: #{tpu_custom_call.1} parent=1 // pred_check_branch
      %4096 = sbr.rel (0) target = $region57
    $region56: #{tpu_custom_call.1} parent=1 // pred_region
      %s4098 = ssub.s32 1024, 1024
      %4099 = vsyncadd [#allocation8], %s4098
      %s4100 = sshll.u32 [#allocation17], 4
      %s4101 = int_to_ptr.vmem [resolvable:$true] %s4100
      %4106 = dma.vmem_to_hbm [thread:$0]  %s4101, 1024, %s7, [#allocation8], 128, 128, 8
    $region57: #{tpu_custom_call.1} parent=1 // pred_fallthru
      _
    // Predicated region
    $region58: #{tpu_custom_call.1} parent=1 // pred_check
      _
    $region59: #{tpu_custom_call.1} parent=1 // pred_check_branch
      %4108 = sbr.rel (0) target = $region61
    $region60: #{tpu_custom_call.1} parent=1 // pred_region
      %4109 = dma.done [#allocation8], 1024
    $region61: #{tpu_custom_call.1} parent=1 // pred_fallthru
      _
    %4110 = vsyncpa [#allocation7], 1
    %4111 = vsyncpa [#allocation10], 1
    %4112 = vsyncpa [#allocation13], 1
    %4113 = vsyncpa [#allocation16], 1
    %4114 = vsyncpa [#allocation8], 1

</llo_original>
